<compile_context>
chip_gen: v6e
topology: v6e:2x2x1
jax: 0.10.0
libtpu: 0.0.40
codegen_flags: <defaults>
</compile_context>

<pallas_src>
import functools
import math

import numpy as np

import jax
import jax.numpy as jnp
from jax import lax
from jax.experimental import pallas as pl
from jax.experimental.pallas import tpu as pltpu


_MXU_LANE = 128          # output lane pad -> unmasked vector stores
_MAX_FRAME_UNROLL = 32   # cap on frames per grid step (code-size limiter)


def _round_up(x: int, m: int) -> int:
    return ((x + m - 1) // m) * m


def _pytorch_bilinear_weights(out_size: int, in_size: int,
                              out_pad: int, in_pad: int) -> np.ndarray:
    """(out_pad, in_pad) f32 interpolation matrix matching
    torch.nn.functional.interpolate(mode='bilinear', align_corners=False) along
    one axis. Rows >= out_size and cols >= in_size are zero (padding)."""
    scale = in_size / out_size
    dst = np.arange(out_size, dtype=np.float32)
    src = (dst + 0.5) * scale - 0.5
    src = np.maximum(src, 0.0).astype(np.float32)     # PyTorch clamps negatives
    i0 = np.clip(np.floor(src).astype(np.int64), 0, in_size - 1)
    i1 = np.minimum(i0 + 1, in_size - 1)
    frac = (src - i0.astype(np.float32)).astype(np.float32)
    m = np.zeros((out_pad, in_pad), dtype=np.float32)
    rows = np.arange(out_size)
    np.add.at(m, (rows, i0), np.float32(1.0) - frac)
    np.add.at(m, (rows, i1), frac)
    return m


def _vmem_capacity_bytes() -> int:
    try:
        info = pltpu.get_tpu_info()
        cap = getattr(info, "vmem_capacity_bytes", None)
        if cap:
            return int(cap)
    except Exception:
        pass
    return 128 << 20   # v5e / v6e default


def _choose_frame_block(n_frames: int, bytes_per_frame: int, budget_bytes: int,
                        max_unroll: int, prefer_even_grid: bool) -> int:
    """Largest frame batch F that divides n_frames, fits the VMEM budget and the
    unroll cap; on megacore parts prefer an even grid length so both TCs work."""
    cap = max(1, min(max_unroll, budget_bytes // max(1, bytes_per_frame)))
    cap = min(cap, n_frames)
    divisors = [f for f in range(1, cap + 1) if n_frames % f == 0]
    if prefer_even_grid:
        even = [f for f in divisors if (n_frames // f) % 2 == 0]
        if even:
            return max(even)
    return max(divisors)


@functools.lru_cache(maxsize=None)
def _build_short_side_scale(shape, dtype_name, size, use_bf16):
    C, T, H, W = shape
    in_dtype = jnp.dtype(dtype_name)

    # pytorchvideo.short_side_scale geometry.
    if W < H:
        new_h = int(math.floor((float(H) / W) * size))
        new_w = size
    else:
        new_h = size
        new_w = int(math.floor((float(W) / H) * size))

    # IO dtype stays float (ints promoted); MXU compute runs in bf16 unless disabled.
    if in_dtype == jnp.bfloat16:
        io_dtype = jnp.bfloat16
    elif jnp.issubdtype(in_dtype, jnp.floating):
        io_dtype = jnp.float32
    else:
        # TODO(synk): integer video would need round-to-nearest + cast back to int.
        io_dtype = jnp.float32
    compute_dtype = jnp.bfloat16 if use_bf16 else io_dtype

    io_esize = jnp.dtype(io_dtype).itemsize
    comp_esize = jnp.dtype(compute_dtype).itemsize
    in_pack = 16 if (io_esize == 2 or comp_esize == 2) else 8
    out_pack = 16 if io_esize == 2 else 8

    H_pad = _round_up(H, in_pack)
    new_h_pad = _round_up(new_h, out_pack)
    new_w_pad = _round_up(new_w, _MXU_LANE)

    # Interpolation matrices, zero-padded, cast once (kept resident in VMEM).
    rh = jnp.asarray(_pytorch_bilinear_weights(new_h, H, new_h_pad, H_pad),
                     dtype=compute_dtype)                    # (new_h_pad, H_pad)
    rwT = jnp.asarray(_pytorch_bilinear_weights(new_w, W, new_w_pad, W).T,
                      dtype=compute_dtype)                   # (W, new_w_pad)

    N = C * T

    # Generation-aware VMEM budgeting.
    vmem_cap = _vmem_capacity_bytes()
    if vmem_cap <= (96 << 20):        # v7x-class: 64 MiB per TensorCore, 2 TCs
        budget_bytes = 20 << 20
        vmem_limit = min(44 << 20, max(16 << 20, vmem_cap - (16 << 20)))
        prefer_even_grid = True
    else:                             # v5e / v6e: 128 MiB, single TC
        budget_bytes = 48 << 20
        vmem_limit = 80 << 20
        prefer_even_grid = False

    bytes_per_frame = (
        2 * H_pad * W * io_esize                    # double-buffered input block
        + 2 * new_h_pad * new_w_pad * io_esize      # double-buffered output block
        + H_pad * new_w_pad * comp_esize            # VMEM-staged intermediate
        + H_pad * new_w_pad * 4                     # transient f32 stage-1 result
        + new_h_pad * new_w_pad * 4)                # transient f32 stage-2 result
    F = _choose_frame_block(N, bytes_per_frame, budget_bytes,
                            _MAX_FRAME_UNROLL, prefer_even_grid)

    def kernel(x_ref, rh_ref, rwT_ref, o_ref, t_ref):
        # Stage 1: W-axis resize of all F frames as ONE MXU matmul (M = F*H_pad).
        # Reshape on the f32/io layout (H_pad is a pack multiple -> layout-free),
        # then cast to the bf16 compute dtype.
        xb = x_ref[...].reshape(F * H_pad, W).astype(compute_dtype)
        t2 = jnp.dot(xb, rwT_ref[...], preferred_element_type=jnp.float32)
        t_ref[...] = t2.reshape(F, H_pad, new_w_pad).astype(compute_dtype)

        # Stage 2: H-axis resize per frame from the VMEM-staged intermediate.
        # Ref-indexed fori_loop bounds live ranges; Rh stays resident.
        rhm = rh_ref[...]

        def body(f, carry):
            o_ref[f] = jnp.dot(rhm, t_ref[f],
                               preferred_element_type=jnp.float32).astype(o_ref.dtype)
            return carry

        lax.fori_loop(0, F, body, 0, unroll=True)

    flops = 2 * N * new_w_pad * (H_pad * W + new_h_pad * H_pad)
    bytes_accessed = N * (H_pad * W + new_h_pad * new_w_pad) * io_esize

    call = pl.pallas_call(
        kernel,
        out_shape=jax.ShapeDtypeStruct((N, new_h_pad, new_w_pad), io_dtype),
        grid_spec=pltpu.PrefetchScalarGridSpec(
            num_scalar_prefetch=0,
            grid=(N // F,),
            in_specs=[
                pl.BlockSpec((F, H_pad, W), lambda g: (g, 0, 0)),
                pl.BlockSpec((new_h_pad, H_pad), lambda g: (0, 0)),   # resident weights
                pl.BlockSpec((W, new_w_pad), lambda g: (0, 0)),       # resident weights
            ],
            out_specs=pl.BlockSpec((F, new_h_pad, new_w_pad), lambda g: (g, 0, 0)),
            scratch_shapes=[pltpu.VMEM((F, H_pad, new_w_pad), compute_dtype)],
        ),
        compiler_params=pltpu.CompilerParams(
            dimension_semantics=("parallel",),
            vmem_limit_bytes=int(vmem_limit),
        ),
        cost_estimate=pl.CostEstimate(flops=int(flops), transcendentals=0,
                                      bytes_accessed=int(bytes_accessed)),
    )

    @jax.jit
    def run(x):
        x3 = x.astype(io_dtype).reshape(N, H, W)
        if H_pad != H:
            x3 = jnp.pad(x3, ((0, 0), (0, H_pad - H), (0, 0)))
        out = call(x3, rh, rwT)
        out = out[:, :new_h, :new_w]          # drop lane/sublane padding (cheap slice)
        return out.reshape(C, T, new_h, new_w)

    return run


def short_side_scale_pallas(x: jnp.ndarray, size: int, *, use_bf16: bool = True):
    """x: (C, T, H, W) float. Returns (C, T, new_h, new_w), short side == size."""
    fn = _build_short_side_scale(tuple(int(d) for d in x.shape),
                                 jnp.dtype(x.dtype).name, int(size), bool(use_bf16))
    return fn(x)


def random_short_side_scale(x: jnp.ndarray, min_size: int, max_size: int,
                            rng: np.random.Generator = None) -> jnp.ndarray:
    """Host-side random size draw (output shape is data dependent, so this runs
    eagerly — it cannot be placed under jit). Compiles are cached per size."""
    if rng is None:
        rng = np.random.default_rng()
    size = int(rng.integers(min_size, max_size + 1))
    return short_side_scale_pallas(x, size)


def _reference_resize(x: jnp.ndarray, new_h: int, new_w: int) -> jnp.ndarray:
    """Pure-JAX gather reference of PyTorch bilinear (align_corners=False)."""
    C, T, H, W = x.shape

    def src_idx(out_size, in_size):
        scale = in_size / out_size
        s = (jnp.arange(out_size, dtype=jnp.float32) + 0.5) * scale - 0.5
        s = jnp.maximum(s, 0.0)
        i0 = jnp.clip(jnp.floor(s).astype(jnp.int32), 0, in_size - 1)
        i1 = jnp.minimum(i0 + 1, in_size - 1)
        f = s - i0.astype(jnp.float32)
        return i0, i1, f

    h0, h1, fh = src_idx(new_h, H)
    w0, w1, fw = src_idx(new_w, W)
    xf = x.astype(jnp.float32)
    top = xf[..., h0, :] * (1 - fh)[:, None] + xf[..., h1, :] * fh[:, None]
    out = top[..., :, w0] * (1 - fw) + top[..., :, w1] * fw
    return out


if __name__ == "__main__":
    key = jax.random.PRNGKey(0)

    C, T, H, W = 4, 8, 16, 20        # short side = H = 16
    min_size, max_size = 8, 12

    x = jax.random.normal(key, (C, T, H, W), dtype=jnp.float32)

    # Module forward: random size draw + short_side_scale (bf16 MXU path).
    rng = np.random.default_rng(0)
    out = random_short_side_scale(x, min_size, max_size, rng)
    out = jax.block_until_ready(out)

    new_h, new_w = out.shape[2], out.shape[3]
    assert out.shape == (C, T, new_h, new_w)

    ref = _reference_resize(x, new_h, new_w)
    err_bf16 = float(jnp.max(jnp.abs(out.astype(jnp.float32) - ref)))
    # bf16 weights/activations (f32 accumulation) -> ~1e-2-level deviation expected.
    assert err_bf16 < 1e-1, err_bf16

    # f32-compute path: tight check of the resize algorithm itself.
    # H < W here, so the drawn size equals new_h.
    out_f32 = jax.block_until_ready(short_side_scale_pallas(x, new_h, use_bf16=False))
    err_f32 = float(jnp.max(jnp.abs(out_f32 - ref)))
    assert err_f32 < 1e-3, err_f32

    print("KERNEL_OK")
</pallas_src>

<mosaic_0001>
module attributes {stable_mosaic.version = 11 : i64} {
  func.func @kernel(%arg0: i32, %arg1: memref<32x16x20xf32, #tpu.memory_space<vmem>>, %arg2: memref<16x16xbf16, #tpu.memory_space<vmem>>, %arg3: memref<20x128xbf16, #tpu.memory_space<vmem>>, %arg4: memref<32x16x128xf32, #tpu.memory_space<vmem>>, %arg5: memref<32x16x128xbf16, #tpu.memory_space<vmem>>) attributes {dimension_semantics = [#tpu.dimension_semantics<parallel>], iteration_bounds = array<i64: 1>, scalar_prefetch = 0 : i64, scratch_operands = 1 : i64, tpu.core_type = #tpu.core_type<tc>, window_params = [{transform_indices = @transform_0, window_bounds = array<i64: 32, 16, 20>}, {pipeline_mode = #tpu.pipeline_mode<synchronous>, transform_indices = @transform_1, window_bounds = array<i64: 16, 16>}, {pipeline_mode = #tpu.pipeline_mode<synchronous>, transform_indices = @transform_2, window_bounds = array<i64: 20, 128>}, {transform_indices = @transform_3, window_bounds = array<i64: 32, 16, 128>}]} {
    %c0 = arith.constant 0 : index
    %c0_0 = arith.constant 0 : index
    %c0_1 = arith.constant 0 : index
    %0 = vector.load %arg1[%c0, %c0_0, %c0_1] : memref<32x16x20xf32, #tpu.memory_space<vmem>>, vector<32x16x20xf32>
    %1 = vector.shape_cast %0 : vector<32x16x20xf32> to vector<512x20xf32>
    %2 = arith.truncf %1 : vector<512x20xf32> to vector<512x20xbf16>
    %c0_2 = arith.constant 0 : index
    %c0_3 = arith.constant 0 : index
    %3 = vector.load %arg3[%c0_2, %c0_3] : memref<20x128xbf16, #tpu.memory_space<vmem>>, vector<20x128xbf16>
    %cst = arith.constant dense<0.000000e+00> : vector<512x128xf32>
    %4 = tpu.matmul %2, %3, %cst {dimension_numbers = #tpu.dot_dimension_numbers<[1], [0], [0], [1], [0, 0, 1, 1], [], []>} : vector<512x20xbf16>, vector<20x128xbf16>, vector<512x128xf32> -> vector<512x128xf32>
    %5 = vector.shape_cast %4 : vector<512x128xf32> to vector<32x16x128xf32>
    %6 = arith.truncf %5 : vector<32x16x128xf32> to vector<32x16x128xbf16>
    %c0_4 = arith.constant 0 : index
    %c0_5 = arith.constant 0 : index
    %c0_6 = arith.constant 0 : index
    %7 = vector.load %arg5[%c0_4, %c0_5, %c0_6] : memref<32x16x128xbf16, #tpu.memory_space<vmem>>, vector<32x16x128xbf16>
    tpu.vector_store %arg5[%c0_4, %c0_5, %c0_6], %6 {strides = array<i32>} : memref<32x16x128xbf16, #tpu.memory_space<vmem>>, vector<32x16x128xbf16>,
    %c0_7 = arith.constant 0 : index
    %c0_8 = arith.constant 0 : index
    %8 = vector.load %arg2[%c0_7, %c0_8] : memref<16x16xbf16, #tpu.memory_space<vmem>>, vector<16x16xbf16>
    %c0_i32 = arith.constant 0 : i32
    %9 = arith.index_cast %c0_i32 : i32 to index
    %c0_9 = arith.constant 0 : index
    %c0_10 = arith.constant 0 : index
    %10 = vector.load %arg5[%9, %c0_9, %c0_10] : memref<32x16x128xbf16, #tpu.memory_space<vmem>>, vector<1x16x128xbf16>
    %11 = vector.shape_cast %10 : vector<1x16x128xbf16> to vector<16x128xbf16>
    %cst_11 = arith.constant dense<0.000000e+00> : vector<16x128xf32>
    %12 = tpu.matmul %8, %11, %cst_11 {dimension_numbers = #tpu.dot_dimension_numbers<[1], [0], [0], [1], [0, 0, 1, 1], [], []>} : vector<16x16xbf16>, vector<16x128xbf16>, vector<16x128xf32> -> vector<16x128xf32>
    %13 = arith.index_cast %c0_i32 : i32 to index
    %c0_12 = arith.constant 0 : index
    %c0_13 = arith.constant 0 : index
    %14 = vector.load %arg4[%13, %c0_12, %c0_13] : memref<32x16x128xf32, #tpu.memory_space<vmem>>, vector<1x16x128xf32>
    %15 = vector.shape_cast %14 : vector<1x16x128xf32> to vector<16x128xf32>
    %16 = vector.shape_cast %12 : vector<16x128xf32> to vector<1x16x128xf32>
    tpu.vector_store %arg4[%13, %c0_12, %c0_13], %16 {strides = array<i32>} : memref<32x16x128xf32, #tpu.memory_space<vmem>>, vector<1x16x128xf32>,
    %c1_i32 = arith.constant 1 : i32
    %17 = arith.index_cast %c1_i32 : i32 to index
    %c0_14 = arith.constant 0 : index
    %c0_15 = arith.constant 0 : index
    %18 = vector.load %arg5[%17, %c0_14, %c0_15] : memref<32x16x128xbf16, #tpu.memory_space<vmem>>, vector<1x16x128xbf16>
    %19 = vector.shape_cast %18 : vector<1x16x128xbf16> to vector<16x128xbf16>
    %cst_16 = arith.constant dense<0.000000e+00> : vector<16x128xf32>
    %20 = tpu.matmul %8, %19, %cst_16 {dimension_numbers = #tpu.dot_dimension_numbers<[1], [0], [0], [1], [0, 0, 1, 1], [], []>} : vector<16x16xbf16>, vector<16x128xbf16>, vector<16x128xf32> -> vector<16x128xf32>
    %21 = arith.index_cast %c1_i32 : i32 to index
    %c0_17 = arith.constant 0 : index
    %c0_18 = arith.constant 0 : index
    %22 = vector.load %arg4[%21, %c0_17, %c0_18] : memref<32x16x128xf32, #tpu.memory_space<vmem>>, vector<1x16x128xf32>
    %23 = vector.shape_cast %22 : vector<1x16x128xf32> to vector<16x128xf32>
    %24 = vector.shape_cast %20 : vector<16x128xf32> to vector<1x16x128xf32>
    tpu.vector_store %arg4[%21, %c0_17, %c0_18], %24 {strides = array<i32>} : memref<32x16x128xf32, #tpu.memory_space<vmem>>, vector<1x16x128xf32>,
    %c2_i32 = arith.constant 2 : i32
    %25 = arith.index_cast %c2_i32 : i32 to index
    %c0_19 = arith.constant 0 : index
    %c0_20 = arith.constant 0 : index
    %26 = vector.load %arg5[%25, %c0_19, %c0_20] : memref<32x16x128xbf16, #tpu.memory_space<vmem>>, vector<1x16x128xbf16>
    %27 = vector.shape_cast %26 : vector<1x16x128xbf16> to vector<16x128xbf16>
    %cst_21 = arith.constant dense<0.000000e+00> : vector<16x128xf32>
    %28 = tpu.matmul %8, %27, %cst_21 {dimension_numbers = #tpu.dot_dimension_numbers<[1], [0], [0], [1], [0, 0, 1, 1], [], []>} : vector<16x16xbf16>, vector<16x128xbf16>, vector<16x128xf32> -> vector<16x128xf32>
    %29 = arith.index_cast %c2_i32 : i32 to index
    %c0_22 = arith.constant 0 : index
    %c0_23 = arith.constant 0 : index
    %30 = vector.load %arg4[%29, %c0_22, %c0_23] : memref<32x16x128xf32, #tpu.memory_space<vmem>>, vector<1x16x128xf32>
    %31 = vector.shape_cast %30 : vector<1x16x128xf32> to vector<16x128xf32>
    %32 = vector.shape_cast %28 : vector<16x128xf32> to vector<1x16x128xf32>
    tpu.vector_store %arg4[%29, %c0_22, %c0_23], %32 {strides = array<i32>} : memref<32x16x128xf32, #tpu.memory_space<vmem>>, vector<1x16x128xf32>,
    %c3_i32 = arith.constant 3 : i32
    %33 = arith.index_cast %c3_i32 : i32 to index
    %c0_24 = arith.constant 0 : index
    %c0_25 = arith.constant 0 : index
    %34 = vector.load %arg5[%33, %c0_24, %c0_25] : memref<32x16x128xbf16, #tpu.memory_space<vmem>>, vector<1x16x128xbf16>
    %35 = vector.shape_cast %34 : vector<1x16x128xbf16> to vector<16x128xbf16>
    %cst_26 = arith.constant dense<0.000000e+00> : vector<16x128xf32>
    %36 = tpu.matmul %8, %35, %cst_26 {dimension_numbers = #tpu.dot_dimension_numbers<[1], [0], [0], [1], [0, 0, 1, 1], [], []>} : vector<16x16xbf16>, vector<16x128xbf16>, vector<16x128xf32> -> vector<16x128xf32>
    %37 = arith.index_cast %c3_i32 : i32 to index
    %c0_27 = arith.constant 0 : index
    %c0_28 = arith.constant 0 : index
    %38 = vector.load %arg4[%37, %c0_27, %c0_28] : memref<32x16x128xf32, #tpu.memory_space<vmem>>, vector<1x16x128xf32>
    %39 = vector.shape_cast %38 : vector<1x16x128xf32> to vector<16x128xf32>
    %40 = vector.shape_cast %36 : vector<16x128xf32> to vector<1x16x128xf32>
    tpu.vector_store %arg4[%37, %c0_27, %c0_28], %40 {strides = array<i32>} : memref<32x16x128xf32, #tpu.memory_space<vmem>>, vector<1x16x128xf32>,
    %c4_i32 = arith.constant 4 : i32
    %41 = arith.index_cast %c4_i32 : i32 to index
    %c0_29 = arith.constant 0 : index
    %c0_30 = arith.constant 0 : index
    %42 = vector.load %arg5[%41, %c0_29, %c0_30] : memref<32x16x128xbf16, #tpu.memory_space<vmem>>, vector<1x16x128xbf16>
    %43 = vector.shape_cast %42 : vector<1x16x128xbf16> to vector<16x128xbf16>
    %cst_31 = arith.constant dense<0.000000e+00> : vector<16x128xf32>
    %44 = tpu.matmul %8, %43, %cst_31 {dimension_numbers = #tpu.dot_dimension_numbers<[1], [0], [0], [1], [0, 0, 1, 1], [], []>} : vector<16x16xbf16>, vector<16x128xbf16>, vector<16x128xf32> -> vector<16x128xf32>
    %45 = arith.index_cast %c4_i32 : i32 to index
    %c0_32 = arith.constant 0 : index
    %c0_33 = arith.constant 0 : index
    %46 = vector.load %arg4[%45, %c0_32, %c0_33] : memref<32x16x128xf32, #tpu.memory_space<vmem>>, vector<1x16x128xf32>
    %47 = vector.shape_cast %46 : vector<1x16x128xf32> to vector<16x128xf32>
    %48 = vector.shape_cast %44 : vector<16x128xf32> to vector<1x16x128xf32>
    tpu.vector_store %arg4[%45, %c0_32, %c0_33], %48 {strides = array<i32>} : memref<32x16x128xf32, #tpu.memory_space<vmem>>, vector<1x16x128xf32>,
    %c5_i32 = arith.constant 5 : i32
    %49 = arith.index_cast %c5_i32 : i32 to index
    %c0_34 = arith.constant 0 : index
    %c0_35 = arith.constant 0 : index
    %50 = vector.load %arg5[%49, %c0_34, %c0_35] : memref<32x16x128xbf16, #tpu.memory_space<vmem>>, vector<1x16x128xbf16>
    %51 = vector.shape_cast %50 : vector<1x16x128xbf16> to vector<16x128xbf16>
    %cst_36 = arith.constant dense<0.000000e+00> : vector<16x128xf32>
    %52 = tpu.matmul %8, %51, %cst_36 {dimension_numbers = #tpu.dot_dimension_numbers<[1], [0], [0], [1], [0, 0, 1, 1], [], []>} : vector<16x16xbf16>, vector<16x128xbf16>, vector<16x128xf32> -> vector<16x128xf32>
    %53 = arith.index_cast %c5_i32 : i32 to index
    %c0_37 = arith.constant 0 : index
    %c0_38 = arith.constant 0 : index
    %54 = vector.load %arg4[%53, %c0_37, %c0_38] : memref<32x16x128xf32, #tpu.memory_space<vmem>>, vector<1x16x128xf32>
    %55 = vector.shape_cast %54 : vector<1x16x128xf32> to vector<16x128xf32>
    %56 = vector.shape_cast %52 : vector<16x128xf32> to vector<1x16x128xf32>
    tpu.vector_store %arg4[%53, %c0_37, %c0_38], %56 {strides = array<i32>} : memref<32x16x128xf32, #tpu.memory_space<vmem>>, vector<1x16x128xf32>,
    %c6_i32 = arith.constant 6 : i32
    %57 = arith.index_cast %c6_i32 : i32 to index
    %c0_39 = arith.constant 0 : index
    %c0_40 = arith.constant 0 : index
    %58 = vector.load %arg5[%57, %c0_39, %c0_40] : memref<32x16x128xbf16, #tpu.memory_space<vmem>>, vector<1x16x128xbf16>
    %59 = vector.shape_cast %58 : vector<1x16x128xbf16> to vector<16x128xbf16>
    %cst_41 = arith.constant dense<0.000000e+00> : vector<16x128xf32>
    %60 = tpu.matmul %8, %59, %cst_41 {dimension_numbers = #tpu.dot_dimension_numbers<[1], [0], [0], [1], [0, 0, 1, 1], [], []>} : vector<16x16xbf16>, vector<16x128xbf16>, vector<16x128xf32> -> vector<16x128xf32>
    %61 = arith.index_cast %c6_i32 : i32 to index
    %c0_42 = arith.constant 0 : index
    %c0_43 = arith.constant 0 : index
    %62 = vector.load %arg4[%61, %c0_42, %c0_43] : memref<32x16x128xf32, #tpu.memory_space<vmem>>, vector<1x16x128xf32>
    %63 = vector.shape_cast %62 : vector<1x16x128xf32> to vector<16x128xf32>
    %64 = vector.shape_cast %60 : vector<16x128xf32> to vector<1x16x128xf32>
    tpu.vector_store %arg4[%61, %c0_42, %c0_43], %64 {strides = array<i32>} : memref<32x16x128xf32, #tpu.memory_space<vmem>>, vector<1x16x128xf32>,
    %c7_i32 = arith.constant 7 : i32
    %65 = arith.index_cast %c7_i32 : i32 to index
    %c0_44 = arith.constant 0 : index
    %c0_45 = arith.constant 0 : index
    %66 = vector.load %arg5[%65, %c0_44, %c0_45] : memref<32x16x128xbf16, #tpu.memory_space<vmem>>, vector<1x16x128xbf16>
    %67 = vector.shape_cast %66 : vector<1x16x128xbf16> to vector<16x128xbf16>
    %cst_46 = arith.constant dense<0.000000e+00> : vector<16x128xf32>
    %68 = tpu.matmul %8, %67, %cst_46 {dimension_numbers = #tpu.dot_dimension_numbers<[1], [0], [0], [1], [0, 0, 1, 1], [], []>} : vector<16x16xbf16>, vector<16x128xbf16>, vector<16x128xf32> -> vector<16x128xf32>
    %69 = arith.index_cast %c7_i32 : i32 to index
    %c0_47 = arith.constant 0 : index
    %c0_48 = arith.constant 0 : index
    %70 = vector.load %arg4[%69, %c0_47, %c0_48] : memref<32x16x128xf32, #tpu.memory_space<vmem>>, vector<1x16x128xf32>
    %71 = vector.shape_cast %70 : vector<1x16x128xf32> to vector<16x128xf32>
    %72 = vector.shape_cast %68 : vector<16x128xf32> to vector<1x16x128xf32>
    tpu.vector_store %arg4[%69, %c0_47, %c0_48], %72 {strides = array<i32>} : memref<32x16x128xf32, #tpu.memory_space<vmem>>, vector<1x16x128xf32>,
    %c8_i32 = arith.constant 8 : i32
    %73 = arith.index_cast %c8_i32 : i32 to index
    %c0_49 = arith.constant 0 : index
    %c0_50 = arith.constant 0 : index
    %74 = vector.load %arg5[%73, %c0_49, %c0_50] : memref<32x16x128xbf16, #tpu.memory_space<vmem>>, vector<1x16x128xbf16>
    %75 = vector.shape_cast %74 : vector<1x16x128xbf16> to vector<16x128xbf16>
    %cst_51 = arith.constant dense<0.000000e+00> : vector<16x128xf32>
    %76 = tpu.matmul %8, %75, %cst_51 {dimension_numbers = #tpu.dot_dimension_numbers<[1], [0], [0], [1], [0, 0, 1, 1], [], []>} : vector<16x16xbf16>, vector<16x128xbf16>, vector<16x128xf32> -> vector<16x128xf32>
    %77 = arith.index_cast %c8_i32 : i32 to index
    %c0_52 = arith.constant 0 : index
    %c0_53 = arith.constant 0 : index
    %78 = vector.load %arg4[%77, %c0_52, %c0_53] : memref<32x16x128xf32, #tpu.memory_space<vmem>>, vector<1x16x128xf32>
    %79 = vector.shape_cast %78 : vector<1x16x128xf32> to vector<16x128xf32>
    %80 = vector.shape_cast %76 : vector<16x128xf32> to vector<1x16x128xf32>
    tpu.vector_store %arg4[%77, %c0_52, %c0_53], %80 {strides = array<i32>} : memref<32x16x128xf32, #tpu.memory_space<vmem>>, vector<1x16x128xf32>,
    %c9_i32 = arith.constant 9 : i32
    %81 = arith.index_cast %c9_i32 : i32 to index
    %c0_54 = arith.constant 0 : index
    %c0_55 = arith.constant 0 : index
    %82 = vector.load %arg5[%81, %c0_54, %c0_55] : memref<32x16x128xbf16, #tpu.memory_space<vmem>>, vector<1x16x128xbf16>
    %83 = vector.shape_cast %82 : vector<1x16x128xbf16> to vector<16x128xbf16>
    %cst_56 = arith.constant dense<0.000000e+00> : vector<16x128xf32>
    %84 = tpu.matmul %8, %83, %cst_56 {dimension_numbers = #tpu.dot_dimension_numbers<[1], [0], [0], [1], [0, 0, 1, 1], [], []>} : vector<16x16xbf16>, vector<16x128xbf16>, vector<16x128xf32> -> vector<16x128xf32>
    %85 = arith.index_cast %c9_i32 : i32 to index
    %c0_57 = arith.constant 0 : index
    %c0_58 = arith.constant 0 : index
    %86 = vector.load %arg4[%85, %c0_57, %c0_58] : memref<32x16x128xf32, #tpu.memory_space<vmem>>, vector<1x16x128xf32>
    %87 = vector.shape_cast %86 : vector<1x16x128xf32> to vector<16x128xf32>
    %88 = vector.shape_cast %84 : vector<16x128xf32> to vector<1x16x128xf32>
    tpu.vector_store %arg4[%85, %c0_57, %c0_58], %88 {strides = array<i32>} : memref<32x16x128xf32, #tpu.memory_space<vmem>>, vector<1x16x128xf32>,
    %c10_i32 = arith.constant 10 : i32
    %89 = arith.index_cast %c10_i32 : i32 to index
    %c0_59 = arith.constant 0 : index
    %c0_60 = arith.constant 0 : index
    %90 = vector.load %arg5[%89, %c0_59, %c0_60] : memref<32x16x128xbf16, #tpu.memory_space<vmem>>, vector<1x16x128xbf16>
    %91 = vector.shape_cast %90 : vector<1x16x128xbf16> to vector<16x128xbf16>
    %cst_61 = arith.constant dense<0.000000e+00> : vector<16x128xf32>
    %92 = tpu.matmul %8, %91, %cst_61 {dimension_numbers = #tpu.dot_dimension_numbers<[1], [0], [0], [1], [0, 0, 1, 1], [], []>} : vector<16x16xbf16>, vector<16x128xbf16>, vector<16x128xf32> -> vector<16x128xf32>
    %93 = arith.index_cast %c10_i32 : i32 to index
    %c0_62 = arith.constant 0 : index
    %c0_63 = arith.constant 0 : index
    %94 = vector.load %arg4[%93, %c0_62, %c0_63] : memref<32x16x128xf32, #tpu.memory_space<vmem>>, vector<1x16x128xf32>
    %95 = vector.shape_cast %94 : vector<1x16x128xf32> to vector<16x128xf32>
    %96 = vector.shape_cast %92 : vector<16x128xf32> to vector<1x16x128xf32>
    tpu.vector_store %arg4[%93, %c0_62, %c0_63], %96 {strides = array<i32>} : memref<32x16x128xf32, #tpu.memory_space<vmem>>, vector<1x16x128xf32>,
    %c11_i32 = arith.constant 11 : i32
    %97 = arith.index_cast %c11_i32 : i32 to index
    %c0_64 = arith.constant 0 : index
    %c0_65 = arith.constant 0 : index
    %98 = vector.load %arg5[%97, %c0_64, %c0_65] : memref<32x16x128xbf16, #tpu.memory_space<vmem>>, vector<1x16x128xbf16>
    %99 = vector.shape_cast %98 : vector<1x16x128xbf16> to vector<16x128xbf16>
    %cst_66 = arith.constant dense<0.000000e+00> : vector<16x128xf32>
    %100 = tpu.matmul %8, %99, %cst_66 {dimension_numbers = #tpu.dot_dimension_numbers<[1], [0], [0], [1], [0, 0, 1, 1], [], []>} : vector<16x16xbf16>, vector<16x128xbf16>, vector<16x128xf32> -> vector<16x128xf32>
    %101 = arith.index_cast %c11_i32 : i32 to index
    %c0_67 = arith.constant 0 : index
    %c0_68 = arith.constant 0 : index
    %102 = vector.load %arg4[%101, %c0_67, %c0_68] : memref<32x16x128xf32, #tpu.memory_space<vmem>>, vector<1x16x128xf32>
    %103 = vector.shape_cast %102 : vector<1x16x128xf32> to vector<16x128xf32>
    %104 = vector.shape_cast %100 : vector<16x128xf32> to vector<1x16x128xf32>
    tpu.vector_store %arg4[%101, %c0_67, %c0_68], %104 {strides = array<i32>} : memref<32x16x128xf32, #tpu.memory_space<vmem>>, vector<1x16x128xf32>,
    %c12_i32 = arith.constant 12 : i32
    %105 = arith.index_cast %c12_i32 : i32 to index
    %c0_69 = arith.constant 0 : index
    %c0_70 = arith.constant 0 : index
    %106 = vector.load %arg5[%105, %c0_69, %c0_70] : memref<32x16x128xbf16, #tpu.memory_space<vmem>>, vector<1x16x128xbf16>
    %107 = vector.shape_cast %106 : vector<1x16x128xbf16> to vector<16x128xbf16>
    %cst_71 = arith.constant dense<0.000000e+00> : vector<16x128xf32>
    %108 = tpu.matmul %8, %107, %cst_71 {dimension_numbers = #tpu.dot_dimension_numbers<[1], [0], [0], [1], [0, 0, 1, 1], [], []>} : vector<16x16xbf16>, vector<16x128xbf16>, vector<16x128xf32> -> vector<16x128xf32>
    %109 = arith.index_cast %c12_i32 : i32 to index
    %c0_72 = arith.constant 0 : index
    %c0_73 = arith.constant 0 : index
    %110 = vector.load %arg4[%109, %c0_72, %c0_73] : memref<32x16x128xf32, #tpu.memory_space<vmem>>, vector<1x16x128xf32>
    %111 = vector.shape_cast %110 : vector<1x16x128xf32> to vector<16x128xf32>
    %112 = vector.shape_cast %108 : vector<16x128xf32> to vector<1x16x128xf32>
    tpu.vector_store %arg4[%109, %c0_72, %c0_73], %112 {strides = array<i32>} : memref<32x16x128xf32, #tpu.memory_space<vmem>>, vector<1x16x128xf32>,
    %c13_i32 = arith.constant 13 : i32
    %113 = arith.index_cast %c13_i32 : i32 to index
    %c0_74 = arith.constant 0 : index
    %c0_75 = arith.constant 0 : index
    %114 = vector.load %arg5[%113, %c0_74, %c0_75] : memref<32x16x128xbf16, #tpu.memory_space<vmem>>, vector<1x16x128xbf16>
    %115 = vector.shape_cast %114 : vector<1x16x128xbf16> to vector<16x128xbf16>
    %cst_76 = arith.constant dense<0.000000e+00> : vector<16x128xf32>
    %116 = tpu.matmul %8, %115, %cst_76 {dimension_numbers = #tpu.dot_dimension_numbers<[1], [0], [0], [1], [0, 0, 1, 1], [], []>} : vector<16x16xbf16>, vector<16x128xbf16>, vector<16x128xf32> -> vector<16x128xf32>
    %117 = arith.index_cast %c13_i32 : i32 to index
    %c0_77 = arith.constant 0 : index
    %c0_78 = arith.constant 0 : index
    %118 = vector.load %arg4[%117, %c0_77, %c0_78] : memref<32x16x128xf32, #tpu.memory_space<vmem>>, vector<1x16x128xf32>
    %119 = vector.shape_cast %118 : vector<1x16x128xf32> to vector<16x128xf32>
    %120 = vector.shape_cast %116 : vector<16x128xf32> to vector<1x16x128xf32>
    tpu.vector_store %arg4[%117, %c0_77, %c0_78], %120 {strides = array<i32>} : memref<32x16x128xf32, #tpu.memory_space<vmem>>, vector<1x16x128xf32>,
    %c14_i32 = arith.constant 14 : i32
    %121 = arith.index_cast %c14_i32 : i32 to index
    %c0_79 = arith.constant 0 : index
    %c0_80 = arith.constant 0 : index
    %122 = vector.load %arg5[%121, %c0_79, %c0_80] : memref<32x16x128xbf16, #tpu.memory_space<vmem>>, vector<1x16x128xbf16>
    %123 = vector.shape_cast %122 : vector<1x16x128xbf16> to vector<16x128xbf16>
    %cst_81 = arith.constant dense<0.000000e+00> : vector<16x128xf32>
    %124 = tpu.matmul %8, %123, %cst_81 {dimension_numbers = #tpu.dot_dimension_numbers<[1], [0], [0], [1], [0, 0, 1, 1], [], []>} : vector<16x16xbf16>, vector<16x128xbf16>, vector<16x128xf32> -> vector<16x128xf32>
    %125 = arith.index_cast %c14_i32 : i32 to index
    %c0_82 = arith.constant 0 : index
    %c0_83 = arith.constant 0 : index
    %126 = vector.load %arg4[%125, %c0_82, %c0_83] : memref<32x16x128xf32, #tpu.memory_space<vmem>>, vector<1x16x128xf32>
    %127 = vector.shape_cast %126 : vector<1x16x128xf32> to vector<16x128xf32>
    %128 = vector.shape_cast %124 : vector<16x128xf32> to vector<1x16x128xf32>
    tpu.vector_store %arg4[%125, %c0_82, %c0_83], %128 {strides = array<i32>} : memref<32x16x128xf32, #tpu.memory_space<vmem>>, vector<1x16x128xf32>,
    %c15_i32 = arith.constant 15 : i32
    %129 = arith.index_cast %c15_i32 : i32 to index
    %c0_84 = arith.constant 0 : index
    %c0_85 = arith.constant 0 : index
    %130 = vector.load %arg5[%129, %c0_84, %c0_85] : memref<32x16x128xbf16, #tpu.memory_space<vmem>>, vector<1x16x128xbf16>
    %131 = vector.shape_cast %130 : vector<1x16x128xbf16> to vector<16x128xbf16>
    %cst_86 = arith.constant dense<0.000000e+00> : vector<16x128xf32>
    %132 = tpu.matmul %8, %131, %cst_86 {dimension_numbers = #tpu.dot_dimension_numbers<[1], [0], [0], [1], [0, 0, 1, 1], [], []>} : vector<16x16xbf16>, vector<16x128xbf16>, vector<16x128xf32> -> vector<16x128xf32>
    %133 = arith.index_cast %c15_i32 : i32 to index
    %c0_87 = arith.constant 0 : index
    %c0_88 = arith.constant 0 : index
    %134 = vector.load %arg4[%133, %c0_87, %c0_88] : memref<32x16x128xf32, #tpu.memory_space<vmem>>, vector<1x16x128xf32>
    %135 = vector.shape_cast %134 : vector<1x16x128xf32> to vector<16x128xf32>
    %136 = vector.shape_cast %132 : vector<16x128xf32> to vector<1x16x128xf32>
    tpu.vector_store %arg4[%133, %c0_87, %c0_88], %136 {strides = array<i32>} : memref<32x16x128xf32, #tpu.memory_space<vmem>>, vector<1x16x128xf32>,
    %c16_i32 = arith.constant 16 : i32
    %137 = arith.index_cast %c16_i32 : i32 to index
    %c0_89 = arith.constant 0 : index
    %c0_90 = arith.constant 0 : index
    %138 = vector.load %arg5[%137, %c0_89, %c0_90] : memref<32x16x128xbf16, #tpu.memory_space<vmem>>, vector<1x16x128xbf16>
    %139 = vector.shape_cast %138 : vector<1x16x128xbf16> to vector<16x128xbf16>
    %cst_91 = arith.constant dense<0.000000e+00> : vector<16x128xf32>
    %140 = tpu.matmul %8, %139, %cst_91 {dimension_numbers = #tpu.dot_dimension_numbers<[1], [0], [0], [1], [0, 0, 1, 1], [], []>} : vector<16x16xbf16>, vector<16x128xbf16>, vector<16x128xf32> -> vector<16x128xf32>
    %141 = arith.index_cast %c16_i32 : i32 to index
    %c0_92 = arith.constant 0 : index
    %c0_93 = arith.constant 0 : index
    %142 = vector.load %arg4[%141, %c0_92, %c0_93] : memref<32x16x128xf32, #tpu.memory_space<vmem>>, vector<1x16x128xf32>
    %143 = vector.shape_cast %142 : vector<1x16x128xf32> to vector<16x128xf32>
    %144 = vector.shape_cast %140 : vector<16x128xf32> to vector<1x16x128xf32>
    tpu.vector_store %arg4[%141, %c0_92, %c0_93], %144 {strides = array<i32>} : memref<32x16x128xf32, #tpu.memory_space<vmem>>, vector<1x16x128xf32>,
    %c17_i32 = arith.constant 17 : i32
    %145 = arith.index_cast %c17_i32 : i32 to index
    %c0_94 = arith.constant 0 : index
    %c0_95 = arith.constant 0 : index
    %146 = vector.load %arg5[%145, %c0_94, %c0_95] : memref<32x16x128xbf16, #tpu.memory_space<vmem>>, vector<1x16x128xbf16>
    %147 = vector.shape_cast %146 : vector<1x16x128xbf16> to vector<16x128xbf16>
    %cst_96 = arith.constant dense<0.000000e+00> : vector<16x128xf32>
    %148 = tpu.matmul %8, %147, %cst_96 {dimension_numbers = #tpu.dot_dimension_numbers<[1], [0], [0], [1], [0, 0, 1, 1], [], []>} : vector<16x16xbf16>, vector<16x128xbf16>, vector<16x128xf32> -> vector<16x128xf32>
    %149 = arith.index_cast %c17_i32 : i32 to index
    %c0_97 = arith.constant 0 : index
    %c0_98 = arith.constant 0 : index
    %150 = vector.load %arg4[%149, %c0_97, %c0_98] : memref<32x16x128xf32, #tpu.memory_space<vmem>>, vector<1x16x128xf32>
    %151 = vector.shape_cast %150 : vector<1x16x128xf32> to vector<16x128xf32>
    %152 = vector.shape_cast %148 : vector<16x128xf32> to vector<1x16x128xf32>
    tpu.vector_store %arg4[%149, %c0_97, %c0_98], %152 {strides = array<i32>} : memref<32x16x128xf32, #tpu.memory_space<vmem>>, vector<1x16x128xf32>,
    %c18_i32 = arith.constant 18 : i32
    %153 = arith.index_cast %c18_i32 : i32 to index
    %c0_99 = arith.constant 0 : index
    %c0_100 = arith.constant 0 : index
    %154 = vector.load %arg5[%153, %c0_99, %c0_100] : memref<32x16x128xbf16, #tpu.memory_space<vmem>>, vector<1x16x128xbf16>
    %155 = vector.shape_cast %154 : vector<1x16x128xbf16> to vector<16x128xbf16>
    %cst_101 = arith.constant dense<0.000000e+00> : vector<16x128xf32>
    %156 = tpu.matmul %8, %155, %cst_101 {dimension_numbers = #tpu.dot_dimension_numbers<[1], [0], [0], [1], [0, 0, 1, 1], [], []>} : vector<16x16xbf16>, vector<16x128xbf16>, vector<16x128xf32> -> vector<16x128xf32>
    %157 = arith.index_cast %c18_i32 : i32 to index
    %c0_102 = arith.constant 0 : index
    %c0_103 = arith.constant 0 : index
    %158 = vector.load %arg4[%157, %c0_102, %c0_103] : memref<32x16x128xf32, #tpu.memory_space<vmem>>, vector<1x16x128xf32>
    %159 = vector.shape_cast %158 : vector<1x16x128xf32> to vector<16x128xf32>
    %160 = vector.shape_cast %156 : vector<16x128xf32> to vector<1x16x128xf32>
    tpu.vector_store %arg4[%157, %c0_102, %c0_103], %160 {strides = array<i32>} : memref<32x16x128xf32, #tpu.memory_space<vmem>>, vector<1x16x128xf32>,
    %c19_i32 = arith.constant 19 : i32
    %161 = arith.index_cast %c19_i32 : i32 to index
    %c0_104 = arith.constant 0 : index
    %c0_105 = arith.constant 0 : index
    %162 = vector.load %arg5[%161, %c0_104, %c0_105] : memref<32x16x128xbf16, #tpu.memory_space<vmem>>, vector<1x16x128xbf16>
    %163 = vector.shape_cast %162 : vector<1x16x128xbf16> to vector<16x128xbf16>
    %cst_106 = arith.constant dense<0.000000e+00> : vector<16x128xf32>
    %164 = tpu.matmul %8, %163, %cst_106 {dimension_numbers = #tpu.dot_dimension_numbers<[1], [0], [0], [1], [0, 0, 1, 1], [], []>} : vector<16x16xbf16>, vector<16x128xbf16>, vector<16x128xf32> -> vector<16x128xf32>
    %165 = arith.index_cast %c19_i32 : i32 to index
    %c0_107 = arith.constant 0 : index
    %c0_108 = arith.constant 0 : index
    %166 = vector.load %arg4[%165, %c0_107, %c0_108] : memref<32x16x128xf32, #tpu.memory_space<vmem>>, vector<1x16x128xf32>
    %167 = vector.shape_cast %166 : vector<1x16x128xf32> to vector<16x128xf32>
    %168 = vector.shape_cast %164 : vector<16x128xf32> to vector<1x16x128xf32>
    tpu.vector_store %arg4[%165, %c0_107, %c0_108], %168 {strides = array<i32>} : memref<32x16x128xf32, #tpu.memory_space<vmem>>, vector<1x16x128xf32>,
    %c20_i32 = arith.constant 20 : i32
    %169 = arith.index_cast %c20_i32 : i32 to index
    %c0_109 = arith.constant 0 : index
    %c0_110 = arith.constant 0 : index
    %170 = vector.load %arg5[%169, %c0_109, %c0_110] : memref<32x16x128xbf16, #tpu.memory_space<vmem>>, vector<1x16x128xbf16>
    %171 = vector.shape_cast %170 : vector<1x16x128xbf16> to vector<16x128xbf16>
    %cst_111 = arith.constant dense<0.000000e+00> : vector<16x128xf32>
    %172 = tpu.matmul %8, %171, %cst_111 {dimension_numbers = #tpu.dot_dimension_numbers<[1], [0], [0], [1], [0, 0, 1, 1], [], []>} : vector<16x16xbf16>, vector<16x128xbf16>, vector<16x128xf32> -> vector<16x128xf32>
    %173 = arith.index_cast %c20_i32 : i32 to index
    %c0_112 = arith.constant 0 : index
    %c0_113 = arith.constant 0 : index
    %174 = vector.load %arg4[%173, %c0_112, %c0_113] : memref<32x16x128xf32, #tpu.memory_space<vmem>>, vector<1x16x128xf32>
    %175 = vector.shape_cast %174 : vector<1x16x128xf32> to vector<16x128xf32>
    %176 = vector.shape_cast %172 : vector<16x128xf32> to vector<1x16x128xf32>
    tpu.vector_store %arg4[%173, %c0_112, %c0_113], %176 {strides = array<i32>} : memref<32x16x128xf32, #tpu.memory_space<vmem>>, vector<1x16x128xf32>,
    %c21_i32 = arith.constant 21 : i32
    %177 = arith.index_cast %c21_i32 : i32 to index
    %c0_114 = arith.constant 0 : index
    %c0_115 = arith.constant 0 : index
    %178 = vector.load %arg5[%177, %c0_114, %c0_115] : memref<32x16x128xbf16, #tpu.memory_space<vmem>>, vector<1x16x128xbf16>
    %179 = vector.shape_cast %178 : vector<1x16x128xbf16> to vector<16x128xbf16>
    %cst_116 = arith.constant dense<0.000000e+00> : vector<16x128xf32>
    %180 = tpu.matmul %8, %179, %cst_116 {dimension_numbers = #tpu.dot_dimension_numbers<[1], [0], [0], [1], [0, 0, 1, 1], [], []>} : vector<16x16xbf16>, vector<16x128xbf16>, vector<16x128xf32> -> vector<16x128xf32>
    %181 = arith.index_cast %c21_i32 : i32 to index
    %c0_117 = arith.constant 0 : index
    %c0_118 = arith.constant 0 : index
    %182 = vector.load %arg4[%181, %c0_117, %c0_118] : memref<32x16x128xf32, #tpu.memory_space<vmem>>, vector<1x16x128xf32>
    %183 = vector.shape_cast %182 : vector<1x16x128xf32> to vector<16x128xf32>
    %184 = vector.shape_cast %180 : vector<16x128xf32> to vector<1x16x128xf32>
    tpu.vector_store %arg4[%181, %c0_117, %c0_118], %184 {strides = array<i32>} : memref<32x16x128xf32, #tpu.memory_space<vmem>>, vector<1x16x128xf32>,
    %c22_i32 = arith.constant 22 : i32
    %185 = arith.index_cast %c22_i32 : i32 to index
    %c0_119 = arith.constant 0 : index
    %c0_120 = arith.constant 0 : index
    %186 = vector.load %arg5[%185, %c0_119, %c0_120] : memref<32x16x128xbf16, #tpu.memory_space<vmem>>, vector<1x16x128xbf16>
    %187 = vector.shape_cast %186 : vector<1x16x128xbf16> to vector<16x128xbf16>
    %cst_121 = arith.constant dense<0.000000e+00> : vector<16x128xf32>
    %188 = tpu.matmul %8, %187, %cst_121 {dimension_numbers = #tpu.dot_dimension_numbers<[1], [0], [0], [1], [0, 0, 1, 1], [], []>} : vector<16x16xbf16>, vector<16x128xbf16>, vector<16x128xf32> -> vector<16x128xf32>
    %189 = arith.index_cast %c22_i32 : i32 to index
    %c0_122 = arith.constant 0 : index
    %c0_123 = arith.constant 0 : index
    %190 = vector.load %arg4[%189, %c0_122, %c0_123] : memref<32x16x128xf32, #tpu.memory_space<vmem>>, vector<1x16x128xf32>
    %191 = vector.shape_cast %190 : vector<1x16x128xf32> to vector<16x128xf32>
    %192 = vector.shape_cast %188 : vector<16x128xf32> to vector<1x16x128xf32>
    tpu.vector_store %arg4[%189, %c0_122, %c0_123], %192 {strides = array<i32>} : memref<32x16x128xf32, #tpu.memory_space<vmem>>, vector<1x16x128xf32>,
    %c23_i32 = arith.constant 23 : i32
    %193 = arith.index_cast %c23_i32 : i32 to index
    %c0_124 = arith.constant 0 : index
    %c0_125 = arith.constant 0 : index
    %194 = vector.load %arg5[%193, %c0_124, %c0_125] : memref<32x16x128xbf16, #tpu.memory_space<vmem>>, vector<1x16x128xbf16>
    %195 = vector.shape_cast %194 : vector<1x16x128xbf16> to vector<16x128xbf16>
    %cst_126 = arith.constant dense<0.000000e+00> : vector<16x128xf32>
    %196 = tpu.matmul %8, %195, %cst_126 {dimension_numbers = #tpu.dot_dimension_numbers<[1], [0], [0], [1], [0, 0, 1, 1], [], []>} : vector<16x16xbf16>, vector<16x128xbf16>, vector<16x128xf32> -> vector<16x128xf32>
    %197 = arith.index_cast %c23_i32 : i32 to index
    %c0_127 = arith.constant 0 : index
    %c0_128 = arith.constant 0 : index
    %198 = vector.load %arg4[%197, %c0_127, %c0_128] : memref<32x16x128xf32, #tpu.memory_space<vmem>>, vector<1x16x128xf32>
    %199 = vector.shape_cast %198 : vector<1x16x128xf32> to vector<16x128xf32>
    %200 = vector.shape_cast %196 : vector<16x128xf32> to vector<1x16x128xf32>
    tpu.vector_store %arg4[%197, %c0_127, %c0_128], %200 {strides = array<i32>} : memref<32x16x128xf32, #tpu.memory_space<vmem>>, vector<1x16x128xf32>,
    %c24_i32 = arith.constant 24 : i32
    %201 = arith.index_cast %c24_i32 : i32 to index
    %c0_129 = arith.constant 0 : index
    %c0_130 = arith.constant 0 : index
    %202 = vector.load %arg5[%201, %c0_129, %c0_130] : memref<32x16x128xbf16, #tpu.memory_space<vmem>>, vector<1x16x128xbf16>
    %203 = vector.shape_cast %202 : vector<1x16x128xbf16> to vector<16x128xbf16>
    %cst_131 = arith.constant dense<0.000000e+00> : vector<16x128xf32>
    %204 = tpu.matmul %8, %203, %cst_131 {dimension_numbers = #tpu.dot_dimension_numbers<[1], [0], [0], [1], [0, 0, 1, 1], [], []>} : vector<16x16xbf16>, vector<16x128xbf16>, vector<16x128xf32> -> vector<16x128xf32>
    %205 = arith.index_cast %c24_i32 : i32 to index
    %c0_132 = arith.constant 0 : index
    %c0_133 = arith.constant 0 : index
    %206 = vector.load %arg4[%205, %c0_132, %c0_133] : memref<32x16x128xf32, #tpu.memory_space<vmem>>, vector<1x16x128xf32>
    %207 = vector.shape_cast %206 : vector<1x16x128xf32> to vector<16x128xf32>
    %208 = vector.shape_cast %204 : vector<16x128xf32> to vector<1x16x128xf32>
    tpu.vector_store %arg4[%205, %c0_132, %c0_133], %208 {strides = array<i32>} : memref<32x16x128xf32, #tpu.memory_space<vmem>>, vector<1x16x128xf32>,
    %c25_i32 = arith.constant 25 : i32
    %209 = arith.index_cast %c25_i32 : i32 to index
    %c0_134 = arith.constant 0 : index
    %c0_135 = arith.constant 0 : index
    %210 = vector.load %arg5[%209, %c0_134, %c0_135] : memref<32x16x128xbf16, #tpu.memory_space<vmem>>, vector<1x16x128xbf16>
    %211 = vector.shape_cast %210 : vector<1x16x128xbf16> to vector<16x128xbf16>
    %cst_136 = arith.constant dense<0.000000e+00> : vector<16x128xf32>
    %212 = tpu.matmul %8, %211, %cst_136 {dimension_numbers = #tpu.dot_dimension_numbers<[1], [0], [0], [1], [0, 0, 1, 1], [], []>} : vector<16x16xbf16>, vector<16x128xbf16>, vector<16x128xf32> -> vector<16x128xf32>
    %213 = arith.index_cast %c25_i32 : i32 to index
    %c0_137 = arith.constant 0 : index
    %c0_138 = arith.constant 0 : index
    %214 = vector.load %arg4[%213, %c0_137, %c0_138] : memref<32x16x128xf32, #tpu.memory_space<vmem>>, vector<1x16x128xf32>
    %215 = vector.shape_cast %214 : vector<1x16x128xf32> to vector<16x128xf32>
    %216 = vector.shape_cast %212 : vector<16x128xf32> to vector<1x16x128xf32>
    tpu.vector_store %arg4[%213, %c0_137, %c0_138], %216 {strides = array<i32>} : memref<32x16x128xf32, #tpu.memory_space<vmem>>, vector<1x16x128xf32>,
    %c26_i32 = arith.constant 26 : i32
    %217 = arith.index_cast %c26_i32 : i32 to index
    %c0_139 = arith.constant 0 : index
    %c0_140 = arith.constant 0 : index
    %218 = vector.load %arg5[%217, %c0_139, %c0_140] : memref<32x16x128xbf16, #tpu.memory_space<vmem>>, vector<1x16x128xbf16>
    %219 = vector.shape_cast %218 : vector<1x16x128xbf16> to vector<16x128xbf16>
    %cst_141 = arith.constant dense<0.000000e+00> : vector<16x128xf32>
    %220 = tpu.matmul %8, %219, %cst_141 {dimension_numbers = #tpu.dot_dimension_numbers<[1], [0], [0], [1], [0, 0, 1, 1], [], []>} : vector<16x16xbf16>, vector<16x128xbf16>, vector<16x128xf32> -> vector<16x128xf32>
    %221 = arith.index_cast %c26_i32 : i32 to index
    %c0_142 = arith.constant 0 : index
    %c0_143 = arith.constant 0 : index
    %222 = vector.load %arg4[%221, %c0_142, %c0_143] : memref<32x16x128xf32, #tpu.memory_space<vmem>>, vector<1x16x128xf32>
    %223 = vector.shape_cast %222 : vector<1x16x128xf32> to vector<16x128xf32>
    %224 = vector.shape_cast %220 : vector<16x128xf32> to vector<1x16x128xf32>
    tpu.vector_store %arg4[%221, %c0_142, %c0_143], %224 {strides = array<i32>} : memref<32x16x128xf32, #tpu.memory_space<vmem>>, vector<1x16x128xf32>,
    %c27_i32 = arith.constant 27 : i32
    %225 = arith.index_cast %c27_i32 : i32 to index
    %c0_144 = arith.constant 0 : index
    %c0_145 = arith.constant 0 : index
    %226 = vector.load %arg5[%225, %c0_144, %c0_145] : memref<32x16x128xbf16, #tpu.memory_space<vmem>>, vector<1x16x128xbf16>
    %227 = vector.shape_cast %226 : vector<1x16x128xbf16> to vector<16x128xbf16>
    %cst_146 = arith.constant dense<0.000000e+00> : vector<16x128xf32>
    %228 = tpu.matmul %8, %227, %cst_146 {dimension_numbers = #tpu.dot_dimension_numbers<[1], [0], [0], [1], [0, 0, 1, 1], [], []>} : vector<16x16xbf16>, vector<16x128xbf16>, vector<16x128xf32> -> vector<16x128xf32>
    %229 = arith.index_cast %c27_i32 : i32 to index
    %c0_147 = arith.constant 0 : index
    %c0_148 = arith.constant 0 : index
    %230 = vector.load %arg4[%229, %c0_147, %c0_148] : memref<32x16x128xf32, #tpu.memory_space<vmem>>, vector<1x16x128xf32>
    %231 = vector.shape_cast %230 : vector<1x16x128xf32> to vector<16x128xf32>
    %232 = vector.shape_cast %228 : vector<16x128xf32> to vector<1x16x128xf32>
    tpu.vector_store %arg4[%229, %c0_147, %c0_148], %232 {strides = array<i32>} : memref<32x16x128xf32, #tpu.memory_space<vmem>>, vector<1x16x128xf32>,
    %c28_i32 = arith.constant 28 : i32
    %233 = arith.index_cast %c28_i32 : i32 to index
    %c0_149 = arith.constant 0 : index
    %c0_150 = arith.constant 0 : index
    %234 = vector.load %arg5[%233, %c0_149, %c0_150] : memref<32x16x128xbf16, #tpu.memory_space<vmem>>, vector<1x16x128xbf16>
    %235 = vector.shape_cast %234 : vector<1x16x128xbf16> to vector<16x128xbf16>
    %cst_151 = arith.constant dense<0.000000e+00> : vector<16x128xf32>
    %236 = tpu.matmul %8, %235, %cst_151 {dimension_numbers = #tpu.dot_dimension_numbers<[1], [0], [0], [1], [0, 0, 1, 1], [], []>} : vector<16x16xbf16>, vector<16x128xbf16>, vector<16x128xf32> -> vector<16x128xf32>
    %237 = arith.index_cast %c28_i32 : i32 to index
    %c0_152 = arith.constant 0 : index
    %c0_153 = arith.constant 0 : index
    %238 = vector.load %arg4[%237, %c0_152, %c0_153] : memref<32x16x128xf32, #tpu.memory_space<vmem>>, vector<1x16x128xf32>
    %239 = vector.shape_cast %238 : vector<1x16x128xf32> to vector<16x128xf32>
    %240 = vector.shape_cast %236 : vector<16x128xf32> to vector<1x16x128xf32>
    tpu.vector_store %arg4[%237, %c0_152, %c0_153], %240 {strides = array<i32>} : memref<32x16x128xf32, #tpu.memory_space<vmem>>, vector<1x16x128xf32>,
    %c29_i32 = arith.constant 29 : i32
    %241 = arith.index_cast %c29_i32 : i32 to index
    %c0_154 = arith.constant 0 : index
    %c0_155 = arith.constant 0 : index
    %242 = vector.load %arg5[%241, %c0_154, %c0_155] : memref<32x16x128xbf16, #tpu.memory_space<vmem>>, vector<1x16x128xbf16>
    %243 = vector.shape_cast %242 : vector<1x16x128xbf16> to vector<16x128xbf16>
    %cst_156 = arith.constant dense<0.000000e+00> : vector<16x128xf32>
    %244 = tpu.matmul %8, %243, %cst_156 {dimension_numbers = #tpu.dot_dimension_numbers<[1], [0], [0], [1], [0, 0, 1, 1], [], []>} : vector<16x16xbf16>, vector<16x128xbf16>, vector<16x128xf32> -> vector<16x128xf32>
    %245 = arith.index_cast %c29_i32 : i32 to index
    %c0_157 = arith.constant 0 : index
    %c0_158 = arith.constant 0 : index
    %246 = vector.load %arg4[%245, %c0_157, %c0_158] : memref<32x16x128xf32, #tpu.memory_space<vmem>>, vector<1x16x128xf32>
    %247 = vector.shape_cast %246 : vector<1x16x128xf32> to vector<16x128xf32>
    %248 = vector.shape_cast %244 : vector<16x128xf32> to vector<1x16x128xf32>
    tpu.vector_store %arg4[%245, %c0_157, %c0_158], %248 {strides = array<i32>} : memref<32x16x128xf32, #tpu.memory_space<vmem>>, vector<1x16x128xf32>,
    %c30_i32 = arith.constant 30 : i32
    %249 = arith.index_cast %c30_i32 : i32 to index
    %c0_159 = arith.constant 0 : index
    %c0_160 = arith.constant 0 : index
    %250 = vector.load %arg5[%249, %c0_159, %c0_160] : memref<32x16x128xbf16, #tpu.memory_space<vmem>>, vector<1x16x128xbf16>
    %251 = vector.shape_cast %250 : vector<1x16x128xbf16> to vector<16x128xbf16>
    %cst_161 = arith.constant dense<0.000000e+00> : vector<16x128xf32>
    %252 = tpu.matmul %8, %251, %cst_161 {dimension_numbers = #tpu.dot_dimension_numbers<[1], [0], [0], [1], [0, 0, 1, 1], [], []>} : vector<16x16xbf16>, vector<16x128xbf16>, vector<16x128xf32> -> vector<16x128xf32>
    %253 = arith.index_cast %c30_i32 : i32 to index
    %c0_162 = arith.constant 0 : index
    %c0_163 = arith.constant 0 : index
    %254 = vector.load %arg4[%253, %c0_162, %c0_163] : memref<32x16x128xf32, #tpu.memory_space<vmem>>, vector<1x16x128xf32>
    %255 = vector.shape_cast %254 : vector<1x16x128xf32> to vector<16x128xf32>
    %256 = vector.shape_cast %252 : vector<16x128xf32> to vector<1x16x128xf32>
    tpu.vector_store %arg4[%253, %c0_162, %c0_163], %256 {strides = array<i32>} : memref<32x16x128xf32, #tpu.memory_space<vmem>>, vector<1x16x128xf32>,
    %c31_i32 = arith.constant 31 : i32
    %257 = arith.index_cast %c31_i32 : i32 to index
    %c0_164 = arith.constant 0 : index
    %c0_165 = arith.constant 0 : index
    %258 = vector.load %arg5[%257, %c0_164, %c0_165] : memref<32x16x128xbf16, #tpu.memory_space<vmem>>, vector<1x16x128xbf16>
    %259 = vector.shape_cast %258 : vector<1x16x128xbf16> to vector<16x128xbf16>
    %cst_166 = arith.constant dense<0.000000e+00> : vector<16x128xf32>
    %260 = tpu.matmul %8, %259, %cst_166 {dimension_numbers = #tpu.dot_dimension_numbers<[1], [0], [0], [1], [0, 0, 1, 1], [], []>} : vector<16x16xbf16>, vector<16x128xbf16>, vector<16x128xf32> -> vector<16x128xf32>
    %261 = arith.index_cast %c31_i32 : i32 to index
    %c0_167 = arith.constant 0 : index
    %c0_168 = arith.constant 0 : index
    %262 = vector.load %arg4[%261, %c0_167, %c0_168] : memref<32x16x128xf32, #tpu.memory_space<vmem>>, vector<1x16x128xf32>
    %263 = vector.shape_cast %262 : vector<1x16x128xf32> to vector<16x128xf32>
    %264 = vector.shape_cast %260 : vector<16x128xf32> to vector<1x16x128xf32>
    tpu.vector_store %arg4[%261, %c0_167, %c0_168], %264 {strides = array<i32>} : memref<32x16x128xf32, #tpu.memory_space<vmem>>, vector<1x16x128xf32>,
    %c32_i32 = arith.constant 32 : i32
    return
  }
  func.func @transform_0(%arg0: i32) -> (i32, i32, i32) {
    %c0_i32 = arith.constant 0 : i32
    %c0_i32_0 = arith.constant 0 : i32
    %c0_i32_1 = arith.constant 0 : i32
    return %arg0, %c0_i32, %c0_i32_0 : i32, i32, i32
  }
  func.func @transform_1(%arg0: i32) -> (i32, i32) {
    %c0_i32 = arith.constant 0 : i32
    %c0_i32_0 = arith.constant 0 : i32
    %c0_i32_1 = arith.constant 0 : i32
    return %c0_i32, %c0_i32_0 : i32, i32
  }
  func.func @transform_2(%arg0: i32) -> (i32, i32) {
    %c0_i32 = arith.constant 0 : i32
    %c0_i32_0 = arith.constant 0 : i32
    %c0_i32_1 = arith.constant 0 : i32
    return %c0_i32, %c0_i32_0 : i32, i32
  }
  func.func @transform_3(%arg0: i32) -> (i32, i32, i32) {
    %c0_i32 = arith.constant 0 : i32
    %c0_i32_0 = arith.constant 0 : i32
    %c0_i32_1 = arith.constant 0 : i32
    return %arg0, %c0_i32, %c0_i32_0 : i32, i32, i32
  }
}

</mosaic_0001>

<llo_original>
// kernel: run.1
$region0: #{run.1}
  #allocation0 [shape = 'u32[]', space=smem, size = 0x4, offset = 0x4, fixed_abs, tag = 'smem constant byte address 0x4 - core index']
  #allocation1 [shape = 'u32[144,128]{1,0:T(1,128)}', space=vmem, size = 0x12000, scoped, tag = 'internal scratch']
  #allocation2 [shape = 'bf16[32,16,128]{2,1,0:T(8,128)(2,1)}', space=vmem, size = 0x20000, scoped, tag = 'scratch operand']
  %s0 = inlined_call_operand.hbm [shape: f32[32,16,20], index: 0, kind: input, shape index: {}]
  %s1 = inlined_call_operand.hbm [shape: bf16[16,16], index: 1, kind: input, shape index: {}]
  %s2 = inlined_call_operand.hbm [shape: bf16[20,128], index: 2, kind: input, shape index: {}]
  %s3 = inlined_call_operand.vmem [shape: f32[32,16,128], index: 3, kind: output, shape index: {}]
  %s4 = sld [smem:[#allocation0]]
  $region34: #{run.1} parent=0
    _
  %s6 = ssub.s32 1, %s4
  %s7 = scalar_select 0, %s6, %s4
  $region1: #{run.1} parent=0
    #allocation3 [shape = 'u8[262144]{0}', space=vmem, size = 0x40000, scoped, tag = 'input window, operand 0, single buffered']
    #allocation4 [shape = 's32[1]{0}', space=sflag, size = 0x4, scoped, tag = 'scoped memory for run.1']
    #allocation5 [shape = 'u8[4096]{0}', space=vmem, size = 0x1000, scoped, tag = 'input window, operand 1, single buffered']
    #allocation6 [shape = 's32[1]{0}', space=sflag, size = 0x4, scoped, tag = 'scoped memory for run.1']
    #allocation7 [shape = 'u8[6144]{0}', space=vmem, size = 0x1800, scoped, tag = 'input window, operand 2, single buffered']
    %8 = vsyncpa [#allocation4], 0
    %9 = vsyncpa [#allocation6], 0
    // Predicated region
    $region2: #{run.1} parent=1 // pred_check
      _
    $region3: #{run.1} parent=1 // pred_check_branch
      %11 = sbr.rel (0) target = $region5
    $region4: #{run.1} parent=1 // pred_region
      %s13 = ssub.s32 8192, 8192
      %14 = vsyncadd [#allocation4], %s13
      %s15 = sshll.u32 [#allocation3], 4
      %s16 = int_to_ptr.vmem [resolvable:$true] %s15
      %21 = dma.hbm_to_vmem [thread:$0]  %s0, 8192, %s16, [#allocation4], 128, 128, 8
    $region5: #{run.1} parent=1 // pred_fallthru
      _
    // Predicated region
    $region6: #{run.1} parent=1 // pred_check
      _
    $region7: #{run.1} parent=1 // pred_check_branch
      %23 = sbr.rel (0) target = $region9
    $region8: #{run.1} parent=1 // pred_region
      %s25 = ssub.s32 128, 128
      %26 = vsyncadd [#allocation6], %s25
      %s27 = sshll.u32 [#allocation5], 4
      %s28 = int_to_ptr.vmem [resolvable:$true] %s27
      %33 = dma.hbm_to_vmem [thread:$0]  %s1, 128, %s28, [#allocation6], 64, 64, 4
    $region9: #{run.1} parent=1 // pred_fallthru
      _
    // Predicated region
    $region10: #{run.1} parent=1 // pred_check
      _
    $region11: #{run.1} parent=1 // pred_check_branch
      %35 = sbr.rel (0) target = $region13
    $region12: #{run.1} parent=1 // pred_region
      %s37 = ssub.s32 192, 192
      %38 = vsyncadd [#allocation6], %s37
      %s39 = sshll.u32 [#allocation7], 4
      %s40 = int_to_ptr.vmem [resolvable:$true] %s39
      %45 = dma.hbm_to_vmem [thread:$0]  %s2, 192, %s40, [#allocation6], 64, 64, 4
    $region13: #{run.1} parent=1 // pred_fallthru
      _
    // Predicated region
    $region14: #{run.1} parent=1 // pred_check
      _
    $region15: #{run.1} parent=1 // pred_check_branch
      %47 = sbr.rel (0) target = $region17
    $region16: #{run.1} parent=1 // pred_region
      %48 = dma.done [#allocation4], 8192
    $region17: #{run.1} parent=1 // pred_fallthru
      _
    // Predicated region
    $region18: #{run.1} parent=1 // pred_check
      _
    $region19: #{run.1} parent=1 // pred_check_branch
      %50 = sbr.rel (0) target = $region21
    $region20: #{run.1} parent=1 // pred_region
      %51 = dma.done [#allocation6], 128
    $region21: #{run.1} parent=1 // pred_fallthru
      _
    // Predicated region
    $region22: #{run.1} parent=1 // pred_check
      _
    $region23: #{run.1} parent=1 // pred_check_branch
      %53 = sbr.rel (0) target = $region25
    $region24: #{run.1} parent=1 // pred_region
      %54 = dma.done [#allocation6], 192
    $region25: #{run.1} parent=1 // pred_fallthru
      _
    %v56 = vld [vmem:[#allocation3] sm:$0xff]
    %v57 = vld [vmem:[#allocation3 + $0x8] sm:$0xff]
    %v58 = vld [vmem:[#allocation3 + $0x10] sm:$0xff]
    %v59 = vld [vmem:[#allocation3 + $0x18] sm:$0xff]
    %v60 = vld [vmem:[#allocation3 + $0x20] sm:$0xff]
    %v61 = vld [vmem:[#allocation3 + $0x28] sm:$0xff]
    %v62 = vld [vmem:[#allocation3 + $0x30] sm:$0xff]
    %v63 = vld [vmem:[#allocation3 + $0x38] sm:$0xff]
    %v64 = vld [vmem:[#allocation3 + $0x40] sm:$0xff]
    %v65 = vld [vmem:[#allocation3 + $0x48] sm:$0xff]
    %v66 = vld [vmem:[#allocation3 + $0x50] sm:$0xff]
    %v67 = vld [vmem:[#allocation3 + $0x58] sm:$0xff]
    %v68 = vld [vmem:[#allocation3 + $0x60] sm:$0xff]
    %v69 = vld [vmem:[#allocation3 + $0x68] sm:$0xff]
    %v70 = vld [vmem:[#allocation3 + $0x70] sm:$0xff]
    %v71 = vld [vmem:[#allocation3 + $0x78] sm:$0xff]
    %v72 = vld [vmem:[#allocation3 + $0x80] sm:$0xff]
    %v73 = vld [vmem:[#allocation3 + $0x88] sm:$0xff]
    %v74 = vld [vmem:[#allocation3 + $0x90] sm:$0xff]
    %v75 = vld [vmem:[#allocation3 + $0x98] sm:$0xff]
    %v76 = vld [vmem:[#allocation3 + $0xa0] sm:$0xff]
    %v77 = vld [vmem:[#allocation3 + $0xa8] sm:$0xff]
    %v78 = vld [vmem:[#allocation3 + $0xb0] sm:$0xff]
    %v79 = vld [vmem:[#allocation3 + $0xb8] sm:$0xff]
    %v80 = vld [vmem:[#allocation3 + $0xc0] sm:$0xff]
    %v81 = vld [vmem:[#allocation3 + $0xc8] sm:$0xff]
    %v82 = vld [vmem:[#allocation3 + $0xd0] sm:$0xff]
    %v83 = vld [vmem:[#allocation3 + $0xd8] sm:$0xff]
    %v84 = vld [vmem:[#allocation3 + $0xe0] sm:$0xff]
    %v85 = vld [vmem:[#allocation3 + $0xe8] sm:$0xff]
    %v86 = vld [vmem:[#allocation3 + $0xf0] sm:$0xff]
    %v87 = vld [vmem:[#allocation3 + $0xf8] sm:$0xff]
    %v88 = vld [vmem:[#allocation3 + $0x100] sm:$0xff]
    %v89 = vld [vmem:[#allocation3 + $0x108] sm:$0xff]
    %v90 = vld [vmem:[#allocation3 + $0x110] sm:$0xff]
    %v91 = vld [vmem:[#allocation3 + $0x118] sm:$0xff]
    %v92 = vld [vmem:[#allocation3 + $0x120] sm:$0xff]
    %v93 = vld [vmem:[#allocation3 + $0x128] sm:$0xff]
    %v94 = vld [vmem:[#allocation3 + $0x130] sm:$0xff]
    %v95 = vld [vmem:[#allocation3 + $0x138] sm:$0xff]
    %v96 = vld [vmem:[#allocation3 + $0x140] sm:$0xff]
    %v97 = vld [vmem:[#allocation3 + $0x148] sm:$0xff]
    %v98 = vld [vmem:[#allocation3 + $0x150] sm:$0xff]
    %v99 = vld [vmem:[#allocation3 + $0x158] sm:$0xff]
    %v100 = vld [vmem:[#allocation3 + $0x160] sm:$0xff]
    %v101 = vld [vmem:[#allocation3 + $0x168] sm:$0xff]
    %v102 = vld [vmem:[#allocation3 + $0x170] sm:$0xff]
    %v103 = vld [vmem:[#allocation3 + $0x178] sm:$0xff]
    %v104 = vld [vmem:[#allocation3 + $0x180] sm:$0xff]
    %v105 = vld [vmem:[#allocation3 + $0x188] sm:$0xff]
    %v106 = vld [vmem:[#allocation3 + $0x190] sm:$0xff]
    %v107 = vld [vmem:[#allocation3 + $0x198] sm:$0xff]
    %v108 = vld [vmem:[#allocation3 + $0x1a0] sm:$0xff]
    %v109 = vld [vmem:[#allocation3 + $0x1a8] sm:$0xff]
    %v110 = vld [vmem:[#allocation3 + $0x1b0] sm:$0xff]
    %v111 = vld [vmem:[#allocation3 + $0x1b8] sm:$0xff]
    %v112 = vld [vmem:[#allocation3 + $0x1c0] sm:$0xff]
    %v113 = vld [vmem:[#allocation3 + $0x1c8] sm:$0xff]
    %v114 = vld [vmem:[#allocation3 + $0x1d0] sm:$0xff]
    %v115 = vld [vmem:[#allocation3 + $0x1d8] sm:$0xff]
    %v116 = vld [vmem:[#allocation3 + $0x1e0] sm:$0xff]
    %v117 = vld [vmem:[#allocation3 + $0x1e8] sm:$0xff]
    %v118 = vld [vmem:[#allocation3 + $0x1f0] sm:$0xff]
    %v119 = vld [vmem:[#allocation3 + $0x1f8] sm:$0xff]
    %v120 = vpack.c.bf16 %v57, %v56
    %v121 = vpack.c.bf16 %v59, %v58
    %v122 = vpack.c.bf16 %v61, %v60
    %v123 = vpack.c.bf16 %v63, %v62
    %v124 = vpack.c.bf16 %v65, %v64
    %v125 = vpack.c.bf16 %v67, %v66
    %v126 = vpack.c.bf16 %v69, %v68
    %v127 = vpack.c.bf16 %v71, %v70
    %v128 = vpack.c.bf16 %v73, %v72
    %v129 = vpack.c.bf16 %v75, %v74
    %v130 = vpack.c.bf16 %v77, %v76
    %v131 = vpack.c.bf16 %v79, %v78
    %v132 = vpack.c.bf16 %v81, %v80
    %v133 = vpack.c.bf16 %v83, %v82
    %v134 = vpack.c.bf16 %v85, %v84
    %v135 = vpack.c.bf16 %v87, %v86
    %v136 = vpack.c.bf16 %v89, %v88
    %v137 = vpack.c.bf16 %v91, %v90
    %v138 = vpack.c.bf16 %v93, %v92
    %v139 = vpack.c.bf16 %v95, %v94
    %v140 = vpack.c.bf16 %v97, %v96
    %v141 = vpack.c.bf16 %v99, %v98
    %v142 = vpack.c.bf16 %v101, %v100
    %v143 = vpack.c.bf16 %v103, %v102
    %v144 = vpack.c.bf16 %v105, %v104
    %v145 = vpack.c.bf16 %v107, %v106
    %v146 = vpack.c.bf16 %v109, %v108
    %v147 = vpack.c.bf16 %v111, %v110
    %v148 = vpack.c.bf16 %v113, %v112
    %v149 = vpack.c.bf16 %v115, %v114
    %v150 = vpack.c.bf16 %v117, %v116
    %v151 = vpack.c.bf16 %v119, %v118
    %v152 = vld [vmem:[#allocation7] sm:$0xf]
    %v153 = vld [vmem:[#allocation7 + $0x4] sm:$0xf]
    %v154 = vld [vmem:[#allocation7 + $0x8] sm:$0x3]
    %v158 = vunpack.c.l.b16 %v152
    %v159 = vunpack.c.l.b16 %v153
    %v160 = vunpack.c.l.b16 %v154
    %v161 = vpack.c.b16 %v159, %v158
    %v162 = vpack.c.b16 %v160, %v160
    %vm164 = vcmask 162816
    %v166 = vsel %vm164, %v120, 0
    %v169 = vsel %vm164, %v121, 0
    %v172 = vsel %vm164, %v122, 0
    %v175 = vsel %vm164, %v123, 0
    %v178 = vsel %vm164, %v124, 0
    %v181 = vsel %vm164, %v125, 0
    %v184 = vsel %vm164, %v126, 0
    %v187 = vsel %vm164, %v127, 0
    %v190 = vsel %vm164, %v128, 0
    %v193 = vsel %vm164, %v129, 0
    %v196 = vsel %vm164, %v130, 0
    %v199 = vsel %vm164, %v131, 0
    %v202 = vsel %vm164, %v132, 0
    %v205 = vsel %vm164, %v133, 0
    %v208 = vsel %vm164, %v134, 0
    %v211 = vsel %vm164, %v135, 0
    %v214 = vsel %vm164, %v136, 0
    %v217 = vsel %vm164, %v137, 0
    %v220 = vsel %vm164, %v138, 0
    %v223 = vsel %vm164, %v139, 0
    %v226 = vsel %vm164, %v140, 0
    %v229 = vsel %vm164, %v141, 0
    %v232 = vsel %vm164, %v142, 0
    %v235 = vsel %vm164, %v143, 0
    %v238 = vsel %vm164, %v144, 0
    %v241 = vsel %vm164, %v145, 0
    %v244 = vsel %vm164, %v146, 0
    %v247 = vsel %vm164, %v147, 0
    %v250 = vsel %vm164, %v148, 0
    %v253 = vsel %vm164, %v149, 0
    %v256 = vsel %vm164, %v150, 0
    %v259 = vsel %vm164, %v151, 0
    %vm261 = vcmask 1041408
    %v263 = vsel %vm261, %v162, 0
    %265 = vmatprep.subr.bf16.mxu0 0
    %266 = vmatpush1.bf16.msra.mxu0 0
    %267 = vmatprep.subr.bf16.mxu0 0
    %268 = vmatpush1.bf16.msra.mxu0 0
    %269 = vmatprep.subr.bf16.mxu0 0
    %270 = vmatpush1.bf16.msra.mxu0 0
    %271 = vmatprep.subr.bf16.mxu0 0
    %272 = vmatpush1.bf16.msra.mxu0 0
    %273 = vmatprep.subr.bf16.mxu0 0
    %274 = vmatpush1.bf16.msra.mxu0 0
    %275 = vmatprep.subr.bf16.mxu0 0
    %276 = vmatpush1.bf16.msra.mxu0 0
    %277 = vmatprep.subr.bf16.mxu0 0
    %278 = vmatpush1.bf16.msra.mxu0 %v263
    %279 = vmatprep.subr.bf16.mxu0 0
    %280 = vmatpush1.bf16.msra.mxu0 %v161
    %281 = vmatprep.subr.bf16.mxu0 0
    %282 = vmatpush2.bf16.msra.mxu0 0
    %283 = vmatprep.subr.bf16.mxu0 0
    %284 = vmatpush2.bf16.msra.mxu0 0
    %285 = vmatprep.subr.bf16.mxu0 0
    %286 = vmatpush2.bf16.msra.mxu0 0
    %287 = vmatprep.subr.bf16.mxu0 0
    %288 = vmatpush2.bf16.msra.mxu0 0
    %289 = vmatprep.subr.bf16.mxu0 0
    %290 = vmatpush2.bf16.msra.mxu0 0
    %291 = vmatprep.subr.bf16.mxu0 0
    %292 = vmatpush2.bf16.msra.mxu0 0
    %293 = vmatprep.subr.bf16.mxu0 0
    %294 = vmatpush2.bf16.msra.mxu0 0
    %295 = vmatprep.subr.bf16.mxu0 0
    %296 = vmatpush2.bf16.msra.mxu0 0
    %297 = vmatprep.mubr.bf16.mxu0 0
    %298 = vmatmul.mubr.bf16.gmra.mxu0 %v166
    %v299 = vpop.f32.mrf.mxu0
    %v300 = vadd.f32 0.0, %v299
    %v301 = vpop.f32.mrf.mxu0
    %v302 = vpop.f32.mrf.mxu0
    %v303 = vadd.f32 0.0, %v302
    %v304 = vpop.f32.mrf.mxu0
    %305 = vmatprep.mubr.bf16.mxu0 0
    %306 = vmatmul.mubr.bf16.gmra.mxu0 %v169
    %v307 = vpop.f32.mrf.mxu0
    %v308 = vadd.f32 0.0, %v307
    %v309 = vpop.f32.mrf.mxu0
    %v310 = vpop.f32.mrf.mxu0
    %v311 = vadd.f32 0.0, %v310
    %v312 = vpop.f32.mrf.mxu0
    %313 = vmatprep.mubr.bf16.mxu0 0
    %314 = vmatmul.mubr.bf16.gmra.mxu0 %v172
    %v315 = vpop.f32.mrf.mxu0
    %v316 = vadd.f32 0.0, %v315
    %v317 = vpop.f32.mrf.mxu0
    %v318 = vpop.f32.mrf.mxu0
    %v319 = vadd.f32 0.0, %v318
    %v320 = vpop.f32.mrf.mxu0
    %321 = vmatprep.mubr.bf16.mxu0 0
    %322 = vmatmul.mubr.bf16.gmra.mxu0 %v175
    %v323 = vpop.f32.mrf.mxu0
    %v324 = vadd.f32 0.0, %v323
    %v325 = vpop.f32.mrf.mxu0
    %v326 = vpop.f32.mrf.mxu0
    %v327 = vadd.f32 0.0, %v326
    %v328 = vpop.f32.mrf.mxu0
    %329 = vmatprep.mubr.bf16.mxu0 0
    %330 = vmatmul.mubr.bf16.gmra.mxu0 %v178
    %v331 = vpop.f32.mrf.mxu0
    %v332 = vadd.f32 0.0, %v331
    %v333 = vpop.f32.mrf.mxu0
    %v334 = vpop.f32.mrf.mxu0
    %v335 = vadd.f32 0.0, %v334
    %v336 = vpop.f32.mrf.mxu0
    %337 = vmatprep.mubr.bf16.mxu0 0
    %338 = vmatmul.mubr.bf16.gmra.mxu0 %v181
    %v339 = vpop.f32.mrf.mxu0
    %v340 = vadd.f32 0.0, %v339
    %v341 = vpop.f32.mrf.mxu0
    %v342 = vpop.f32.mrf.mxu0
    %v343 = vadd.f32 0.0, %v342
    %v344 = vpop.f32.mrf.mxu0
    %345 = vmatprep.mubr.bf16.mxu0 0
    %346 = vmatmul.mubr.bf16.gmra.mxu0 %v184
    %v347 = vpop.f32.mrf.mxu0
    %v348 = vadd.f32 0.0, %v347
    %v349 = vpop.f32.mrf.mxu0
    %v350 = vpop.f32.mrf.mxu0
    %v351 = vadd.f32 0.0, %v350
    %v352 = vpop.f32.mrf.mxu0
    %353 = vmatprep.mubr.bf16.mxu0 0
    %354 = vmatmul.mubr.bf16.gmra.mxu0 %v187
    %v355 = vpop.f32.mrf.mxu0
    %v356 = vadd.f32 0.0, %v355
    %v357 = vpop.f32.mrf.mxu0
    %v358 = vpop.f32.mrf.mxu0
    %v359 = vadd.f32 0.0, %v358
    %v360 = vpop.f32.mrf.mxu0
    %361 = vmatprep.mubr.bf16.mxu0 0
    %362 = vmatmul.mubr.bf16.gmra.mxu0 %v190
    %v363 = vpop.f32.mrf.mxu0
    %v364 = vadd.f32 0.0, %v363
    %v365 = vpop.f32.mrf.mxu0
    %v366 = vpop.f32.mrf.mxu0
    %v367 = vadd.f32 0.0, %v366
    %v368 = vpop.f32.mrf.mxu0
    %369 = vmatprep.mubr.bf16.mxu0 0
    %370 = vmatmul.mubr.bf16.gmra.mxu0 %v193
    %v371 = vpop.f32.mrf.mxu0
    %v372 = vadd.f32 0.0, %v371
    %v373 = vpop.f32.mrf.mxu0
    %v374 = vpop.f32.mrf.mxu0
    %v375 = vadd.f32 0.0, %v374
    %v376 = vpop.f32.mrf.mxu0
    %377 = vmatprep.mubr.bf16.mxu0 0
    %378 = vmatmul.mubr.bf16.gmra.mxu0 %v196
    %v379 = vpop.f32.mrf.mxu0
    %v380 = vadd.f32 0.0, %v379
    %v381 = vpop.f32.mrf.mxu0
    %v382 = vpop.f32.mrf.mxu0
    %v383 = vadd.f32 0.0, %v382
    %v384 = vpop.f32.mrf.mxu0
    %385 = vmatprep.mubr.bf16.mxu0 0
    %386 = vmatmul.mubr.bf16.gmra.mxu0 %v199
    %v387 = vpop.f32.mrf.mxu0
    %v388 = vadd.f32 0.0, %v387
    %v389 = vpop.f32.mrf.mxu0
    %v390 = vpop.f32.mrf.mxu0
    %v391 = vadd.f32 0.0, %v390
    %v392 = vpop.f32.mrf.mxu0
    %393 = vmatprep.mubr.bf16.mxu0 0
    %394 = vmatmul.mubr.bf16.gmra.mxu0 %v202
    %v395 = vpop.f32.mrf.mxu0
    %v396 = vadd.f32 0.0, %v395
    %v397 = vpop.f32.mrf.mxu0
    %v398 = vpop.f32.mrf.mxu0
    %v399 = vadd.f32 0.0, %v398
    %v400 = vpop.f32.mrf.mxu0
    %401 = vmatprep.mubr.bf16.mxu0 0
    %402 = vmatmul.mubr.bf16.gmra.mxu0 %v205
    %v403 = vpop.f32.mrf.mxu0
    %v404 = vadd.f32 0.0, %v403
    %v405 = vpop.f32.mrf.mxu0
    %v406 = vpop.f32.mrf.mxu0
    %v407 = vadd.f32 0.0, %v406
    %v408 = vpop.f32.mrf.mxu0
    %409 = vmatprep.mubr.bf16.mxu0 0
    %410 = vmatmul.mubr.bf16.gmra.mxu0 %v208
    %v411 = vpop.f32.mrf.mxu0
    %v412 = vadd.f32 0.0, %v411
    %v413 = vpop.f32.mrf.mxu0
    %v414 = vpop.f32.mrf.mxu0
    %v415 = vadd.f32 0.0, %v414
    %v416 = vpop.f32.mrf.mxu0
    %417 = vmatprep.mubr.bf16.mxu0 0
    %418 = vmatmul.mubr.bf16.gmra.mxu0 %v211
    %v419 = vpop.f32.mrf.mxu0
    %v420 = vadd.f32 0.0, %v419
    %v421 = vpop.f32.mrf.mxu0
    %v422 = vpop.f32.mrf.mxu0
    %v423 = vadd.f32 0.0, %v422
    %v424 = vpop.f32.mrf.mxu0
    %425 = vmatprep.mubr.bf16.mxu0 0
    %426 = vmatmul.mubr.bf16.gmra.mxu0 %v214
    %v427 = vpop.f32.mrf.mxu0
    %v428 = vadd.f32 0.0, %v427
    %v429 = vpop.f32.mrf.mxu0
    %v430 = vpop.f32.mrf.mxu0
    %v431 = vadd.f32 0.0, %v430
    %v432 = vpop.f32.mrf.mxu0
    %433 = vmatprep.mubr.bf16.mxu0 0
    %434 = vmatmul.mubr.bf16.gmra.mxu0 %v217
    %v435 = vpop.f32.mrf.mxu0
    %v436 = vadd.f32 0.0, %v435
    %v437 = vpop.f32.mrf.mxu0
    %v438 = vpop.f32.mrf.mxu0
    %v439 = vadd.f32 0.0, %v438
    %v440 = vpop.f32.mrf.mxu0
    %441 = vmatprep.mubr.bf16.mxu0 0
    %442 = vmatmul.mubr.bf16.gmra.mxu0 %v220
    %v443 = vpop.f32.mrf.mxu0
    %v444 = vadd.f32 0.0, %v443
    %v445 = vpop.f32.mrf.mxu0
    %v446 = vpop.f32.mrf.mxu0
    %v447 = vadd.f32 0.0, %v446
    %v448 = vpop.f32.mrf.mxu0
    %449 = vmatprep.mubr.bf16.mxu0 0
    %450 = vmatmul.mubr.bf16.gmra.mxu0 %v223
    %v451 = vpop.f32.mrf.mxu0
    %v452 = vadd.f32 0.0, %v451
    %v453 = vpop.f32.mrf.mxu0
    %v454 = vpop.f32.mrf.mxu0
    %v455 = vadd.f32 0.0, %v454
    %v456 = vpop.f32.mrf.mxu0
    %457 = vmatprep.mubr.bf16.mxu0 0
    %458 = vmatmul.mubr.bf16.gmra.mxu0 %v226
    %v459 = vpop.f32.mrf.mxu0
    %v460 = vadd.f32 0.0, %v459
    %v461 = vpop.f32.mrf.mxu0
    %v462 = vpop.f32.mrf.mxu0
    %v463 = vadd.f32 0.0, %v462
    %v464 = vpop.f32.mrf.mxu0
    %465 = vmatprep.mubr.bf16.mxu0 0
    %466 = vmatmul.mubr.bf16.gmra.mxu0 %v229
    %v467 = vpop.f32.mrf.mxu0
    %v468 = vadd.f32 0.0, %v467
    %v469 = vpop.f32.mrf.mxu0
    %v470 = vpop.f32.mrf.mxu0
    %v471 = vadd.f32 0.0, %v470
    %v472 = vpop.f32.mrf.mxu0
    %473 = vmatprep.mubr.bf16.mxu0 0
    %474 = vmatmul.mubr.bf16.gmra.mxu0 %v232
    %v475 = vpop.f32.mrf.mxu0
    %v476 = vadd.f32 0.0, %v475
    %v477 = vpop.f32.mrf.mxu0
    %v478 = vpop.f32.mrf.mxu0
    %v479 = vadd.f32 0.0, %v478
    %v480 = vpop.f32.mrf.mxu0
    %481 = vmatprep.mubr.bf16.mxu0 0
    %482 = vmatmul.mubr.bf16.gmra.mxu0 %v235
    %v483 = vpop.f32.mrf.mxu0
    %v484 = vadd.f32 0.0, %v483
    %v485 = vpop.f32.mrf.mxu0
    %v486 = vpop.f32.mrf.mxu0
    %v487 = vadd.f32 0.0, %v486
    %v488 = vpop.f32.mrf.mxu0
    %489 = vmatprep.mubr.bf16.mxu0 0
    %490 = vmatmul.mubr.bf16.gmra.mxu0 %v238
    %v491 = vpop.f32.mrf.mxu0
    %v492 = vadd.f32 0.0, %v491
    %v493 = vpop.f32.mrf.mxu0
    %v494 = vpop.f32.mrf.mxu0
    %v495 = vadd.f32 0.0, %v494
    %v496 = vpop.f32.mrf.mxu0
    %497 = vmatprep.mubr.bf16.mxu0 0
    %498 = vmatmul.mubr.bf16.gmra.mxu0 %v241
    %v499 = vpop.f32.mrf.mxu0
    %v500 = vadd.f32 0.0, %v499
    %v501 = vpop.f32.mrf.mxu0
    %v502 = vpop.f32.mrf.mxu0
    %v503 = vadd.f32 0.0, %v502
    %v504 = vpop.f32.mrf.mxu0
    %505 = vmatprep.mubr.bf16.mxu0 0
    %506 = vmatmul.mubr.bf16.gmra.mxu0 %v244
    %v507 = vpop.f32.mrf.mxu0
    %v508 = vadd.f32 0.0, %v507
    %v509 = vpop.f32.mrf.mxu0
    %v510 = vpop.f32.mrf.mxu0
    %v511 = vadd.f32 0.0, %v510
    %v512 = vpop.f32.mrf.mxu0
    %513 = vmatprep.mubr.bf16.mxu0 0
    %514 = vmatmul.mubr.bf16.gmra.mxu0 %v247
    %v515 = vpop.f32.mrf.mxu0
    %v516 = vadd.f32 0.0, %v515
    %v517 = vpop.f32.mrf.mxu0
    %v518 = vpop.f32.mrf.mxu0
    %v519 = vadd.f32 0.0, %v518
    %v520 = vpop.f32.mrf.mxu0
    %521 = vmatprep.mubr.bf16.mxu0 0
    %522 = vmatmul.mubr.bf16.gmra.mxu0 %v250
    %v523 = vpop.f32.mrf.mxu0
    %v524 = vadd.f32 0.0, %v523
    %v525 = vpop.f32.mrf.mxu0
    %v526 = vpop.f32.mrf.mxu0
    %v527 = vadd.f32 0.0, %v526
    %v528 = vpop.f32.mrf.mxu0
    %529 = vmatprep.mubr.bf16.mxu0 0
    %530 = vmatmul.mubr.bf16.gmra.mxu0 %v253
    %v531 = vpop.f32.mrf.mxu0
    %v532 = vadd.f32 0.0, %v531
    %v533 = vpop.f32.mrf.mxu0
    %v534 = vpop.f32.mrf.mxu0
    %v535 = vadd.f32 0.0, %v534
    %v536 = vpop.f32.mrf.mxu0
    %537 = vmatprep.mubr.bf16.mxu0 0
    %538 = vmatmul.mubr.bf16.gmra.mxu0 %v256
    %v539 = vpop.f32.mrf.mxu0
    %v540 = vadd.f32 0.0, %v539
    %v541 = vpop.f32.mrf.mxu0
    %v542 = vpop.f32.mrf.mxu0
    %v543 = vadd.f32 0.0, %v542
    %v544 = vpop.f32.mrf.mxu0
    %545 = vmatprep.mubr.bf16.mxu0 0
    %546 = vmatmul.mubr.bf16.gmra.mxu0 %v259
    %v547 = vpop.f32.mrf.mxu0
    %v548 = vadd.f32 0.0, %v547
    %v549 = vpop.f32.mrf.mxu0
    %v550 = vpop.f32.mrf.mxu0
    %v551 = vadd.f32 0.0, %v550
    %v552 = vpop.f32.mrf.mxu0
    %553 = vdwg.mxu0
    %v554 = vpack.c.bf16 %v303, %v300
    %v555 = vpack.c.bf16 %v311, %v308
    %v556 = vpack.c.bf16 %v319, %v316
    %v557 = vpack.c.bf16 %v327, %v324
    %v558 = vpack.c.bf16 %v335, %v332
    %v559 = vpack.c.bf16 %v343, %v340
    %v560 = vpack.c.bf16 %v351, %v348
    %v561 = vpack.c.bf16 %v359, %v356
    %v562 = vpack.c.bf16 %v367, %v364
    %v563 = vpack.c.bf16 %v375, %v372
    %v564 = vpack.c.bf16 %v383, %v380
    %v565 = vpack.c.bf16 %v391, %v388
    %v566 = vpack.c.bf16 %v399, %v396
    %v567 = vpack.c.bf16 %v407, %v404
    %v568 = vpack.c.bf16 %v415, %v412
    %v569 = vpack.c.bf16 %v423, %v420
    %v570 = vpack.c.bf16 %v431, %v428
    %v571 = vpack.c.bf16 %v439, %v436
    %v572 = vpack.c.bf16 %v447, %v444
    %v573 = vpack.c.bf16 %v455, %v452
    %v574 = vpack.c.bf16 %v463, %v460
    %v575 = vpack.c.bf16 %v471, %v468
    %v576 = vpack.c.bf16 %v479, %v476
    %v577 = vpack.c.bf16 %v487, %v484
    %v578 = vpack.c.bf16 %v495, %v492
    %v579 = vpack.c.bf16 %v503, %v500
    %v580 = vpack.c.bf16 %v511, %v508
    %v581 = vpack.c.bf16 %v519, %v516
    %v582 = vpack.c.bf16 %v527, %v524
    %v583 = vpack.c.bf16 %v535, %v532
    %v584 = vpack.c.bf16 %v543, %v540
    %v585 = vpack.c.bf16 %v551, %v548
    %v618 = vunpack.c.l.b16 %v554
    %v619 = vunpack.c.h.b16 %v554
    %v620 = vunpack.c.l.b16 %v555
    %v621 = vunpack.c.h.b16 %v555
    %v622 = vunpack.c.l.b16 %v556
    %v623 = vunpack.c.h.b16 %v556
    %v624 = vunpack.c.l.b16 %v557
    %v625 = vunpack.c.h.b16 %v557
    %v626 = vunpack.c.l.b16 %v558
    %v627 = vunpack.c.h.b16 %v558
    %v628 = vunpack.c.l.b16 %v559
    %v629 = vunpack.c.h.b16 %v559
    %v630 = vunpack.c.l.b16 %v560
    %v631 = vunpack.c.h.b16 %v560
    %v632 = vunpack.c.l.b16 %v561
    %v633 = vunpack.c.h.b16 %v561
    %v634 = vunpack.c.l.b16 %v562
    %v635 = vunpack.c.h.b16 %v562
    %v636 = vunpack.c.l.b16 %v563
    %v637 = vunpack.c.h.b16 %v563
    %v638 = vunpack.c.l.b16 %v564
    %v639 = vunpack.c.h.b16 %v564
    %v640 = vunpack.c.l.b16 %v565
    %v641 = vunpack.c.h.b16 %v565
    %v642 = vunpack.c.l.b16 %v566
    %v643 = vunpack.c.h.b16 %v566
    %v644 = vunpack.c.l.b16 %v567
    %v645 = vunpack.c.h.b16 %v567
    %v646 = vunpack.c.l.b16 %v568
    %v647 = vunpack.c.h.b16 %v568
    %v648 = vunpack.c.l.b16 %v569
    %v649 = vunpack.c.h.b16 %v569
    %v650 = vunpack.c.l.b16 %v570
    %v651 = vunpack.c.h.b16 %v570
    %v652 = vunpack.c.l.b16 %v571
    %v653 = vunpack.c.h.b16 %v571
    %v654 = vunpack.c.l.b16 %v572
    %v655 = vunpack.c.h.b16 %v572
    %v656 = vunpack.c.l.b16 %v573
    %v657 = vunpack.c.h.b16 %v573
    %v658 = vunpack.c.l.b16 %v574
    %v659 = vunpack.c.h.b16 %v574
    %v660 = vunpack.c.l.b16 %v575
    %v661 = vunpack.c.h.b16 %v575
    %v662 = vunpack.c.l.b16 %v576
    %v663 = vunpack.c.h.b16 %v576
    %v664 = vunpack.c.l.b16 %v577
    %v665 = vunpack.c.h.b16 %v577
    %v666 = vunpack.c.l.b16 %v578
    %v667 = vunpack.c.h.b16 %v578
    %v668 = vunpack.c.l.b16 %v579
    %v669 = vunpack.c.h.b16 %v579
    %v670 = vunpack.c.l.b16 %v580
    %v671 = vunpack.c.h.b16 %v580
    %v672 = vunpack.c.l.b16 %v581
    %v673 = vunpack.c.h.b16 %v581
    %v674 = vunpack.c.l.b16 %v582
    %v675 = vunpack.c.h.b16 %v582
    %v676 = vunpack.c.l.b16 %v583
    %v677 = vunpack.c.h.b16 %v583
    %v678 = vunpack.c.l.b16 %v584
    %v679 = vunpack.c.h.b16 %v584
    %v680 = vunpack.c.l.b16 %v585
    %v681 = vunpack.c.h.b16 %v585
    %v682 = vpack.c.b16 %v618, %v618
    %v683 = vpack.c.b16 %v619, %v619
    %v684 = vpack.c.b16 %v620, %v620
    %v685 = vpack.c.b16 %v621, %v621
    %v686 = vpack.c.b16 %v622, %v622
    %v687 = vpack.c.b16 %v623, %v623
    %v688 = vpack.c.b16 %v624, %v624
    %v689 = vpack.c.b16 %v625, %v625
    %v690 = vpack.c.b16 %v626, %v626
    %v691 = vpack.c.b16 %v627, %v627
    %v692 = vpack.c.b16 %v628, %v628
    %v693 = vpack.c.b16 %v629, %v629
    %v694 = vpack.c.b16 %v630, %v630
    %v695 = vpack.c.b16 %v631, %v631
    %v696 = vpack.c.b16 %v632, %v632
    %v697 = vpack.c.b16 %v633, %v633
    %v698 = vpack.c.b16 %v634, %v634
    %v699 = vpack.c.b16 %v635, %v635
    %v700 = vpack.c.b16 %v636, %v636
    %v701 = vpack.c.b16 %v637, %v637
    %v702 = vpack.c.b16 %v638, %v638
    %v703 = vpack.c.b16 %v639, %v639
    %v704 = vpack.c.b16 %v640, %v640
    %v705 = vpack.c.b16 %v641, %v641
    %v706 = vpack.c.b16 %v642, %v642
    %v707 = vpack.c.b16 %v643, %v643
    %v708 = vpack.c.b16 %v644, %v644
    %v709 = vpack.c.b16 %v645, %v645
    %v710 = vpack.c.b16 %v646, %v646
    %v711 = vpack.c.b16 %v647, %v647
    %v712 = vpack.c.b16 %v648, %v648
    %v713 = vpack.c.b16 %v649, %v649
    %v714 = vpack.c.b16 %v650, %v650
    %v715 = vpack.c.b16 %v651, %v651
    %v716 = vpack.c.b16 %v652, %v652
    %v717 = vpack.c.b16 %v653, %v653
    %v718 = vpack.c.b16 %v654, %v654
    %v719 = vpack.c.b16 %v655, %v655
    %v720 = vpack.c.b16 %v656, %v656
    %v721 = vpack.c.b16 %v657, %v657
    %v722 = vpack.c.b16 %v658, %v658
    %v723 = vpack.c.b16 %v659, %v659
    %v724 = vpack.c.b16 %v660, %v660
    %v725 = vpack.c.b16 %v661, %v661
    %v726 = vpack.c.b16 %v662, %v662
    %v727 = vpack.c.b16 %v663, %v663
    %v728 = vpack.c.b16 %v664, %v664
    %v729 = vpack.c.b16 %v665, %v665
    %v730 = vpack.c.b16 %v666, %v666
    %v731 = vpack.c.b16 %v667, %v667
    %v732 = vpack.c.b16 %v668, %v668
    %v733 = vpack.c.b16 %v669, %v669
    %v734 = vpack.c.b16 %v670, %v670
    %v735 = vpack.c.b16 %v671, %v671
    %v736 = vpack.c.b16 %v672, %v672
    %v737 = vpack.c.b16 %v673, %v673
    %v738 = vpack.c.b16 %v674, %v674
    %v739 = vpack.c.b16 %v675, %v675
    %v740 = vpack.c.b16 %v676, %v676
    %v741 = vpack.c.b16 %v677, %v677
    %v742 = vpack.c.b16 %v678, %v678
    %v743 = vpack.c.b16 %v679, %v679
    %v744 = vpack.c.b16 %v680, %v680
    %v745 = vpack.c.b16 %v681, %v681
    %810 = vst [vmem:[#allocation2] sm:$0xf] %v682
    %811 = vst [vmem:[#allocation2 + $0x4] sm:$0xf] %v683
    %812 = vst [vmem:[#allocation2 + $0x8] sm:$0xf] %v684
    %813 = vst [vmem:[#allocation2 + $0xc] sm:$0xf] %v685
    %814 = vst [vmem:[#allocation2 + $0x10] sm:$0xf] %v686
    %815 = vst [vmem:[#allocation2 + $0x14] sm:$0xf] %v687
    %816 = vst [vmem:[#allocation2 + $0x18] sm:$0xf] %v688
    %817 = vst [vmem:[#allocation2 + $0x1c] sm:$0xf] %v689
    %818 = vst [vmem:[#allocation2 + $0x20] sm:$0xf] %v690
    %819 = vst [vmem:[#allocation2 + $0x24] sm:$0xf] %v691
    %820 = vst [vmem:[#allocation2 + $0x28] sm:$0xf] %v692
    %821 = vst [vmem:[#allocation2 + $0x2c] sm:$0xf] %v693
    %822 = vst [vmem:[#allocation2 + $0x30] sm:$0xf] %v694
    %823 = vst [vmem:[#allocation2 + $0x34] sm:$0xf] %v695
    %824 = vst [vmem:[#allocation2 + $0x38] sm:$0xf] %v696
    %825 = vst [vmem:[#allocation2 + $0x3c] sm:$0xf] %v697
    %826 = vst [vmem:[#allocation2 + $0x40] sm:$0xf] %v698
    %827 = vst [vmem:[#allocation2 + $0x44] sm:$0xf] %v699
    %828 = vst [vmem:[#allocation2 + $0x48] sm:$0xf] %v700
    %829 = vst [vmem:[#allocation2 + $0x4c] sm:$0xf] %v701
    %830 = vst [vmem:[#allocation2 + $0x50] sm:$0xf] %v702
    %831 = vst [vmem:[#allocation2 + $0x54] sm:$0xf] %v703
    %832 = vst [vmem:[#allocation2 + $0x58] sm:$0xf] %v704
    %833 = vst [vmem:[#allocation2 + $0x5c] sm:$0xf] %v705
    %834 = vst [vmem:[#allocation2 + $0x60] sm:$0xf] %v706
    %835 = vst [vmem:[#allocation2 + $0x64] sm:$0xf] %v707
    %836 = vst [vmem:[#allocation2 + $0x68] sm:$0xf] %v708
    %837 = vst [vmem:[#allocation2 + $0x6c] sm:$0xf] %v709
    %838 = vst [vmem:[#allocation2 + $0x70] sm:$0xf] %v710
    %839 = vst [vmem:[#allocation2 + $0x74] sm:$0xf] %v711
    %840 = vst [vmem:[#allocation2 + $0x78] sm:$0xf] %v712
    %841 = vst [vmem:[#allocation2 + $0x7c] sm:$0xf] %v713
    %842 = vst [vmem:[#allocation2 + $0x80] sm:$0xf] %v714
    %843 = vst [vmem:[#allocation2 + $0x84] sm:$0xf] %v715
    %844 = vst [vmem:[#allocation2 + $0x88] sm:$0xf] %v716
    %845 = vst [vmem:[#allocation2 + $0x8c] sm:$0xf] %v717
    %846 = vst [vmem:[#allocation2 + $0x90] sm:$0xf] %v718
    %847 = vst [vmem:[#allocation2 + $0x94] sm:$0xf] %v719
    %848 = vst [vmem:[#allocation2 + $0x98] sm:$0xf] %v720
    %849 = vst [vmem:[#allocation2 + $0x9c] sm:$0xf] %v721
    %850 = vst [vmem:[#allocation2 + $0xa0] sm:$0xf] %v722
    %851 = vst [vmem:[#allocation2 + $0xa4] sm:$0xf] %v723
    %852 = vst [vmem:[#allocation2 + $0xa8] sm:$0xf] %v724
    %853 = vst [vmem:[#allocation2 + $0xac] sm:$0xf] %v725
    %854 = vst [vmem:[#allocation2 + $0xb0] sm:$0xf] %v726
    %855 = vst [vmem:[#allocation2 + $0xb4] sm:$0xf] %v727
    %856 = vst [vmem:[#allocation2 + $0xb8] sm:$0xf] %v728
    %857 = vst [vmem:[#allocation2 + $0xbc] sm:$0xf] %v729
    %858 = vst [vmem:[#allocation2 + $0xc0] sm:$0xf] %v730
    %859 = vst [vmem:[#allocation2 + $0xc4] sm:$0xf] %v731
    %860 = vst [vmem:[#allocation2 + $0xc8] sm:$0xf] %v732
    %861 = vst [vmem:[#allocation2 + $0xcc] sm:$0xf] %v733
    %862 = vst [vmem:[#allocation2 + $0xd0] sm:$0xf] %v734
    %863 = vst [vmem:[#allocation2 + $0xd4] sm:$0xf] %v735
    %864 = vst [vmem:[#allocation2 + $0xd8] sm:$0xf] %v736
    %865 = vst [vmem:[#allocation2 + $0xdc] sm:$0xf] %v737
    %866 = vst [vmem:[#allocation2 + $0xe0] sm:$0xf] %v738
    %867 = vst [vmem:[#allocation2 + $0xe4] sm:$0xf] %v739
    %868 = vst [vmem:[#allocation2 + $0xe8] sm:$0xf] %v740
    %869 = vst [vmem:[#allocation2 + $0xec] sm:$0xf] %v741
    %870 = vst [vmem:[#allocation2 + $0xf0] sm:$0xf] %v742
    %871 = vst [vmem:[#allocation2 + $0xf4] sm:$0xf] %v743
    %872 = vst [vmem:[#allocation2 + $0xf8] sm:$0xf] %v744
    %873 = vst [vmem:[#allocation2 + $0xfc] sm:$0xf] %v745
    %v874 = vld [vmem:[#allocation5] sm:$0xf]
    %v875 = vld [vmem:[#allocation5 + $0x4] sm:$0xf]
    %v876 = vld [vmem:[#allocation2] sm:$0xf]
    %v877 = vld [vmem:[#allocation2 + $0x4] sm:$0xf]
    %v880 = vunpack.c.l.b16 %v874
    %v881 = vunpack.c.l.b16 %v875
    %v882 = vpack.c.b16 %v881, %v880
    %v885 = vunpack.c.l.b16 %v876
    %v886 = vunpack.c.l.b16 %v877
    %v887 = vpack.c.b16 %v886, %v885
    %vm889 = vcmask 130048
    %v891 = vsel %vm889, %v882, 0
    %893 = vmatprep.subr.bf16.mxu0 0
    %894 = vmatpush1.bf16.msra.mxu0 0
    %895 = vmatprep.subr.bf16.mxu0 0
    %896 = vmatpush1.bf16.msra.mxu0 0
    %897 = vmatprep.subr.bf16.mxu0 0
    %898 = vmatpush1.bf16.msra.mxu0 0
    %899 = vmatprep.subr.bf16.mxu0 0
    %900 = vmatpush1.bf16.msra.mxu0 0
    %901 = vmatprep.subr.bf16.mxu0 0
    %902 = vmatpush1.bf16.msra.mxu0 0
    %903 = vmatprep.subr.bf16.mxu0 0
    %904 = vmatpush1.bf16.msra.mxu0 0
    %905 = vmatprep.subr.bf16.mxu0 0
    %906 = vmatpush1.bf16.msra.mxu0 0
    %907 = vmatprep.subr.bf16.mxu0 0
    %908 = vmatpush1.bf16.msra.mxu0 %v887
    %909 = vmatprep.subr.bf16.mxu0 0
    %910 = vmatpush2.bf16.msra.mxu0 0
    %911 = vmatprep.subr.bf16.mxu0 0
    %912 = vmatpush2.bf16.msra.mxu0 0
    %913 = vmatprep.subr.bf16.mxu0 0
    %914 = vmatpush2.bf16.msra.mxu0 0
    %915 = vmatprep.subr.bf16.mxu0 0
    %916 = vmatpush2.bf16.msra.mxu0 0
    %917 = vmatprep.subr.bf16.mxu0 0
    %918 = vmatpush2.bf16.msra.mxu0 0
    %919 = vmatprep.subr.bf16.mxu0 0
    %920 = vmatpush2.bf16.msra.mxu0 0
    %921 = vmatprep.subr.bf16.mxu0 0
    %922 = vmatpush2.bf16.msra.mxu0 0
    %923 = vmatprep.subr.bf16.mxu0 0
    %924 = vmatpush2.bf16.msra.mxu0 0
    %925 = vmatprep.mubr.bf16.mxu0 0
    %926 = vmatmul.mubr.bf16.gmra.mxu0 %v891
    %v927 = vpop.f32.mrf.mxu0
    %v928 = vadd.f32 0.0, %v927
    %v929 = vpop.f32.mrf.mxu0
    %v930 = vpop.f32.mrf.mxu0
    %v931 = vadd.f32 0.0, %v930
    %v932 = vpop.f32.mrf.mxu0
    %933 = vdwg.mxu0
    %934 = vst [vmem:[%s3] sm:$0xff] %v928
    %935 = vst [vmem:[%s3 + $0x8] sm:$0xff] %v931
    %s936 = scalar_lea.vmem [#allocation2], 8
    %v937 = vld [vmem:[%s936] sm:$0xf]
    %v938 = vld [vmem:[%s936 + $0x4] sm:$0xf]
    %v941 = vunpack.c.l.b16 %v937
    %v942 = vunpack.c.l.b16 %v938
    %v943 = vpack.c.b16 %v942, %v941
    %945 = vmatprep.subr.bf16.mxu0 0
    %946 = vmatpush1.bf16.msra.mxu0 0
    %947 = vmatprep.subr.bf16.mxu0 0
    %948 = vmatpush1.bf16.msra.mxu0 0
    %949 = vmatprep.subr.bf16.mxu0 0
    %950 = vmatpush1.bf16.msra.mxu0 0
    %951 = vmatprep.subr.bf16.mxu0 0
    %952 = vmatpush1.bf16.msra.mxu0 0
    %953 = vmatprep.subr.bf16.mxu0 0
    %954 = vmatpush1.bf16.msra.mxu0 0
    %955 = vmatprep.subr.bf16.mxu0 0
    %956 = vmatpush1.bf16.msra.mxu0 0
    %957 = vmatprep.subr.bf16.mxu0 0
    %958 = vmatpush1.bf16.msra.mxu0 0
    %959 = vmatprep.subr.bf16.mxu0 0
    %960 = vmatpush1.bf16.msra.mxu0 %v943
    %961 = vmatprep.subr.bf16.mxu0 0
    %962 = vmatpush2.bf16.msra.mxu0 0
    %963 = vmatprep.subr.bf16.mxu0 0
    %964 = vmatpush2.bf16.msra.mxu0 0
    %965 = vmatprep.subr.bf16.mxu0 0
    %966 = vmatpush2.bf16.msra.mxu0 0
    %967 = vmatprep.subr.bf16.mxu0 0
    %968 = vmatpush2.bf16.msra.mxu0 0
    %969 = vmatprep.subr.bf16.mxu0 0
    %970 = vmatpush2.bf16.msra.mxu0 0
    %971 = vmatprep.subr.bf16.mxu0 0
    %972 = vmatpush2.bf16.msra.mxu0 0
    %973 = vmatprep.subr.bf16.mxu0 0
    %974 = vmatpush2.bf16.msra.mxu0 0
    %975 = vmatprep.subr.bf16.mxu0 0
    %976 = vmatpush2.bf16.msra.mxu0 0
    %977 = vmatprep.mubr.bf16.mxu0 0
    %978 = vmatmul.mubr.bf16.gmra.mxu0 %v891
    %v979 = vpop.f32.mrf.mxu0
    %v980 = vadd.f32 0.0, %v979
    %v981 = vpop.f32.mrf.mxu0
    %v982 = vpop.f32.mrf.mxu0
    %v983 = vadd.f32 0.0, %v982
    %v984 = vpop.f32.mrf.mxu0
    %985 = vdwg.mxu0
    %s986 = scalar_lea.vmem %s3, 16
    %987 = vst [vmem:[%s986] sm:$0xff] %v980
    %988 = vst [vmem:[%s986 + $0x8] sm:$0xff] %v983
    %s989 = scalar_lea.vmem [#allocation2], 16
    %v990 = vld [vmem:[%s989] sm:$0xf]
    %v991 = vld [vmem:[%s989 + $0x4] sm:$0xf]
    %v994 = vunpack.c.l.b16 %v990
    %v995 = vunpack.c.l.b16 %v991
    %v996 = vpack.c.b16 %v995, %v994
    %998 = vmatprep.subr.bf16.mxu0 0
    %999 = vmatpush1.bf16.msra.mxu0 0
    %1000 = vmatprep.subr.bf16.mxu0 0
    %1001 = vmatpush1.bf16.msra.mxu0 0
    %1002 = vmatprep.subr.bf16.mxu0 0
    %1003 = vmatpush1.bf16.msra.mxu0 0
    %1004 = vmatprep.subr.bf16.mxu0 0
    %1005 = vmatpush1.bf16.msra.mxu0 0
    %1006 = vmatprep.subr.bf16.mxu0 0
    %1007 = vmatpush1.bf16.msra.mxu0 0
    %1008 = vmatprep.subr.bf16.mxu0 0
    %1009 = vmatpush1.bf16.msra.mxu0 0
    %1010 = vmatprep.subr.bf16.mxu0 0
    %1011 = vmatpush1.bf16.msra.mxu0 0
    %1012 = vmatprep.subr.bf16.mxu0 0
    %1013 = vmatpush1.bf16.msra.mxu0 %v996
    %1014 = vmatprep.subr.bf16.mxu0 0
    %1015 = vmatpush2.bf16.msra.mxu0 0
    %1016 = vmatprep.subr.bf16.mxu0 0
    %1017 = vmatpush2.bf16.msra.mxu0 0
    %1018 = vmatprep.subr.bf16.mxu0 0
    %1019 = vmatpush2.bf16.msra.mxu0 0
    %1020 = vmatprep.subr.bf16.mxu0 0
    %1021 = vmatpush2.bf16.msra.mxu0 0
    %1022 = vmatprep.subr.bf16.mxu0 0
    %1023 = vmatpush2.bf16.msra.mxu0 0
    %1024 = vmatprep.subr.bf16.mxu0 0
    %1025 = vmatpush2.bf16.msra.mxu0 0
    %1026 = vmatprep.subr.bf16.mxu0 0
    %1027 = vmatpush2.bf16.msra.mxu0 0
    %1028 = vmatprep.subr.bf16.mxu0 0
    %1029 = vmatpush2.bf16.msra.mxu0 0
    %1030 = vmatprep.mubr.bf16.mxu0 0
    %1031 = vmatmul.mubr.bf16.gmra.mxu0 %v891
    %v1032 = vpop.f32.mrf.mxu0
    %v1033 = vadd.f32 0.0, %v1032
    %v1034 = vpop.f32.mrf.mxu0
    %v1035 = vpop.f32.mrf.mxu0
    %v1036 = vadd.f32 0.0, %v1035
    %v1037 = vpop.f32.mrf.mxu0
    %1038 = vdwg.mxu0
    %s1039 = scalar_lea.vmem %s3, 32
    %1040 = vst [vmem:[%s1039] sm:$0xff] %v1033
    %1041 = vst [vmem:[%s1039 + $0x8] sm:$0xff] %v1036
    %s1042 = scalar_lea.vmem [#allocation2], 24
    %v1043 = vld [vmem:[%s1042] sm:$0xf]
    %v1044 = vld [vmem:[%s1042 + $0x4] sm:$0xf]
    %v1047 = vunpack.c.l.b16 %v1043
    %v1048 = vunpack.c.l.b16 %v1044
    %v1049 = vpack.c.b16 %v1048, %v1047
    %1051 = vmatprep.subr.bf16.mxu0 0
    %1052 = vmatpush1.bf16.msra.mxu0 0
    %1053 = vmatprep.subr.bf16.mxu0 0
    %1054 = vmatpush1.bf16.msra.mxu0 0
    %1055 = vmatprep.subr.bf16.mxu0 0
    %1056 = vmatpush1.bf16.msra.mxu0 0
    %1057 = vmatprep.subr.bf16.mxu0 0
    %1058 = vmatpush1.bf16.msra.mxu0 0
    %1059 = vmatprep.subr.bf16.mxu0 0
    %1060 = vmatpush1.bf16.msra.mxu0 0
    %1061 = vmatprep.subr.bf16.mxu0 0
    %1062 = vmatpush1.bf16.msra.mxu0 0
    %1063 = vmatprep.subr.bf16.mxu0 0
    %1064 = vmatpush1.bf16.msra.mxu0 0
    %1065 = vmatprep.subr.bf16.mxu0 0
    %1066 = vmatpush1.bf16.msra.mxu0 %v1049
    %1067 = vmatprep.subr.bf16.mxu0 0
    %1068 = vmatpush2.bf16.msra.mxu0 0
    %1069 = vmatprep.subr.bf16.mxu0 0
    %1070 = vmatpush2.bf16.msra.mxu0 0
    %1071 = vmatprep.subr.bf16.mxu0 0
    %1072 = vmatpush2.bf16.msra.mxu0 0
    %1073 = vmatprep.subr.bf16.mxu0 0
    %1074 = vmatpush2.bf16.msra.mxu0 0
    %1075 = vmatprep.subr.bf16.mxu0 0
    %1076 = vmatpush2.bf16.msra.mxu0 0
    %1077 = vmatprep.subr.bf16.mxu0 0
    %1078 = vmatpush2.bf16.msra.mxu0 0
    %1079 = vmatprep.subr.bf16.mxu0 0
    %1080 = vmatpush2.bf16.msra.mxu0 0
    %1081 = vmatprep.subr.bf16.mxu0 0
    %1082 = vmatpush2.bf16.msra.mxu0 0
    %1083 = vmatprep.mubr.bf16.mxu0 0
    %1084 = vmatmul.mubr.bf16.gmra.mxu0 %v891
    %v1085 = vpop.f32.mrf.mxu0
    %v1086 = vadd.f32 0.0, %v1085
    %v1087 = vpop.f32.mrf.mxu0
    %v1088 = vpop.f32.mrf.mxu0
    %v1089 = vadd.f32 0.0, %v1088
    %v1090 = vpop.f32.mrf.mxu0
    %1091 = vdwg.mxu0
    %s1092 = scalar_lea.vmem %s3, 48
    %1093 = vst [vmem:[%s1092] sm:$0xff] %v1086
    %1094 = vst [vmem:[%s1092 + $0x8] sm:$0xff] %v1089
    %s1095 = scalar_lea.vmem [#allocation2], 32
    %v1096 = vld [vmem:[%s1095] sm:$0xf]
    %v1097 = vld [vmem:[%s1095 + $0x4] sm:$0xf]
    %v1100 = vunpack.c.l.b16 %v1096
    %v1101 = vunpack.c.l.b16 %v1097
    %v1102 = vpack.c.b16 %v1101, %v1100
    %1104 = vmatprep.subr.bf16.mxu0 0
    %1105 = vmatpush1.bf16.msra.mxu0 0
    %1106 = vmatprep.subr.bf16.mxu0 0
    %1107 = vmatpush1.bf16.msra.mxu0 0
    %1108 = vmatprep.subr.bf16.mxu0 0
    %1109 = vmatpush1.bf16.msra.mxu0 0
    %1110 = vmatprep.subr.bf16.mxu0 0
    %1111 = vmatpush1.bf16.msra.mxu0 0
    %1112 = vmatprep.subr.bf16.mxu0 0
    %1113 = vmatpush1.bf16.msra.mxu0 0
    %1114 = vmatprep.subr.bf16.mxu0 0
    %1115 = vmatpush1.bf16.msra.mxu0 0
    %1116 = vmatprep.subr.bf16.mxu0 0
    %1117 = vmatpush1.bf16.msra.mxu0 0
    %1118 = vmatprep.subr.bf16.mxu0 0
    %1119 = vmatpush1.bf16.msra.mxu0 %v1102
    %1120 = vmatprep.subr.bf16.mxu0 0
    %1121 = vmatpush2.bf16.msra.mxu0 0
    %1122 = vmatprep.subr.bf16.mxu0 0
    %1123 = vmatpush2.bf16.msra.mxu0 0
    %1124 = vmatprep.subr.bf16.mxu0 0
    %1125 = vmatpush2.bf16.msra.mxu0 0
    %1126 = vmatprep.subr.bf16.mxu0 0
    %1127 = vmatpush2.bf16.msra.mxu0 0
    %1128 = vmatprep.subr.bf16.mxu0 0
    %1129 = vmatpush2.bf16.msra.mxu0 0
    %1130 = vmatprep.subr.bf16.mxu0 0
    %1131 = vmatpush2.bf16.msra.mxu0 0
    %1132 = vmatprep.subr.bf16.mxu0 0
    %1133 = vmatpush2.bf16.msra.mxu0 0
    %1134 = vmatprep.subr.bf16.mxu0 0
    %1135 = vmatpush2.bf16.msra.mxu0 0
    %1136 = vmatprep.mubr.bf16.mxu0 0
    %1137 = vmatmul.mubr.bf16.gmra.mxu0 %v891
    %v1138 = vpop.f32.mrf.mxu0
    %v1139 = vadd.f32 0.0, %v1138
    %v1140 = vpop.f32.mrf.mxu0
    %v1141 = vpop.f32.mrf.mxu0
    %v1142 = vadd.f32 0.0, %v1141
    %v1143 = vpop.f32.mrf.mxu0
    %1144 = vdwg.mxu0
    %s1145 = scalar_lea.vmem %s3, 64
    %1146 = vst [vmem:[%s1145] sm:$0xff] %v1139
    %1147 = vst [vmem:[%s1145 + $0x8] sm:$0xff] %v1142
    %s1148 = scalar_lea.vmem [#allocation2], 40
    %v1149 = vld [vmem:[%s1148] sm:$0xf]
    %v1150 = vld [vmem:[%s1148 + $0x4] sm:$0xf]
    %v1153 = vunpack.c.l.b16 %v1149
    %v1154 = vunpack.c.l.b16 %v1150
    %v1155 = vpack.c.b16 %v1154, %v1153
    %1157 = vmatprep.subr.bf16.mxu0 0
    %1158 = vmatpush1.bf16.msra.mxu0 0
    %1159 = vmatprep.subr.bf16.mxu0 0
    %1160 = vmatpush1.bf16.msra.mxu0 0
    %1161 = vmatprep.subr.bf16.mxu0 0
    %1162 = vmatpush1.bf16.msra.mxu0 0
    %1163 = vmatprep.subr.bf16.mxu0 0
    %1164 = vmatpush1.bf16.msra.mxu0 0
    %1165 = vmatprep.subr.bf16.mxu0 0
    %1166 = vmatpush1.bf16.msra.mxu0 0
    %1167 = vmatprep.subr.bf16.mxu0 0
    %1168 = vmatpush1.bf16.msra.mxu0 0
    %1169 = vmatprep.subr.bf16.mxu0 0
    %1170 = vmatpush1.bf16.msra.mxu0 0
    %1171 = vmatprep.subr.bf16.mxu0 0
    %1172 = vmatpush1.bf16.msra.mxu0 %v1155
    %1173 = vmatprep.subr.bf16.mxu0 0
    %1174 = vmatpush2.bf16.msra.mxu0 0
    %1175 = vmatprep.subr.bf16.mxu0 0
    %1176 = vmatpush2.bf16.msra.mxu0 0
    %1177 = vmatprep.subr.bf16.mxu0 0
    %1178 = vmatpush2.bf16.msra.mxu0 0
    %1179 = vmatprep.subr.bf16.mxu0 0
    %1180 = vmatpush2.bf16.msra.mxu0 0
    %1181 = vmatprep.subr.bf16.mxu0 0
    %1182 = vmatpush2.bf16.msra.mxu0 0
    %1183 = vmatprep.subr.bf16.mxu0 0
    %1184 = vmatpush2.bf16.msra.mxu0 0
    %1185 = vmatprep.subr.bf16.mxu0 0
    %1186 = vmatpush2.bf16.msra.mxu0 0
    %1187 = vmatprep.subr.bf16.mxu0 0
    %1188 = vmatpush2.bf16.msra.mxu0 0
    %1189 = vmatprep.mubr.bf16.mxu0 0
    %1190 = vmatmul.mubr.bf16.gmra.mxu0 %v891
    %v1191 = vpop.f32.mrf.mxu0
    %v1192 = vadd.f32 0.0, %v1191
    %v1193 = vpop.f32.mrf.mxu0
    %v1194 = vpop.f32.mrf.mxu0
    %v1195 = vadd.f32 0.0, %v1194
    %v1196 = vpop.f32.mrf.mxu0
    %1197 = vdwg.mxu0
    %s1198 = scalar_lea.vmem %s3, 80
    %1199 = vst [vmem:[%s1198] sm:$0xff] %v1192
    %1200 = vst [vmem:[%s1198 + $0x8] sm:$0xff] %v1195
    %s1201 = scalar_lea.vmem [#allocation2], 48
    %v1202 = vld [vmem:[%s1201] sm:$0xf]
    %v1203 = vld [vmem:[%s1201 + $0x4] sm:$0xf]
    %v1206 = vunpack.c.l.b16 %v1202
    %v1207 = vunpack.c.l.b16 %v1203
    %v1208 = vpack.c.b16 %v1207, %v1206
    %1210 = vmatprep.subr.bf16.mxu0 0
    %1211 = vmatpush1.bf16.msra.mxu0 0
    %1212 = vmatprep.subr.bf16.mxu0 0
    %1213 = vmatpush1.bf16.msra.mxu0 0
    %1214 = vmatprep.subr.bf16.mxu0 0
    %1215 = vmatpush1.bf16.msra.mxu0 0
    %1216 = vmatprep.subr.bf16.mxu0 0
    %1217 = vmatpush1.bf16.msra.mxu0 0
    %1218 = vmatprep.subr.bf16.mxu0 0
    %1219 = vmatpush1.bf16.msra.mxu0 0
    %1220 = vmatprep.subr.bf16.mxu0 0
    %1221 = vmatpush1.bf16.msra.mxu0 0
    %1222 = vmatprep.subr.bf16.mxu0 0
    %1223 = vmatpush1.bf16.msra.mxu0 0
    %1224 = vmatprep.subr.bf16.mxu0 0
    %1225 = vmatpush1.bf16.msra.mxu0 %v1208
    %1226 = vmatprep.subr.bf16.mxu0 0
    %1227 = vmatpush2.bf16.msra.mxu0 0
    %1228 = vmatprep.subr.bf16.mxu0 0
    %1229 = vmatpush2.bf16.msra.mxu0 0
    %1230 = vmatprep.subr.bf16.mxu0 0
    %1231 = vmatpush2.bf16.msra.mxu0 0
    %1232 = vmatprep.subr.bf16.mxu0 0
    %1233 = vmatpush2.bf16.msra.mxu0 0
    %1234 = vmatprep.subr.bf16.mxu0 0
    %1235 = vmatpush2.bf16.msra.mxu0 0
    %1236 = vmatprep.subr.bf16.mxu0 0
    %1237 = vmatpush2.bf16.msra.mxu0 0
    %1238 = vmatprep.subr.bf16.mxu0 0
    %1239 = vmatpush2.bf16.msra.mxu0 0
    %1240 = vmatprep.subr.bf16.mxu0 0
    %1241 = vmatpush2.bf16.msra.mxu0 0
    %1242 = vmatprep.mubr.bf16.mxu0 0
    %1243 = vmatmul.mubr.bf16.gmra.mxu0 %v891
    %v1244 = vpop.f32.mrf.mxu0
    %v1245 = vadd.f32 0.0, %v1244
    %v1246 = vpop.f32.mrf.mxu0
    %v1247 = vpop.f32.mrf.mxu0
    %v1248 = vadd.f32 0.0, %v1247
    %v1249 = vpop.f32.mrf.mxu0
    %1250 = vdwg.mxu0
    %s1251 = scalar_lea.vmem %s3, 96
    %1252 = vst [vmem:[%s1251] sm:$0xff] %v1245
    %1253 = vst [vmem:[%s1251 + $0x8] sm:$0xff] %v1248
    %s1254 = scalar_lea.vmem [#allocation2], 56
    %v1255 = vld [vmem:[%s1254] sm:$0xf]
    %v1256 = vld [vmem:[%s1254 + $0x4] sm:$0xf]
    %v1259 = vunpack.c.l.b16 %v1255
    %v1260 = vunpack.c.l.b16 %v1256
    %v1261 = vpack.c.b16 %v1260, %v1259
    %1263 = vmatprep.subr.bf16.mxu0 0
    %1264 = vmatpush1.bf16.msra.mxu0 0
    %1265 = vmatprep.subr.bf16.mxu0 0
    %1266 = vmatpush1.bf16.msra.mxu0 0
    %1267 = vmatprep.subr.bf16.mxu0 0
    %1268 = vmatpush1.bf16.msra.mxu0 0
    %1269 = vmatprep.subr.bf16.mxu0 0
    %1270 = vmatpush1.bf16.msra.mxu0 0
    %1271 = vmatprep.subr.bf16.mxu0 0
    %1272 = vmatpush1.bf16.msra.mxu0 0
    %1273 = vmatprep.subr.bf16.mxu0 0
    %1274 = vmatpush1.bf16.msra.mxu0 0
    %1275 = vmatprep.subr.bf16.mxu0 0
    %1276 = vmatpush1.bf16.msra.mxu0 0
    %1277 = vmatprep.subr.bf16.mxu0 0
    %1278 = vmatpush1.bf16.msra.mxu0 %v1261
    %1279 = vmatprep.subr.bf16.mxu0 0
    %1280 = vmatpush2.bf16.msra.mxu0 0
    %1281 = vmatprep.subr.bf16.mxu0 0
    %1282 = vmatpush2.bf16.msra.mxu0 0
    %1283 = vmatprep.subr.bf16.mxu0 0
    %1284 = vmatpush2.bf16.msra.mxu0 0
    %1285 = vmatprep.subr.bf16.mxu0 0
    %1286 = vmatpush2.bf16.msra.mxu0 0
    %1287 = vmatprep.subr.bf16.mxu0 0
    %1288 = vmatpush2.bf16.msra.mxu0 0
    %1289 = vmatprep.subr.bf16.mxu0 0
    %1290 = vmatpush2.bf16.msra.mxu0 0
    %1291 = vmatprep.subr.bf16.mxu0 0
    %1292 = vmatpush2.bf16.msra.mxu0 0
    %1293 = vmatprep.subr.bf16.mxu0 0
    %1294 = vmatpush2.bf16.msra.mxu0 0
    %1295 = vmatprep.mubr.bf16.mxu0 0
    %1296 = vmatmul.mubr.bf16.gmra.mxu0 %v891
    %v1297 = vpop.f32.mrf.mxu0
    %v1298 = vadd.f32 0.0, %v1297
    %v1299 = vpop.f32.mrf.mxu0
    %v1300 = vpop.f32.mrf.mxu0
    %v1301 = vadd.f32 0.0, %v1300
    %v1302 = vpop.f32.mrf.mxu0
    %1303 = vdwg.mxu0
    %s1304 = scalar_lea.vmem %s3, 112
    %1305 = vst [vmem:[%s1304] sm:$0xff] %v1298
    %1306 = vst [vmem:[%s1304 + $0x8] sm:$0xff] %v1301
    %s1307 = scalar_lea.vmem [#allocation2], 64
    %v1308 = vld [vmem:[%s1307] sm:$0xf]
    %v1309 = vld [vmem:[%s1307 + $0x4] sm:$0xf]
    %v1312 = vunpack.c.l.b16 %v1308
    %v1313 = vunpack.c.l.b16 %v1309
    %v1314 = vpack.c.b16 %v1313, %v1312
    %1316 = vmatprep.subr.bf16.mxu0 0
    %1317 = vmatpush1.bf16.msra.mxu0 0
    %1318 = vmatprep.subr.bf16.mxu0 0
    %1319 = vmatpush1.bf16.msra.mxu0 0
    %1320 = vmatprep.subr.bf16.mxu0 0
    %1321 = vmatpush1.bf16.msra.mxu0 0
    %1322 = vmatprep.subr.bf16.mxu0 0
    %1323 = vmatpush1.bf16.msra.mxu0 0
    %1324 = vmatprep.subr.bf16.mxu0 0
    %1325 = vmatpush1.bf16.msra.mxu0 0
    %1326 = vmatprep.subr.bf16.mxu0 0
    %1327 = vmatpush1.bf16.msra.mxu0 0
    %1328 = vmatprep.subr.bf16.mxu0 0
    %1329 = vmatpush1.bf16.msra.mxu0 0
    %1330 = vmatprep.subr.bf16.mxu0 0
    %1331 = vmatpush1.bf16.msra.mxu0 %v1314
    %1332 = vmatprep.subr.bf16.mxu0 0
    %1333 = vmatpush2.bf16.msra.mxu0 0
    %1334 = vmatprep.subr.bf16.mxu0 0
    %1335 = vmatpush2.bf16.msra.mxu0 0
    %1336 = vmatprep.subr.bf16.mxu0 0
    %1337 = vmatpush2.bf16.msra.mxu0 0
    %1338 = vmatprep.subr.bf16.mxu0 0
    %1339 = vmatpush2.bf16.msra.mxu0 0
    %1340 = vmatprep.subr.bf16.mxu0 0
    %1341 = vmatpush2.bf16.msra.mxu0 0
    %1342 = vmatprep.subr.bf16.mxu0 0
    %1343 = vmatpush2.bf16.msra.mxu0 0
    %1344 = vmatprep.subr.bf16.mxu0 0
    %1345 = vmatpush2.bf16.msra.mxu0 0
    %1346 = vmatprep.subr.bf16.mxu0 0
    %1347 = vmatpush2.bf16.msra.mxu0 0
    %1348 = vmatprep.mubr.bf16.mxu0 0
    %1349 = vmatmul.mubr.bf16.gmra.mxu0 %v891
    %v1350 = vpop.f32.mrf.mxu0
    %v1351 = vadd.f32 0.0, %v1350
    %v1352 = vpop.f32.mrf.mxu0
    %v1353 = vpop.f32.mrf.mxu0
    %v1354 = vadd.f32 0.0, %v1353
    %v1355 = vpop.f32.mrf.mxu0
    %1356 = vdwg.mxu0
    %s1357 = scalar_lea.vmem %s3, 128
    %1358 = vst [vmem:[%s1357] sm:$0xff] %v1351
    %1359 = vst [vmem:[%s1357 + $0x8] sm:$0xff] %v1354
    %s1360 = scalar_lea.vmem [#allocation2], 72
    %v1361 = vld [vmem:[%s1360] sm:$0xf]
    %v1362 = vld [vmem:[%s1360 + $0x4] sm:$0xf]
    %v1365 = vunpack.c.l.b16 %v1361
    %v1366 = vunpack.c.l.b16 %v1362
    %v1367 = vpack.c.b16 %v1366, %v1365
    %1369 = vmatprep.subr.bf16.mxu0 0
    %1370 = vmatpush1.bf16.msra.mxu0 0
    %1371 = vmatprep.subr.bf16.mxu0 0
    %1372 = vmatpush1.bf16.msra.mxu0 0
    %1373 = vmatprep.subr.bf16.mxu0 0
    %1374 = vmatpush1.bf16.msra.mxu0 0
    %1375 = vmatprep.subr.bf16.mxu0 0
    %1376 = vmatpush1.bf16.msra.mxu0 0
    %1377 = vmatprep.subr.bf16.mxu0 0
    %1378 = vmatpush1.bf16.msra.mxu0 0
    %1379 = vmatprep.subr.bf16.mxu0 0
    %1380 = vmatpush1.bf16.msra.mxu0 0
    %1381 = vmatprep.subr.bf16.mxu0 0
    %1382 = vmatpush1.bf16.msra.mxu0 0
    %1383 = vmatprep.subr.bf16.mxu0 0
    %1384 = vmatpush1.bf16.msra.mxu0 %v1367
    %1385 = vmatprep.subr.bf16.mxu0 0
    %1386 = vmatpush2.bf16.msra.mxu0 0
    %1387 = vmatprep.subr.bf16.mxu0 0
    %1388 = vmatpush2.bf16.msra.mxu0 0
    %1389 = vmatprep.subr.bf16.mxu0 0
    %1390 = vmatpush2.bf16.msra.mxu0 0
    %1391 = vmatprep.subr.bf16.mxu0 0
    %1392 = vmatpush2.bf16.msra.mxu0 0
    %1393 = vmatprep.subr.bf16.mxu0 0
    %1394 = vmatpush2.bf16.msra.mxu0 0
    %1395 = vmatprep.subr.bf16.mxu0 0
    %1396 = vmatpush2.bf16.msra.mxu0 0
    %1397 = vmatprep.subr.bf16.mxu0 0
    %1398 = vmatpush2.bf16.msra.mxu0 0
    %1399 = vmatprep.subr.bf16.mxu0 0
    %1400 = vmatpush2.bf16.msra.mxu0 0
    %1401 = vmatprep.mubr.bf16.mxu0 0
    %1402 = vmatmul.mubr.bf16.gmra.mxu0 %v891
    %v1403 = vpop.f32.mrf.mxu0
    %v1404 = vadd.f32 0.0, %v1403
    %v1405 = vpop.f32.mrf.mxu0
    %v1406 = vpop.f32.mrf.mxu0
    %v1407 = vadd.f32 0.0, %v1406
    %v1408 = vpop.f32.mrf.mxu0
    %1409 = vdwg.mxu0
    %s1410 = scalar_lea.vmem %s3, 144
    %1411 = vst [vmem:[%s1410] sm:$0xff] %v1404
    %1412 = vst [vmem:[%s1410 + $0x8] sm:$0xff] %v1407
    %s1413 = scalar_lea.vmem [#allocation2], 80
    %v1414 = vld [vmem:[%s1413] sm:$0xf]
    %v1415 = vld [vmem:[%s1413 + $0x4] sm:$0xf]
    %v1418 = vunpack.c.l.b16 %v1414
    %v1419 = vunpack.c.l.b16 %v1415
    %v1420 = vpack.c.b16 %v1419, %v1418
    %1422 = vmatprep.subr.bf16.mxu0 0
    %1423 = vmatpush1.bf16.msra.mxu0 0
    %1424 = vmatprep.subr.bf16.mxu0 0
    %1425 = vmatpush1.bf16.msra.mxu0 0
    %1426 = vmatprep.subr.bf16.mxu0 0
    %1427 = vmatpush1.bf16.msra.mxu0 0
    %1428 = vmatprep.subr.bf16.mxu0 0
    %1429 = vmatpush1.bf16.msra.mxu0 0
    %1430 = vmatprep.subr.bf16.mxu0 0
    %1431 = vmatpush1.bf16.msra.mxu0 0
    %1432 = vmatprep.subr.bf16.mxu0 0
    %1433 = vmatpush1.bf16.msra.mxu0 0
    %1434 = vmatprep.subr.bf16.mxu0 0
    %1435 = vmatpush1.bf16.msra.mxu0 0
    %1436 = vmatprep.subr.bf16.mxu0 0
    %1437 = vmatpush1.bf16.msra.mxu0 %v1420
    %1438 = vmatprep.subr.bf16.mxu0 0
    %1439 = vmatpush2.bf16.msra.mxu0 0
    %1440 = vmatprep.subr.bf16.mxu0 0
    %1441 = vmatpush2.bf16.msra.mxu0 0
    %1442 = vmatprep.subr.bf16.mxu0 0
    %1443 = vmatpush2.bf16.msra.mxu0 0
    %1444 = vmatprep.subr.bf16.mxu0 0
    %1445 = vmatpush2.bf16.msra.mxu0 0
    %1446 = vmatprep.subr.bf16.mxu0 0
    %1447 = vmatpush2.bf16.msra.mxu0 0
    %1448 = vmatprep.subr.bf16.mxu0 0
    %1449 = vmatpush2.bf16.msra.mxu0 0
    %1450 = vmatprep.subr.bf16.mxu0 0
    %1451 = vmatpush2.bf16.msra.mxu0 0
    %1452 = vmatprep.subr.bf16.mxu0 0
    %1453 = vmatpush2.bf16.msra.mxu0 0
    %1454 = vmatprep.mubr.bf16.mxu0 0
    %1455 = vmatmul.mubr.bf16.gmra.mxu0 %v891
    %v1456 = vpop.f32.mrf.mxu0
    %v1457 = vadd.f32 0.0, %v1456
    %v1458 = vpop.f32.mrf.mxu0
    %v1459 = vpop.f32.mrf.mxu0
    %v1460 = vadd.f32 0.0, %v1459
    %v1461 = vpop.f32.mrf.mxu0
    %1462 = vdwg.mxu0
    %s1463 = scalar_lea.vmem %s3, 160
    %1464 = vst [vmem:[%s1463] sm:$0xff] %v1457
    %1465 = vst [vmem:[%s1463 + $0x8] sm:$0xff] %v1460
    %s1466 = scalar_lea.vmem [#allocation2], 88
    %v1467 = vld [vmem:[%s1466] sm:$0xf]
    %v1468 = vld [vmem:[%s1466 + $0x4] sm:$0xf]
    %v1471 = vunpack.c.l.b16 %v1467
    %v1472 = vunpack.c.l.b16 %v1468
    %v1473 = vpack.c.b16 %v1472, %v1471
    %1475 = vmatprep.subr.bf16.mxu0 0
    %1476 = vmatpush1.bf16.msra.mxu0 0
    %1477 = vmatprep.subr.bf16.mxu0 0
    %1478 = vmatpush1.bf16.msra.mxu0 0
    %1479 = vmatprep.subr.bf16.mxu0 0
    %1480 = vmatpush1.bf16.msra.mxu0 0
    %1481 = vmatprep.subr.bf16.mxu0 0
    %1482 = vmatpush1.bf16.msra.mxu0 0
    %1483 = vmatprep.subr.bf16.mxu0 0
    %1484 = vmatpush1.bf16.msra.mxu0 0
    %1485 = vmatprep.subr.bf16.mxu0 0
    %1486 = vmatpush1.bf16.msra.mxu0 0
    %1487 = vmatprep.subr.bf16.mxu0 0
    %1488 = vmatpush1.bf16.msra.mxu0 0
    %1489 = vmatprep.subr.bf16.mxu0 0
    %1490 = vmatpush1.bf16.msra.mxu0 %v1473
    %1491 = vmatprep.subr.bf16.mxu0 0
    %1492 = vmatpush2.bf16.msra.mxu0 0
    %1493 = vmatprep.subr.bf16.mxu0 0
    %1494 = vmatpush2.bf16.msra.mxu0 0
    %1495 = vmatprep.subr.bf16.mxu0 0
    %1496 = vmatpush2.bf16.msra.mxu0 0
    %1497 = vmatprep.subr.bf16.mxu0 0
    %1498 = vmatpush2.bf16.msra.mxu0 0
    %1499 = vmatprep.subr.bf16.mxu0 0
    %1500 = vmatpush2.bf16.msra.mxu0 0
    %1501 = vmatprep.subr.bf16.mxu0 0
    %1502 = vmatpush2.bf16.msra.mxu0 0
    %1503 = vmatprep.subr.bf16.mxu0 0
    %1504 = vmatpush2.bf16.msra.mxu0 0
    %1505 = vmatprep.subr.bf16.mxu0 0
    %1506 = vmatpush2.bf16.msra.mxu0 0
    %1507 = vmatprep.mubr.bf16.mxu0 0
    %1508 = vmatmul.mubr.bf16.gmra.mxu0 %v891
    %v1509 = vpop.f32.mrf.mxu0
    %v1510 = vadd.f32 0.0, %v1509
    %v1511 = vpop.f32.mrf.mxu0
    %v1512 = vpop.f32.mrf.mxu0
    %v1513 = vadd.f32 0.0, %v1512
    %v1514 = vpop.f32.mrf.mxu0
    %1515 = vdwg.mxu0
    %s1516 = scalar_lea.vmem %s3, 176
    %1517 = vst [vmem:[%s1516] sm:$0xff] %v1510
    %1518 = vst [vmem:[%s1516 + $0x8] sm:$0xff] %v1513
    %s1519 = scalar_lea.vmem [#allocation2], 96
    %v1520 = vld [vmem:[%s1519] sm:$0xf]
    %v1521 = vld [vmem:[%s1519 + $0x4] sm:$0xf]
    %v1524 = vunpack.c.l.b16 %v1520
    %v1525 = vunpack.c.l.b16 %v1521
    %v1526 = vpack.c.b16 %v1525, %v1524
    %1528 = vmatprep.subr.bf16.mxu0 0
    %1529 = vmatpush1.bf16.msra.mxu0 0
    %1530 = vmatprep.subr.bf16.mxu0 0
    %1531 = vmatpush1.bf16.msra.mxu0 0
    %1532 = vmatprep.subr.bf16.mxu0 0
    %1533 = vmatpush1.bf16.msra.mxu0 0
    %1534 = vmatprep.subr.bf16.mxu0 0
    %1535 = vmatpush1.bf16.msra.mxu0 0
    %1536 = vmatprep.subr.bf16.mxu0 0
    %1537 = vmatpush1.bf16.msra.mxu0 0
    %1538 = vmatprep.subr.bf16.mxu0 0
    %1539 = vmatpush1.bf16.msra.mxu0 0
    %1540 = vmatprep.subr.bf16.mxu0 0
    %1541 = vmatpush1.bf16.msra.mxu0 0
    %1542 = vmatprep.subr.bf16.mxu0 0
    %1543 = vmatpush1.bf16.msra.mxu0 %v1526
    %1544 = vmatprep.subr.bf16.mxu0 0
    %1545 = vmatpush2.bf16.msra.mxu0 0
    %1546 = vmatprep.subr.bf16.mxu0 0
    %1547 = vmatpush2.bf16.msra.mxu0 0
    %1548 = vmatprep.subr.bf16.mxu0 0
    %1549 = vmatpush2.bf16.msra.mxu0 0
    %1550 = vmatprep.subr.bf16.mxu0 0
    %1551 = vmatpush2.bf16.msra.mxu0 0
    %1552 = vmatprep.subr.bf16.mxu0 0
    %1553 = vmatpush2.bf16.msra.mxu0 0
    %1554 = vmatprep.subr.bf16.mxu0 0
    %1555 = vmatpush2.bf16.msra.mxu0 0
    %1556 = vmatprep.subr.bf16.mxu0 0
    %1557 = vmatpush2.bf16.msra.mxu0 0
    %1558 = vmatprep.subr.bf16.mxu0 0
    %1559 = vmatpush2.bf16.msra.mxu0 0
    %1560 = vmatprep.mubr.bf16.mxu0 0
    %1561 = vmatmul.mubr.bf16.gmra.mxu0 %v891
    %v1562 = vpop.f32.mrf.mxu0
    %v1563 = vadd.f32 0.0, %v1562
    %v1564 = vpop.f32.mrf.mxu0
    %v1565 = vpop.f32.mrf.mxu0
    %v1566 = vadd.f32 0.0, %v1565
    %v1567 = vpop.f32.mrf.mxu0
    %1568 = vdwg.mxu0
    %s1569 = scalar_lea.vmem %s3, 192
    %1570 = vst [vmem:[%s1569] sm:$0xff] %v1563
    %1571 = vst [vmem:[%s1569 + $0x8] sm:$0xff] %v1566
    %s1572 = scalar_lea.vmem [#allocation2], 104
    %v1573 = vld [vmem:[%s1572] sm:$0xf]
    %v1574 = vld [vmem:[%s1572 + $0x4] sm:$0xf]
    %v1577 = vunpack.c.l.b16 %v1573
    %v1578 = vunpack.c.l.b16 %v1574
    %v1579 = vpack.c.b16 %v1578, %v1577
    %1581 = vmatprep.subr.bf16.mxu0 0
    %1582 = vmatpush1.bf16.msra.mxu0 0
    %1583 = vmatprep.subr.bf16.mxu0 0
    %1584 = vmatpush1.bf16.msra.mxu0 0
    %1585 = vmatprep.subr.bf16.mxu0 0
    %1586 = vmatpush1.bf16.msra.mxu0 0
    %1587 = vmatprep.subr.bf16.mxu0 0
    %1588 = vmatpush1.bf16.msra.mxu0 0
    %1589 = vmatprep.subr.bf16.mxu0 0
    %1590 = vmatpush1.bf16.msra.mxu0 0
    %1591 = vmatprep.subr.bf16.mxu0 0
    %1592 = vmatpush1.bf16.msra.mxu0 0
    %1593 = vmatprep.subr.bf16.mxu0 0
    %1594 = vmatpush1.bf16.msra.mxu0 0
    %1595 = vmatprep.subr.bf16.mxu0 0
    %1596 = vmatpush1.bf16.msra.mxu0 %v1579
    %1597 = vmatprep.subr.bf16.mxu0 0
    %1598 = vmatpush2.bf16.msra.mxu0 0
    %1599 = vmatprep.subr.bf16.mxu0 0
    %1600 = vmatpush2.bf16.msra.mxu0 0
    %1601 = vmatprep.subr.bf16.mxu0 0
    %1602 = vmatpush2.bf16.msra.mxu0 0
    %1603 = vmatprep.subr.bf16.mxu0 0
    %1604 = vmatpush2.bf16.msra.mxu0 0
    %1605 = vmatprep.subr.bf16.mxu0 0
    %1606 = vmatpush2.bf16.msra.mxu0 0
    %1607 = vmatprep.subr.bf16.mxu0 0
    %1608 = vmatpush2.bf16.msra.mxu0 0
    %1609 = vmatprep.subr.bf16.mxu0 0
    %1610 = vmatpush2.bf16.msra.mxu0 0
    %1611 = vmatprep.subr.bf16.mxu0 0
    %1612 = vmatpush2.bf16.msra.mxu0 0
    %1613 = vmatprep.mubr.bf16.mxu0 0
    %1614 = vmatmul.mubr.bf16.gmra.mxu0 %v891
    %v1615 = vpop.f32.mrf.mxu0
    %v1616 = vadd.f32 0.0, %v1615
    %v1617 = vpop.f32.mrf.mxu0
    %v1618 = vpop.f32.mrf.mxu0
    %v1619 = vadd.f32 0.0, %v1618
    %v1620 = vpop.f32.mrf.mxu0
    %1621 = vdwg.mxu0
    %s1622 = scalar_lea.vmem %s3, 208
    %1623 = vst [vmem:[%s1622] sm:$0xff] %v1616
    %1624 = vst [vmem:[%s1622 + $0x8] sm:$0xff] %v1619
    %s1625 = scalar_lea.vmem [#allocation2], 112
    %v1626 = vld [vmem:[%s1625] sm:$0xf]
    %v1627 = vld [vmem:[%s1625 + $0x4] sm:$0xf]
    %v1630 = vunpack.c.l.b16 %v1626
    %v1631 = vunpack.c.l.b16 %v1627
    %v1632 = vpack.c.b16 %v1631, %v1630
    %1634 = vmatprep.subr.bf16.mxu0 0
    %1635 = vmatpush1.bf16.msra.mxu0 0
    %1636 = vmatprep.subr.bf16.mxu0 0
    %1637 = vmatpush1.bf16.msra.mxu0 0
    %1638 = vmatprep.subr.bf16.mxu0 0
    %1639 = vmatpush1.bf16.msra.mxu0 0
    %1640 = vmatprep.subr.bf16.mxu0 0
    %1641 = vmatpush1.bf16.msra.mxu0 0
    %1642 = vmatprep.subr.bf16.mxu0 0
    %1643 = vmatpush1.bf16.msra.mxu0 0
    %1644 = vmatprep.subr.bf16.mxu0 0
    %1645 = vmatpush1.bf16.msra.mxu0 0
    %1646 = vmatprep.subr.bf16.mxu0 0
    %1647 = vmatpush1.bf16.msra.mxu0 0
    %1648 = vmatprep.subr.bf16.mxu0 0
    %1649 = vmatpush1.bf16.msra.mxu0 %v1632
    %1650 = vmatprep.subr.bf16.mxu0 0
    %1651 = vmatpush2.bf16.msra.mxu0 0
    %1652 = vmatprep.subr.bf16.mxu0 0
    %1653 = vmatpush2.bf16.msra.mxu0 0
    %1654 = vmatprep.subr.bf16.mxu0 0
    %1655 = vmatpush2.bf16.msra.mxu0 0
    %1656 = vmatprep.subr.bf16.mxu0 0
    %1657 = vmatpush2.bf16.msra.mxu0 0
    %1658 = vmatprep.subr.bf16.mxu0 0
    %1659 = vmatpush2.bf16.msra.mxu0 0
    %1660 = vmatprep.subr.bf16.mxu0 0
    %1661 = vmatpush2.bf16.msra.mxu0 0
    %1662 = vmatprep.subr.bf16.mxu0 0
    %1663 = vmatpush2.bf16.msra.mxu0 0
    %1664 = vmatprep.subr.bf16.mxu0 0
    %1665 = vmatpush2.bf16.msra.mxu0 0
    %1666 = vmatprep.mubr.bf16.mxu0 0
    %1667 = vmatmul.mubr.bf16.gmra.mxu0 %v891
    %v1668 = vpop.f32.mrf.mxu0
    %v1669 = vadd.f32 0.0, %v1668
    %v1670 = vpop.f32.mrf.mxu0
    %v1671 = vpop.f32.mrf.mxu0
    %v1672 = vadd.f32 0.0, %v1671
    %v1673 = vpop.f32.mrf.mxu0
    %1674 = vdwg.mxu0
    %s1675 = scalar_lea.vmem %s3, 224
    %1676 = vst [vmem:[%s1675] sm:$0xff] %v1669
    %1677 = vst [vmem:[%s1675 + $0x8] sm:$0xff] %v1672
    %s1678 = scalar_lea.vmem [#allocation2], 120
    %v1679 = vld [vmem:[%s1678] sm:$0xf]
    %v1680 = vld [vmem:[%s1678 + $0x4] sm:$0xf]
    %v1683 = vunpack.c.l.b16 %v1679
    %v1684 = vunpack.c.l.b16 %v1680
    %v1685 = vpack.c.b16 %v1684, %v1683
    %1687 = vmatprep.subr.bf16.mxu0 0
    %1688 = vmatpush1.bf16.msra.mxu0 0
    %1689 = vmatprep.subr.bf16.mxu0 0
    %1690 = vmatpush1.bf16.msra.mxu0 0
    %1691 = vmatprep.subr.bf16.mxu0 0
    %1692 = vmatpush1.bf16.msra.mxu0 0
    %1693 = vmatprep.subr.bf16.mxu0 0
    %1694 = vmatpush1.bf16.msra.mxu0 0
    %1695 = vmatprep.subr.bf16.mxu0 0
    %1696 = vmatpush1.bf16.msra.mxu0 0
    %1697 = vmatprep.subr.bf16.mxu0 0
    %1698 = vmatpush1.bf16.msra.mxu0 0
    %1699 = vmatprep.subr.bf16.mxu0 0
    %1700 = vmatpush1.bf16.msra.mxu0 0
    %1701 = vmatprep.subr.bf16.mxu0 0
    %1702 = vmatpush1.bf16.msra.mxu0 %v1685
    %1703 = vmatprep.subr.bf16.mxu0 0
    %1704 = vmatpush2.bf16.msra.mxu0 0
    %1705 = vmatprep.subr.bf16.mxu0 0
    %1706 = vmatpush2.bf16.msra.mxu0 0
    %1707 = vmatprep.subr.bf16.mxu0 0
    %1708 = vmatpush2.bf16.msra.mxu0 0
    %1709 = vmatprep.subr.bf16.mxu0 0
    %1710 = vmatpush2.bf16.msra.mxu0 0
    %1711 = vmatprep.subr.bf16.mxu0 0
    %1712 = vmatpush2.bf16.msra.mxu0 0
    %1713 = vmatprep.subr.bf16.mxu0 0
    %1714 = vmatpush2.bf16.msra.mxu0 0
    %1715 = vmatprep.subr.bf16.mxu0 0
    %1716 = vmatpush2.bf16.msra.mxu0 0
    %1717 = vmatprep.subr.bf16.mxu0 0
    %1718 = vmatpush2.bf16.msra.mxu0 0
    %1719 = vmatprep.mubr.bf16.mxu0 0
    %1720 = vmatmul.mubr.bf16.gmra.mxu0 %v891
    %v1721 = vpop.f32.mrf.mxu0
    %v1722 = vadd.f32 0.0, %v1721
    %v1723 = vpop.f32.mrf.mxu0
    %v1724 = vpop.f32.mrf.mxu0
    %v1725 = vadd.f32 0.0, %v1724
    %v1726 = vpop.f32.mrf.mxu0
    %1727 = vdwg.mxu0
    %s1728 = scalar_lea.vmem %s3, 240
    %1729 = vst [vmem:[%s1728] sm:$0xff] %v1722
    %1730 = vst [vmem:[%s1728 + $0x8] sm:$0xff] %v1725
    %s1731 = scalar_lea.vmem [#allocation2], 128
    %v1732 = vld [vmem:[%s1731] sm:$0xf]
    %v1733 = vld [vmem:[%s1731 + $0x4] sm:$0xf]
    %v1736 = vunpack.c.l.b16 %v1732
    %v1737 = vunpack.c.l.b16 %v1733
    %v1738 = vpack.c.b16 %v1737, %v1736
    %1740 = vmatprep.subr.bf16.mxu0 0
    %1741 = vmatpush1.bf16.msra.mxu0 0
    %1742 = vmatprep.subr.bf16.mxu0 0
    %1743 = vmatpush1.bf16.msra.mxu0 0
    %1744 = vmatprep.subr.bf16.mxu0 0
    %1745 = vmatpush1.bf16.msra.mxu0 0
    %1746 = vmatprep.subr.bf16.mxu0 0
    %1747 = vmatpush1.bf16.msra.mxu0 0
    %1748 = vmatprep.subr.bf16.mxu0 0
    %1749 = vmatpush1.bf16.msra.mxu0 0
    %1750 = vmatprep.subr.bf16.mxu0 0
    %1751 = vmatpush1.bf16.msra.mxu0 0
    %1752 = vmatprep.subr.bf16.mxu0 0
    %1753 = vmatpush1.bf16.msra.mxu0 0
    %1754 = vmatprep.subr.bf16.mxu0 0
    %1755 = vmatpush1.bf16.msra.mxu0 %v1738
    %1756 = vmatprep.subr.bf16.mxu0 0
    %1757 = vmatpush2.bf16.msra.mxu0 0
    %1758 = vmatprep.subr.bf16.mxu0 0
    %1759 = vmatpush2.bf16.msra.mxu0 0
    %1760 = vmatprep.subr.bf16.mxu0 0
    %1761 = vmatpush2.bf16.msra.mxu0 0
    %1762 = vmatprep.subr.bf16.mxu0 0
    %1763 = vmatpush2.bf16.msra.mxu0 0
    %1764 = vmatprep.subr.bf16.mxu0 0
    %1765 = vmatpush2.bf16.msra.mxu0 0
    %1766 = vmatprep.subr.bf16.mxu0 0
    %1767 = vmatpush2.bf16.msra.mxu0 0
    %1768 = vmatprep.subr.bf16.mxu0 0
    %1769 = vmatpush2.bf16.msra.mxu0 0
    %1770 = vmatprep.subr.bf16.mxu0 0
    %1771 = vmatpush2.bf16.msra.mxu0 0
    %1772 = vmatprep.mubr.bf16.mxu0 0
    %1773 = vmatmul.mubr.bf16.gmra.mxu0 %v891
    %v1774 = vpop.f32.mrf.mxu0
    %v1775 = vadd.f32 0.0, %v1774
    %v1776 = vpop.f32.mrf.mxu0
    %v1777 = vpop.f32.mrf.mxu0
    %v1778 = vadd.f32 0.0, %v1777
    %v1779 = vpop.f32.mrf.mxu0
    %1780 = vdwg.mxu0
    %s1781 = scalar_lea.vmem %s3, 256
    %1782 = vst [vmem:[%s1781] sm:$0xff] %v1775
    %1783 = vst [vmem:[%s1781 + $0x8] sm:$0xff] %v1778
    %s1784 = scalar_lea.vmem [#allocation2], 136
    %v1785 = vld [vmem:[%s1784] sm:$0xf]
    %v1786 = vld [vmem:[%s1784 + $0x4] sm:$0xf]
    %v1789 = vunpack.c.l.b16 %v1785
    %v1790 = vunpack.c.l.b16 %v1786
    %v1791 = vpack.c.b16 %v1790, %v1789
    %1793 = vmatprep.subr.bf16.mxu0 0
    %1794 = vmatpush1.bf16.msra.mxu0 0
    %1795 = vmatprep.subr.bf16.mxu0 0
    %1796 = vmatpush1.bf16.msra.mxu0 0
    %1797 = vmatprep.subr.bf16.mxu0 0
    %1798 = vmatpush1.bf16.msra.mxu0 0
    %1799 = vmatprep.subr.bf16.mxu0 0
    %1800 = vmatpush1.bf16.msra.mxu0 0
    %1801 = vmatprep.subr.bf16.mxu0 0
    %1802 = vmatpush1.bf16.msra.mxu0 0
    %1803 = vmatprep.subr.bf16.mxu0 0
    %1804 = vmatpush1.bf16.msra.mxu0 0
    %1805 = vmatprep.subr.bf16.mxu0 0
    %1806 = vmatpush1.bf16.msra.mxu0 0
    %1807 = vmatprep.subr.bf16.mxu0 0
    %1808 = vmatpush1.bf16.msra.mxu0 %v1791
    %1809 = vmatprep.subr.bf16.mxu0 0
    %1810 = vmatpush2.bf16.msra.mxu0 0
    %1811 = vmatprep.subr.bf16.mxu0 0
    %1812 = vmatpush2.bf16.msra.mxu0 0
    %1813 = vmatprep.subr.bf16.mxu0 0
    %1814 = vmatpush2.bf16.msra.mxu0 0
    %1815 = vmatprep.subr.bf16.mxu0 0
    %1816 = vmatpush2.bf16.msra.mxu0 0
    %1817 = vmatprep.subr.bf16.mxu0 0
    %1818 = vmatpush2.bf16.msra.mxu0 0
    %1819 = vmatprep.subr.bf16.mxu0 0
    %1820 = vmatpush2.bf16.msra.mxu0 0
    %1821 = vmatprep.subr.bf16.mxu0 0
    %1822 = vmatpush2.bf16.msra.mxu0 0
    %1823 = vmatprep.subr.bf16.mxu0 0
    %1824 = vmatpush2.bf16.msra.mxu0 0
    %1825 = vmatprep.mubr.bf16.mxu0 0
    %1826 = vmatmul.mubr.bf16.gmra.mxu0 %v891
    %v1827 = vpop.f32.mrf.mxu0
    %v1828 = vadd.f32 0.0, %v1827
    %v1829 = vpop.f32.mrf.mxu0
    %v1830 = vpop.f32.mrf.mxu0
    %v1831 = vadd.f32 0.0, %v1830
    %v1832 = vpop.f32.mrf.mxu0
    %1833 = vdwg.mxu0
    %s1834 = scalar_lea.vmem %s3, 272
    %1835 = vst [vmem:[%s1834] sm:$0xff] %v1828
    %1836 = vst [vmem:[%s1834 + $0x8] sm:$0xff] %v1831
    %s1837 = scalar_lea.vmem [#allocation2], 144
    %v1838 = vld [vmem:[%s1837] sm:$0xf]
    %v1839 = vld [vmem:[%s1837 + $0x4] sm:$0xf]
    %v1842 = vunpack.c.l.b16 %v1838
    %v1843 = vunpack.c.l.b16 %v1839
    %v1844 = vpack.c.b16 %v1843, %v1842
    %1846 = vmatprep.subr.bf16.mxu0 0
    %1847 = vmatpush1.bf16.msra.mxu0 0
    %1848 = vmatprep.subr.bf16.mxu0 0
    %1849 = vmatpush1.bf16.msra.mxu0 0
    %1850 = vmatprep.subr.bf16.mxu0 0
    %1851 = vmatpush1.bf16.msra.mxu0 0
    %1852 = vmatprep.subr.bf16.mxu0 0
    %1853 = vmatpush1.bf16.msra.mxu0 0
    %1854 = vmatprep.subr.bf16.mxu0 0
    %1855 = vmatpush1.bf16.msra.mxu0 0
    %1856 = vmatprep.subr.bf16.mxu0 0
    %1857 = vmatpush1.bf16.msra.mxu0 0
    %1858 = vmatprep.subr.bf16.mxu0 0
    %1859 = vmatpush1.bf16.msra.mxu0 0
    %1860 = vmatprep.subr.bf16.mxu0 0
    %1861 = vmatpush1.bf16.msra.mxu0 %v1844
    %1862 = vmatprep.subr.bf16.mxu0 0
    %1863 = vmatpush2.bf16.msra.mxu0 0
    %1864 = vmatprep.subr.bf16.mxu0 0
    %1865 = vmatpush2.bf16.msra.mxu0 0
    %1866 = vmatprep.subr.bf16.mxu0 0
    %1867 = vmatpush2.bf16.msra.mxu0 0
    %1868 = vmatprep.subr.bf16.mxu0 0
    %1869 = vmatpush2.bf16.msra.mxu0 0
    %1870 = vmatprep.subr.bf16.mxu0 0
    %1871 = vmatpush2.bf16.msra.mxu0 0
    %1872 = vmatprep.subr.bf16.mxu0 0
    %1873 = vmatpush2.bf16.msra.mxu0 0
    %1874 = vmatprep.subr.bf16.mxu0 0
    %1875 = vmatpush2.bf16.msra.mxu0 0
    %1876 = vmatprep.subr.bf16.mxu0 0
    %1877 = vmatpush2.bf16.msra.mxu0 0
    %1878 = vmatprep.mubr.bf16.mxu0 0
    %1879 = vmatmul.mubr.bf16.gmra.mxu0 %v891
    %v1880 = vpop.f32.mrf.mxu0
    %v1881 = vadd.f32 0.0, %v1880
    %v1882 = vpop.f32.mrf.mxu0
    %v1883 = vpop.f32.mrf.mxu0
    %v1884 = vadd.f32 0.0, %v1883
    %v1885 = vpop.f32.mrf.mxu0
    %1886 = vdwg.mxu0
    %s1887 = scalar_lea.vmem %s3, 288
    %1888 = vst [vmem:[%s1887] sm:$0xff] %v1881
    %1889 = vst [vmem:[%s1887 + $0x8] sm:$0xff] %v1884
    %s1890 = scalar_lea.vmem [#allocation2], 152
    %v1891 = vld [vmem:[%s1890] sm:$0xf]
    %v1892 = vld [vmem:[%s1890 + $0x4] sm:$0xf]
    %v1895 = vunpack.c.l.b16 %v1891
    %v1896 = vunpack.c.l.b16 %v1892
    %v1897 = vpack.c.b16 %v1896, %v1895
    %1899 = vmatprep.subr.bf16.mxu0 0
    %1900 = vmatpush1.bf16.msra.mxu0 0
    %1901 = vmatprep.subr.bf16.mxu0 0
    %1902 = vmatpush1.bf16.msra.mxu0 0
    %1903 = vmatprep.subr.bf16.mxu0 0
    %1904 = vmatpush1.bf16.msra.mxu0 0
    %1905 = vmatprep.subr.bf16.mxu0 0
    %1906 = vmatpush1.bf16.msra.mxu0 0
    %1907 = vmatprep.subr.bf16.mxu0 0
    %1908 = vmatpush1.bf16.msra.mxu0 0
    %1909 = vmatprep.subr.bf16.mxu0 0
    %1910 = vmatpush1.bf16.msra.mxu0 0
    %1911 = vmatprep.subr.bf16.mxu0 0
    %1912 = vmatpush1.bf16.msra.mxu0 0
    %1913 = vmatprep.subr.bf16.mxu0 0
    %1914 = vmatpush1.bf16.msra.mxu0 %v1897
    %1915 = vmatprep.subr.bf16.mxu0 0
    %1916 = vmatpush2.bf16.msra.mxu0 0
    %1917 = vmatprep.subr.bf16.mxu0 0
    %1918 = vmatpush2.bf16.msra.mxu0 0
    %1919 = vmatprep.subr.bf16.mxu0 0
    %1920 = vmatpush2.bf16.msra.mxu0 0
    %1921 = vmatprep.subr.bf16.mxu0 0
    %1922 = vmatpush2.bf16.msra.mxu0 0
    %1923 = vmatprep.subr.bf16.mxu0 0
    %1924 = vmatpush2.bf16.msra.mxu0 0
    %1925 = vmatprep.subr.bf16.mxu0 0
    %1926 = vmatpush2.bf16.msra.mxu0 0
    %1927 = vmatprep.subr.bf16.mxu0 0
    %1928 = vmatpush2.bf16.msra.mxu0 0
    %1929 = vmatprep.subr.bf16.mxu0 0
    %1930 = vmatpush2.bf16.msra.mxu0 0
    %1931 = vmatprep.mubr.bf16.mxu0 0
    %1932 = vmatmul.mubr.bf16.gmra.mxu0 %v891
    %v1933 = vpop.f32.mrf.mxu0
    %v1934 = vadd.f32 0.0, %v1933
    %v1935 = vpop.f32.mrf.mxu0
    %v1936 = vpop.f32.mrf.mxu0
    %v1937 = vadd.f32 0.0, %v1936
    %v1938 = vpop.f32.mrf.mxu0
    %1939 = vdwg.mxu0
    %s1940 = scalar_lea.vmem %s3, 304
    %1941 = vst [vmem:[%s1940] sm:$0xff] %v1934
    %1942 = vst [vmem:[%s1940 + $0x8] sm:$0xff] %v1937
    %s1943 = scalar_lea.vmem [#allocation2], 160
    %v1944 = vld [vmem:[%s1943] sm:$0xf]
    %v1945 = vld [vmem:[%s1943 + $0x4] sm:$0xf]
    %v1948 = vunpack.c.l.b16 %v1944
    %v1949 = vunpack.c.l.b16 %v1945
    %v1950 = vpack.c.b16 %v1949, %v1948
    %1952 = vmatprep.subr.bf16.mxu0 0
    %1953 = vmatpush1.bf16.msra.mxu0 0
    %1954 = vmatprep.subr.bf16.mxu0 0
    %1955 = vmatpush1.bf16.msra.mxu0 0
    %1956 = vmatprep.subr.bf16.mxu0 0
    %1957 = vmatpush1.bf16.msra.mxu0 0
    %1958 = vmatprep.subr.bf16.mxu0 0
    %1959 = vmatpush1.bf16.msra.mxu0 0
    %1960 = vmatprep.subr.bf16.mxu0 0
    %1961 = vmatpush1.bf16.msra.mxu0 0
    %1962 = vmatprep.subr.bf16.mxu0 0
    %1963 = vmatpush1.bf16.msra.mxu0 0
    %1964 = vmatprep.subr.bf16.mxu0 0
    %1965 = vmatpush1.bf16.msra.mxu0 0
    %1966 = vmatprep.subr.bf16.mxu0 0
    %1967 = vmatpush1.bf16.msra.mxu0 %v1950
    %1968 = vmatprep.subr.bf16.mxu0 0
    %1969 = vmatpush2.bf16.msra.mxu0 0
    %1970 = vmatprep.subr.bf16.mxu0 0
    %1971 = vmatpush2.bf16.msra.mxu0 0
    %1972 = vmatprep.subr.bf16.mxu0 0
    %1973 = vmatpush2.bf16.msra.mxu0 0
    %1974 = vmatprep.subr.bf16.mxu0 0
    %1975 = vmatpush2.bf16.msra.mxu0 0
    %1976 = vmatprep.subr.bf16.mxu0 0
    %1977 = vmatpush2.bf16.msra.mxu0 0
    %1978 = vmatprep.subr.bf16.mxu0 0
    %1979 = vmatpush2.bf16.msra.mxu0 0
    %1980 = vmatprep.subr.bf16.mxu0 0
    %1981 = vmatpush2.bf16.msra.mxu0 0
    %1982 = vmatprep.subr.bf16.mxu0 0
    %1983 = vmatpush2.bf16.msra.mxu0 0
    %1984 = vmatprep.mubr.bf16.mxu0 0
    %1985 = vmatmul.mubr.bf16.gmra.mxu0 %v891
    %v1986 = vpop.f32.mrf.mxu0
    %v1987 = vadd.f32 0.0, %v1986
    %v1988 = vpop.f32.mrf.mxu0
    %v1989 = vpop.f32.mrf.mxu0
    %v1990 = vadd.f32 0.0, %v1989
    %v1991 = vpop.f32.mrf.mxu0
    %1992 = vdwg.mxu0
    %s1993 = scalar_lea.vmem %s3, 320
    %1994 = vst [vmem:[%s1993] sm:$0xff] %v1987
    %1995 = vst [vmem:[%s1993 + $0x8] sm:$0xff] %v1990
    %s1996 = scalar_lea.vmem [#allocation2], 168
    %v1997 = vld [vmem:[%s1996] sm:$0xf]
    %v1998 = vld [vmem:[%s1996 + $0x4] sm:$0xf]
    %v2001 = vunpack.c.l.b16 %v1997
    %v2002 = vunpack.c.l.b16 %v1998
    %v2003 = vpack.c.b16 %v2002, %v2001
    %2005 = vmatprep.subr.bf16.mxu0 0
    %2006 = vmatpush1.bf16.msra.mxu0 0
    %2007 = vmatprep.subr.bf16.mxu0 0
    %2008 = vmatpush1.bf16.msra.mxu0 0
    %2009 = vmatprep.subr.bf16.mxu0 0
    %2010 = vmatpush1.bf16.msra.mxu0 0
    %2011 = vmatprep.subr.bf16.mxu0 0
    %2012 = vmatpush1.bf16.msra.mxu0 0
    %2013 = vmatprep.subr.bf16.mxu0 0
    %2014 = vmatpush1.bf16.msra.mxu0 0
    %2015 = vmatprep.subr.bf16.mxu0 0
    %2016 = vmatpush1.bf16.msra.mxu0 0
    %2017 = vmatprep.subr.bf16.mxu0 0
    %2018 = vmatpush1.bf16.msra.mxu0 0
    %2019 = vmatprep.subr.bf16.mxu0 0
    %2020 = vmatpush1.bf16.msra.mxu0 %v2003
    %2021 = vmatprep.subr.bf16.mxu0 0
    %2022 = vmatpush2.bf16.msra.mxu0 0
    %2023 = vmatprep.subr.bf16.mxu0 0
    %2024 = vmatpush2.bf16.msra.mxu0 0
    %2025 = vmatprep.subr.bf16.mxu0 0
    %2026 = vmatpush2.bf16.msra.mxu0 0
    %2027 = vmatprep.subr.bf16.mxu0 0
    %2028 = vmatpush2.bf16.msra.mxu0 0
    %2029 = vmatprep.subr.bf16.mxu0 0
    %2030 = vmatpush2.bf16.msra.mxu0 0
    %2031 = vmatprep.subr.bf16.mxu0 0
    %2032 = vmatpush2.bf16.msra.mxu0 0
    %2033 = vmatprep.subr.bf16.mxu0 0
    %2034 = vmatpush2.bf16.msra.mxu0 0
    %2035 = vmatprep.subr.bf16.mxu0 0
    %2036 = vmatpush2.bf16.msra.mxu0 0
    %2037 = vmatprep.mubr.bf16.mxu0 0
    %2038 = vmatmul.mubr.bf16.gmra.mxu0 %v891
    %v2039 = vpop.f32.mrf.mxu0
    %v2040 = vadd.f32 0.0, %v2039
    %v2041 = vpop.f32.mrf.mxu0
    %v2042 = vpop.f32.mrf.mxu0
    %v2043 = vadd.f32 0.0, %v2042
    %v2044 = vpop.f32.mrf.mxu0
    %2045 = vdwg.mxu0
    %s2046 = scalar_lea.vmem %s3, 336
    %2047 = vst [vmem:[%s2046] sm:$0xff] %v2040
    %2048 = vst [vmem:[%s2046 + $0x8] sm:$0xff] %v2043
    %s2049 = scalar_lea.vmem [#allocation2], 176
    %v2050 = vld [vmem:[%s2049] sm:$0xf]
    %v2051 = vld [vmem:[%s2049 + $0x4] sm:$0xf]
    %v2054 = vunpack.c.l.b16 %v2050
    %v2055 = vunpack.c.l.b16 %v2051
    %v2056 = vpack.c.b16 %v2055, %v2054
    %2058 = vmatprep.subr.bf16.mxu0 0
    %2059 = vmatpush1.bf16.msra.mxu0 0
    %2060 = vmatprep.subr.bf16.mxu0 0
    %2061 = vmatpush1.bf16.msra.mxu0 0
    %2062 = vmatprep.subr.bf16.mxu0 0
    %2063 = vmatpush1.bf16.msra.mxu0 0
    %2064 = vmatprep.subr.bf16.mxu0 0
    %2065 = vmatpush1.bf16.msra.mxu0 0
    %2066 = vmatprep.subr.bf16.mxu0 0
    %2067 = vmatpush1.bf16.msra.mxu0 0
    %2068 = vmatprep.subr.bf16.mxu0 0
    %2069 = vmatpush1.bf16.msra.mxu0 0
    %2070 = vmatprep.subr.bf16.mxu0 0
    %2071 = vmatpush1.bf16.msra.mxu0 0
    %2072 = vmatprep.subr.bf16.mxu0 0
    %2073 = vmatpush1.bf16.msra.mxu0 %v2056
    %2074 = vmatprep.subr.bf16.mxu0 0
    %2075 = vmatpush2.bf16.msra.mxu0 0
    %2076 = vmatprep.subr.bf16.mxu0 0
    %2077 = vmatpush2.bf16.msra.mxu0 0
    %2078 = vmatprep.subr.bf16.mxu0 0
    %2079 = vmatpush2.bf16.msra.mxu0 0
    %2080 = vmatprep.subr.bf16.mxu0 0
    %2081 = vmatpush2.bf16.msra.mxu0 0
    %2082 = vmatprep.subr.bf16.mxu0 0
    %2083 = vmatpush2.bf16.msra.mxu0 0
    %2084 = vmatprep.subr.bf16.mxu0 0
    %2085 = vmatpush2.bf16.msra.mxu0 0
    %2086 = vmatprep.subr.bf16.mxu0 0
    %2087 = vmatpush2.bf16.msra.mxu0 0
    %2088 = vmatprep.subr.bf16.mxu0 0
    %2089 = vmatpush2.bf16.msra.mxu0 0
    %2090 = vmatprep.mubr.bf16.mxu0 0
    %2091 = vmatmul.mubr.bf16.gmra.mxu0 %v891
    %v2092 = vpop.f32.mrf.mxu0
    %v2093 = vadd.f32 0.0, %v2092
    %v2094 = vpop.f32.mrf.mxu0
    %v2095 = vpop.f32.mrf.mxu0
    %v2096 = vadd.f32 0.0, %v2095
    %v2097 = vpop.f32.mrf.mxu0
    %2098 = vdwg.mxu0
    %s2099 = scalar_lea.vmem %s3, 352
    %2100 = vst [vmem:[%s2099] sm:$0xff] %v2093
    %2101 = vst [vmem:[%s2099 + $0x8] sm:$0xff] %v2096
    %s2102 = scalar_lea.vmem [#allocation2], 184
    %v2103 = vld [vmem:[%s2102] sm:$0xf]
    %v2104 = vld [vmem:[%s2102 + $0x4] sm:$0xf]
    %v2107 = vunpack.c.l.b16 %v2103
    %v2108 = vunpack.c.l.b16 %v2104
    %v2109 = vpack.c.b16 %v2108, %v2107
    %2111 = vmatprep.subr.bf16.mxu0 0
    %2112 = vmatpush1.bf16.msra.mxu0 0
    %2113 = vmatprep.subr.bf16.mxu0 0
    %2114 = vmatpush1.bf16.msra.mxu0 0
    %2115 = vmatprep.subr.bf16.mxu0 0
    %2116 = vmatpush1.bf16.msra.mxu0 0
    %2117 = vmatprep.subr.bf16.mxu0 0
    %2118 = vmatpush1.bf16.msra.mxu0 0
    %2119 = vmatprep.subr.bf16.mxu0 0
    %2120 = vmatpush1.bf16.msra.mxu0 0
    %2121 = vmatprep.subr.bf16.mxu0 0
    %2122 = vmatpush1.bf16.msra.mxu0 0
    %2123 = vmatprep.subr.bf16.mxu0 0
    %2124 = vmatpush1.bf16.msra.mxu0 0
    %2125 = vmatprep.subr.bf16.mxu0 0
    %2126 = vmatpush1.bf16.msra.mxu0 %v2109
    %2127 = vmatprep.subr.bf16.mxu0 0
    %2128 = vmatpush2.bf16.msra.mxu0 0
    %2129 = vmatprep.subr.bf16.mxu0 0
    %2130 = vmatpush2.bf16.msra.mxu0 0
    %2131 = vmatprep.subr.bf16.mxu0 0
    %2132 = vmatpush2.bf16.msra.mxu0 0
    %2133 = vmatprep.subr.bf16.mxu0 0
    %2134 = vmatpush2.bf16.msra.mxu0 0
    %2135 = vmatprep.subr.bf16.mxu0 0
    %2136 = vmatpush2.bf16.msra.mxu0 0
    %2137 = vmatprep.subr.bf16.mxu0 0
    %2138 = vmatpush2.bf16.msra.mxu0 0
    %2139 = vmatprep.subr.bf16.mxu0 0
    %2140 = vmatpush2.bf16.msra.mxu0 0
    %2141 = vmatprep.subr.bf16.mxu0 0
    %2142 = vmatpush2.bf16.msra.mxu0 0
    %2143 = vmatprep.mubr.bf16.mxu0 0
    %2144 = vmatmul.mubr.bf16.gmra.mxu0 %v891
    %v2145 = vpop.f32.mrf.mxu0
    %v2146 = vadd.f32 0.0, %v2145
    %v2147 = vpop.f32.mrf.mxu0
    %v2148 = vpop.f32.mrf.mxu0
    %v2149 = vadd.f32 0.0, %v2148
    %v2150 = vpop.f32.mrf.mxu0
    %2151 = vdwg.mxu0
    %s2152 = scalar_lea.vmem %s3, 368
    %2153 = vst [vmem:[%s2152] sm:$0xff] %v2146
    %2154 = vst [vmem:[%s2152 + $0x8] sm:$0xff] %v2149
    %s2155 = scalar_lea.vmem [#allocation2], 192
    %v2156 = vld [vmem:[%s2155] sm:$0xf]
    %v2157 = vld [vmem:[%s2155 + $0x4] sm:$0xf]
    %v2160 = vunpack.c.l.b16 %v2156
    %v2161 = vunpack.c.l.b16 %v2157
    %v2162 = vpack.c.b16 %v2161, %v2160
    %2164 = vmatprep.subr.bf16.mxu0 0
    %2165 = vmatpush1.bf16.msra.mxu0 0
    %2166 = vmatprep.subr.bf16.mxu0 0
    %2167 = vmatpush1.bf16.msra.mxu0 0
    %2168 = vmatprep.subr.bf16.mxu0 0
    %2169 = vmatpush1.bf16.msra.mxu0 0
    %2170 = vmatprep.subr.bf16.mxu0 0
    %2171 = vmatpush1.bf16.msra.mxu0 0
    %2172 = vmatprep.subr.bf16.mxu0 0
    %2173 = vmatpush1.bf16.msra.mxu0 0
    %2174 = vmatprep.subr.bf16.mxu0 0
    %2175 = vmatpush1.bf16.msra.mxu0 0
    %2176 = vmatprep.subr.bf16.mxu0 0
    %2177 = vmatpush1.bf16.msra.mxu0 0
    %2178 = vmatprep.subr.bf16.mxu0 0
    %2179 = vmatpush1.bf16.msra.mxu0 %v2162
    %2180 = vmatprep.subr.bf16.mxu0 0
    %2181 = vmatpush2.bf16.msra.mxu0 0
    %2182 = vmatprep.subr.bf16.mxu0 0
    %2183 = vmatpush2.bf16.msra.mxu0 0
    %2184 = vmatprep.subr.bf16.mxu0 0
    %2185 = vmatpush2.bf16.msra.mxu0 0
    %2186 = vmatprep.subr.bf16.mxu0 0
    %2187 = vmatpush2.bf16.msra.mxu0 0
    %2188 = vmatprep.subr.bf16.mxu0 0
    %2189 = vmatpush2.bf16.msra.mxu0 0
    %2190 = vmatprep.subr.bf16.mxu0 0
    %2191 = vmatpush2.bf16.msra.mxu0 0
    %2192 = vmatprep.subr.bf16.mxu0 0
    %2193 = vmatpush2.bf16.msra.mxu0 0
    %2194 = vmatprep.subr.bf16.mxu0 0
    %2195 = vmatpush2.bf16.msra.mxu0 0
    %2196 = vmatprep.mubr.bf16.mxu0 0
    %2197 = vmatmul.mubr.bf16.gmra.mxu0 %v891
    %v2198 = vpop.f32.mrf.mxu0
    %v2199 = vadd.f32 0.0, %v2198
    %v2200 = vpop.f32.mrf.mxu0
    %v2201 = vpop.f32.mrf.mxu0
    %v2202 = vadd.f32 0.0, %v2201
    %v2203 = vpop.f32.mrf.mxu0
    %2204 = vdwg.mxu0
    %s2205 = scalar_lea.vmem %s3, 384
    %2206 = vst [vmem:[%s2205] sm:$0xff] %v2199
    %2207 = vst [vmem:[%s2205 + $0x8] sm:$0xff] %v2202
    %s2208 = scalar_lea.vmem [#allocation2], 200
    %v2209 = vld [vmem:[%s2208] sm:$0xf]
    %v2210 = vld [vmem:[%s2208 + $0x4] sm:$0xf]
    %v2213 = vunpack.c.l.b16 %v2209
    %v2214 = vunpack.c.l.b16 %v2210
    %v2215 = vpack.c.b16 %v2214, %v2213
    %2217 = vmatprep.subr.bf16.mxu0 0
    %2218 = vmatpush1.bf16.msra.mxu0 0
    %2219 = vmatprep.subr.bf16.mxu0 0
    %2220 = vmatpush1.bf16.msra.mxu0 0
    %2221 = vmatprep.subr.bf16.mxu0 0
    %2222 = vmatpush1.bf16.msra.mxu0 0
    %2223 = vmatprep.subr.bf16.mxu0 0
    %2224 = vmatpush1.bf16.msra.mxu0 0
    %2225 = vmatprep.subr.bf16.mxu0 0
    %2226 = vmatpush1.bf16.msra.mxu0 0
    %2227 = vmatprep.subr.bf16.mxu0 0
    %2228 = vmatpush1.bf16.msra.mxu0 0
    %2229 = vmatprep.subr.bf16.mxu0 0
    %2230 = vmatpush1.bf16.msra.mxu0 0
    %2231 = vmatprep.subr.bf16.mxu0 0
    %2232 = vmatpush1.bf16.msra.mxu0 %v2215
    %2233 = vmatprep.subr.bf16.mxu0 0
    %2234 = vmatpush2.bf16.msra.mxu0 0
    %2235 = vmatprep.subr.bf16.mxu0 0
    %2236 = vmatpush2.bf16.msra.mxu0 0
    %2237 = vmatprep.subr.bf16.mxu0 0
    %2238 = vmatpush2.bf16.msra.mxu0 0
    %2239 = vmatprep.subr.bf16.mxu0 0
    %2240 = vmatpush2.bf16.msra.mxu0 0
    %2241 = vmatprep.subr.bf16.mxu0 0
    %2242 = vmatpush2.bf16.msra.mxu0 0
    %2243 = vmatprep.subr.bf16.mxu0 0
    %2244 = vmatpush2.bf16.msra.mxu0 0
    %2245 = vmatprep.subr.bf16.mxu0 0
    %2246 = vmatpush2.bf16.msra.mxu0 0
    %2247 = vmatprep.subr.bf16.mxu0 0
    %2248 = vmatpush2.bf16.msra.mxu0 0
    %2249 = vmatprep.mubr.bf16.mxu0 0
    %2250 = vmatmul.mubr.bf16.gmra.mxu0 %v891
    %v2251 = vpop.f32.mrf.mxu0
    %v2252 = vadd.f32 0.0, %v2251
    %v2253 = vpop.f32.mrf.mxu0
    %v2254 = vpop.f32.mrf.mxu0
    %v2255 = vadd.f32 0.0, %v2254
    %v2256 = vpop.f32.mrf.mxu0
    %2257 = vdwg.mxu0
    %s2258 = scalar_lea.vmem %s3, 400
    %2259 = vst [vmem:[%s2258] sm:$0xff] %v2252
    %2260 = vst [vmem:[%s2258 + $0x8] sm:$0xff] %v2255
    %s2261 = scalar_lea.vmem [#allocation2], 208
    %v2262 = vld [vmem:[%s2261] sm:$0xf]
    %v2263 = vld [vmem:[%s2261 + $0x4] sm:$0xf]
    %v2266 = vunpack.c.l.b16 %v2262
    %v2267 = vunpack.c.l.b16 %v2263
    %v2268 = vpack.c.b16 %v2267, %v2266
    %2270 = vmatprep.subr.bf16.mxu0 0
    %2271 = vmatpush1.bf16.msra.mxu0 0
    %2272 = vmatprep.subr.bf16.mxu0 0
    %2273 = vmatpush1.bf16.msra.mxu0 0
    %2274 = vmatprep.subr.bf16.mxu0 0
    %2275 = vmatpush1.bf16.msra.mxu0 0
    %2276 = vmatprep.subr.bf16.mxu0 0
    %2277 = vmatpush1.bf16.msra.mxu0 0
    %2278 = vmatprep.subr.bf16.mxu0 0
    %2279 = vmatpush1.bf16.msra.mxu0 0
    %2280 = vmatprep.subr.bf16.mxu0 0
    %2281 = vmatpush1.bf16.msra.mxu0 0
    %2282 = vmatprep.subr.bf16.mxu0 0
    %2283 = vmatpush1.bf16.msra.mxu0 0
    %2284 = vmatprep.subr.bf16.mxu0 0
    %2285 = vmatpush1.bf16.msra.mxu0 %v2268
    %2286 = vmatprep.subr.bf16.mxu0 0
    %2287 = vmatpush2.bf16.msra.mxu0 0
    %2288 = vmatprep.subr.bf16.mxu0 0
    %2289 = vmatpush2.bf16.msra.mxu0 0
    %2290 = vmatprep.subr.bf16.mxu0 0
    %2291 = vmatpush2.bf16.msra.mxu0 0
    %2292 = vmatprep.subr.bf16.mxu0 0
    %2293 = vmatpush2.bf16.msra.mxu0 0
    %2294 = vmatprep.subr.bf16.mxu0 0
    %2295 = vmatpush2.bf16.msra.mxu0 0
    %2296 = vmatprep.subr.bf16.mxu0 0
    %2297 = vmatpush2.bf16.msra.mxu0 0
    %2298 = vmatprep.subr.bf16.mxu0 0
    %2299 = vmatpush2.bf16.msra.mxu0 0
    %2300 = vmatprep.subr.bf16.mxu0 0
    %2301 = vmatpush2.bf16.msra.mxu0 0
    %2302 = vmatprep.mubr.bf16.mxu0 0
    %2303 = vmatmul.mubr.bf16.gmra.mxu0 %v891
    %v2304 = vpop.f32.mrf.mxu0
    %v2305 = vadd.f32 0.0, %v2304
    %v2306 = vpop.f32.mrf.mxu0
    %v2307 = vpop.f32.mrf.mxu0
    %v2308 = vadd.f32 0.0, %v2307
    %v2309 = vpop.f32.mrf.mxu0
    %2310 = vdwg.mxu0
    %s2311 = scalar_lea.vmem %s3, 416
    %2312 = vst [vmem:[%s2311] sm:$0xff] %v2305
    %2313 = vst [vmem:[%s2311 + $0x8] sm:$0xff] %v2308
    %s2314 = scalar_lea.vmem [#allocation2], 216
    %v2315 = vld [vmem:[%s2314] sm:$0xf]
    %v2316 = vld [vmem:[%s2314 + $0x4] sm:$0xf]
    %v2319 = vunpack.c.l.b16 %v2315
    %v2320 = vunpack.c.l.b16 %v2316
    %v2321 = vpack.c.b16 %v2320, %v2319
    %2323 = vmatprep.subr.bf16.mxu0 0
    %2324 = vmatpush1.bf16.msra.mxu0 0
    %2325 = vmatprep.subr.bf16.mxu0 0
    %2326 = vmatpush1.bf16.msra.mxu0 0
    %2327 = vmatprep.subr.bf16.mxu0 0
    %2328 = vmatpush1.bf16.msra.mxu0 0
    %2329 = vmatprep.subr.bf16.mxu0 0
    %2330 = vmatpush1.bf16.msra.mxu0 0
    %2331 = vmatprep.subr.bf16.mxu0 0
    %2332 = vmatpush1.bf16.msra.mxu0 0
    %2333 = vmatprep.subr.bf16.mxu0 0
    %2334 = vmatpush1.bf16.msra.mxu0 0
    %2335 = vmatprep.subr.bf16.mxu0 0
    %2336 = vmatpush1.bf16.msra.mxu0 0
    %2337 = vmatprep.subr.bf16.mxu0 0
    %2338 = vmatpush1.bf16.msra.mxu0 %v2321
    %2339 = vmatprep.subr.bf16.mxu0 0
    %2340 = vmatpush2.bf16.msra.mxu0 0
    %2341 = vmatprep.subr.bf16.mxu0 0
    %2342 = vmatpush2.bf16.msra.mxu0 0
    %2343 = vmatprep.subr.bf16.mxu0 0
    %2344 = vmatpush2.bf16.msra.mxu0 0
    %2345 = vmatprep.subr.bf16.mxu0 0
    %2346 = vmatpush2.bf16.msra.mxu0 0
    %2347 = vmatprep.subr.bf16.mxu0 0
    %2348 = vmatpush2.bf16.msra.mxu0 0
    %2349 = vmatprep.subr.bf16.mxu0 0
    %2350 = vmatpush2.bf16.msra.mxu0 0
    %2351 = vmatprep.subr.bf16.mxu0 0
    %2352 = vmatpush2.bf16.msra.mxu0 0
    %2353 = vmatprep.subr.bf16.mxu0 0
    %2354 = vmatpush2.bf16.msra.mxu0 0
    %2355 = vmatprep.mubr.bf16.mxu0 0
    %2356 = vmatmul.mubr.bf16.gmra.mxu0 %v891
    %v2357 = vpop.f32.mrf.mxu0
    %v2358 = vadd.f32 0.0, %v2357
    %v2359 = vpop.f32.mrf.mxu0
    %v2360 = vpop.f32.mrf.mxu0
    %v2361 = vadd.f32 0.0, %v2360
    %v2362 = vpop.f32.mrf.mxu0
    %2363 = vdwg.mxu0
    %s2364 = scalar_lea.vmem %s3, 432
    %2365 = vst [vmem:[%s2364] sm:$0xff] %v2358
    %2366 = vst [vmem:[%s2364 + $0x8] sm:$0xff] %v2361
    %s2367 = scalar_lea.vmem [#allocation2], 224
    %v2368 = vld [vmem:[%s2367] sm:$0xf]
    %v2369 = vld [vmem:[%s2367 + $0x4] sm:$0xf]
    %v2372 = vunpack.c.l.b16 %v2368
    %v2373 = vunpack.c.l.b16 %v2369
    %v2374 = vpack.c.b16 %v2373, %v2372
    %2376 = vmatprep.subr.bf16.mxu0 0
    %2377 = vmatpush1.bf16.msra.mxu0 0
    %2378 = vmatprep.subr.bf16.mxu0 0
    %2379 = vmatpush1.bf16.msra.mxu0 0
    %2380 = vmatprep.subr.bf16.mxu0 0
    %2381 = vmatpush1.bf16.msra.mxu0 0
    %2382 = vmatprep.subr.bf16.mxu0 0
    %2383 = vmatpush1.bf16.msra.mxu0 0
    %2384 = vmatprep.subr.bf16.mxu0 0
    %2385 = vmatpush1.bf16.msra.mxu0 0
    %2386 = vmatprep.subr.bf16.mxu0 0
    %2387 = vmatpush1.bf16.msra.mxu0 0
    %2388 = vmatprep.subr.bf16.mxu0 0
    %2389 = vmatpush1.bf16.msra.mxu0 0
    %2390 = vmatprep.subr.bf16.mxu0 0
    %2391 = vmatpush1.bf16.msra.mxu0 %v2374
    %2392 = vmatprep.subr.bf16.mxu0 0
    %2393 = vmatpush2.bf16.msra.mxu0 0
    %2394 = vmatprep.subr.bf16.mxu0 0
    %2395 = vmatpush2.bf16.msra.mxu0 0
    %2396 = vmatprep.subr.bf16.mxu0 0
    %2397 = vmatpush2.bf16.msra.mxu0 0
    %2398 = vmatprep.subr.bf16.mxu0 0
    %2399 = vmatpush2.bf16.msra.mxu0 0
    %2400 = vmatprep.subr.bf16.mxu0 0
    %2401 = vmatpush2.bf16.msra.mxu0 0
    %2402 = vmatprep.subr.bf16.mxu0 0
    %2403 = vmatpush2.bf16.msra.mxu0 0
    %2404 = vmatprep.subr.bf16.mxu0 0
    %2405 = vmatpush2.bf16.msra.mxu0 0
    %2406 = vmatprep.subr.bf16.mxu0 0
    %2407 = vmatpush2.bf16.msra.mxu0 0
    %2408 = vmatprep.mubr.bf16.mxu0 0
    %2409 = vmatmul.mubr.bf16.gmra.mxu0 %v891
    %v2410 = vpop.f32.mrf.mxu0
    %v2411 = vadd.f32 0.0, %v2410
    %v2412 = vpop.f32.mrf.mxu0
    %v2413 = vpop.f32.mrf.mxu0
    %v2414 = vadd.f32 0.0, %v2413
    %v2415 = vpop.f32.mrf.mxu0
    %2416 = vdwg.mxu0
    %s2417 = scalar_lea.vmem %s3, 448
    %2418 = vst [vmem:[%s2417] sm:$0xff] %v2411
    %2419 = vst [vmem:[%s2417 + $0x8] sm:$0xff] %v2414
    %s2420 = scalar_lea.vmem [#allocation2], 232
    %v2421 = vld [vmem:[%s2420] sm:$0xf]
    %v2422 = vld [vmem:[%s2420 + $0x4] sm:$0xf]
    %v2425 = vunpack.c.l.b16 %v2421
    %v2426 = vunpack.c.l.b16 %v2422
    %v2427 = vpack.c.b16 %v2426, %v2425
    %2429 = vmatprep.subr.bf16.mxu0 0
    %2430 = vmatpush1.bf16.msra.mxu0 0
    %2431 = vmatprep.subr.bf16.mxu0 0
    %2432 = vmatpush1.bf16.msra.mxu0 0
    %2433 = vmatprep.subr.bf16.mxu0 0
    %2434 = vmatpush1.bf16.msra.mxu0 0
    %2435 = vmatprep.subr.bf16.mxu0 0
    %2436 = vmatpush1.bf16.msra.mxu0 0
    %2437 = vmatprep.subr.bf16.mxu0 0
    %2438 = vmatpush1.bf16.msra.mxu0 0
    %2439 = vmatprep.subr.bf16.mxu0 0
    %2440 = vmatpush1.bf16.msra.mxu0 0
    %2441 = vmatprep.subr.bf16.mxu0 0
    %2442 = vmatpush1.bf16.msra.mxu0 0
    %2443 = vmatprep.subr.bf16.mxu0 0
    %2444 = vmatpush1.bf16.msra.mxu0 %v2427
    %2445 = vmatprep.subr.bf16.mxu0 0
    %2446 = vmatpush2.bf16.msra.mxu0 0
    %2447 = vmatprep.subr.bf16.mxu0 0
    %2448 = vmatpush2.bf16.msra.mxu0 0
    %2449 = vmatprep.subr.bf16.mxu0 0
    %2450 = vmatpush2.bf16.msra.mxu0 0
    %2451 = vmatprep.subr.bf16.mxu0 0
    %2452 = vmatpush2.bf16.msra.mxu0 0
    %2453 = vmatprep.subr.bf16.mxu0 0
    %2454 = vmatpush2.bf16.msra.mxu0 0
    %2455 = vmatprep.subr.bf16.mxu0 0
    %2456 = vmatpush2.bf16.msra.mxu0 0
    %2457 = vmatprep.subr.bf16.mxu0 0
    %2458 = vmatpush2.bf16.msra.mxu0 0
    %2459 = vmatprep.subr.bf16.mxu0 0
    %2460 = vmatpush2.bf16.msra.mxu0 0
    %2461 = vmatprep.mubr.bf16.mxu0 0
    %2462 = vmatmul.mubr.bf16.gmra.mxu0 %v891
    %v2463 = vpop.f32.mrf.mxu0
    %v2464 = vadd.f32 0.0, %v2463
    %v2465 = vpop.f32.mrf.mxu0
    %v2466 = vpop.f32.mrf.mxu0
    %v2467 = vadd.f32 0.0, %v2466
    %v2468 = vpop.f32.mrf.mxu0
    %2469 = vdwg.mxu0
    %s2470 = scalar_lea.vmem %s3, 464
    %2471 = vst [vmem:[%s2470] sm:$0xff] %v2464
    %2472 = vst [vmem:[%s2470 + $0x8] sm:$0xff] %v2467
    %s2473 = scalar_lea.vmem [#allocation2], 240
    %v2474 = vld [vmem:[%s2473] sm:$0xf]
    %v2475 = vld [vmem:[%s2473 + $0x4] sm:$0xf]
    %v2478 = vunpack.c.l.b16 %v2474
    %v2479 = vunpack.c.l.b16 %v2475
    %v2480 = vpack.c.b16 %v2479, %v2478
    %2482 = vmatprep.subr.bf16.mxu0 0
    %2483 = vmatpush1.bf16.msra.mxu0 0
    %2484 = vmatprep.subr.bf16.mxu0 0
    %2485 = vmatpush1.bf16.msra.mxu0 0
    %2486 = vmatprep.subr.bf16.mxu0 0
    %2487 = vmatpush1.bf16.msra.mxu0 0
    %2488 = vmatprep.subr.bf16.mxu0 0
    %2489 = vmatpush1.bf16.msra.mxu0 0
    %2490 = vmatprep.subr.bf16.mxu0 0
    %2491 = vmatpush1.bf16.msra.mxu0 0
    %2492 = vmatprep.subr.bf16.mxu0 0
    %2493 = vmatpush1.bf16.msra.mxu0 0
    %2494 = vmatprep.subr.bf16.mxu0 0
    %2495 = vmatpush1.bf16.msra.mxu0 0
    %2496 = vmatprep.subr.bf16.mxu0 0
    %2497 = vmatpush1.bf16.msra.mxu0 %v2480
    %2498 = vmatprep.subr.bf16.mxu0 0
    %2499 = vmatpush2.bf16.msra.mxu0 0
    %2500 = vmatprep.subr.bf16.mxu0 0
    %2501 = vmatpush2.bf16.msra.mxu0 0
    %2502 = vmatprep.subr.bf16.mxu0 0
    %2503 = vmatpush2.bf16.msra.mxu0 0
    %2504 = vmatprep.subr.bf16.mxu0 0
    %2505 = vmatpush2.bf16.msra.mxu0 0
    %2506 = vmatprep.subr.bf16.mxu0 0
    %2507 = vmatpush2.bf16.msra.mxu0 0
    %2508 = vmatprep.subr.bf16.mxu0 0
    %2509 = vmatpush2.bf16.msra.mxu0 0
    %2510 = vmatprep.subr.bf16.mxu0 0
    %2511 = vmatpush2.bf16.msra.mxu0 0
    %2512 = vmatprep.subr.bf16.mxu0 0
    %2513 = vmatpush2.bf16.msra.mxu0 0
    %2514 = vmatprep.mubr.bf16.mxu0 0
    %2515 = vmatmul.mubr.bf16.gmra.mxu0 %v891
    %v2516 = vpop.f32.mrf.mxu0
    %v2517 = vadd.f32 0.0, %v2516
    %v2518 = vpop.f32.mrf.mxu0
    %v2519 = vpop.f32.mrf.mxu0
    %v2520 = vadd.f32 0.0, %v2519
    %v2521 = vpop.f32.mrf.mxu0
    %2522 = vdwg.mxu0
    %s2523 = scalar_lea.vmem %s3, 480
    %2524 = vst [vmem:[%s2523] sm:$0xff] %v2517
    %2525 = vst [vmem:[%s2523 + $0x8] sm:$0xff] %v2520
    %s2526 = scalar_lea.vmem [#allocation2], 248
    %v2527 = vld [vmem:[%s2526] sm:$0xf]
    %v2528 = vld [vmem:[%s2526 + $0x4] sm:$0xf]
    %v2531 = vunpack.c.l.b16 %v2527
    %v2532 = vunpack.c.l.b16 %v2528
    %v2533 = vpack.c.b16 %v2532, %v2531
    %2535 = vmatprep.subr.bf16.mxu0 0
    %2536 = vmatpush1.bf16.msra.mxu0 0
    %2537 = vmatprep.subr.bf16.mxu0 0
    %2538 = vmatpush1.bf16.msra.mxu0 0
    %2539 = vmatprep.subr.bf16.mxu0 0
    %2540 = vmatpush1.bf16.msra.mxu0 0
    %2541 = vmatprep.subr.bf16.mxu0 0
    %2542 = vmatpush1.bf16.msra.mxu0 0
    %2543 = vmatprep.subr.bf16.mxu0 0
    %2544 = vmatpush1.bf16.msra.mxu0 0
    %2545 = vmatprep.subr.bf16.mxu0 0
    %2546 = vmatpush1.bf16.msra.mxu0 0
    %2547 = vmatprep.subr.bf16.mxu0 0
    %2548 = vmatpush1.bf16.msra.mxu0 0
    %2549 = vmatprep.subr.bf16.mxu0 0
    %2550 = vmatpush1.bf16.msra.mxu0 %v2533
    %2551 = vmatprep.subr.bf16.mxu0 0
    %2552 = vmatpush2.bf16.msra.mxu0 0
    %2553 = vmatprep.subr.bf16.mxu0 0
    %2554 = vmatpush2.bf16.msra.mxu0 0
    %2555 = vmatprep.subr.bf16.mxu0 0
    %2556 = vmatpush2.bf16.msra.mxu0 0
    %2557 = vmatprep.subr.bf16.mxu0 0
    %2558 = vmatpush2.bf16.msra.mxu0 0
    %2559 = vmatprep.subr.bf16.mxu0 0
    %2560 = vmatpush2.bf16.msra.mxu0 0
    %2561 = vmatprep.subr.bf16.mxu0 0
    %2562 = vmatpush2.bf16.msra.mxu0 0
    %2563 = vmatprep.subr.bf16.mxu0 0
    %2564 = vmatpush2.bf16.msra.mxu0 0
    %2565 = vmatprep.subr.bf16.mxu0 0
    %2566 = vmatpush2.bf16.msra.mxu0 0
    %2567 = vmatprep.mubr.bf16.mxu0 0
    %2568 = vmatmul.mubr.bf16.gmra.mxu0 %v891
    %v2569 = vpop.f32.mrf.mxu0
    %v2570 = vadd.f32 0.0, %v2569
    %v2571 = vpop.f32.mrf.mxu0
    %v2572 = vpop.f32.mrf.mxu0
    %v2573 = vadd.f32 0.0, %v2572
    %v2574 = vpop.f32.mrf.mxu0
    %2575 = vdwg.mxu0
    %s2576 = scalar_lea.vmem %s3, 496
    %2577 = vst [vmem:[%s2576] sm:$0xff] %v2570
    %2578 = vst [vmem:[%s2576 + $0x8] sm:$0xff] %v2573
    // Predicated region
    $region26: #{run.1} parent=1 // pred_check
      _
    $region27: #{run.1} parent=1 // pred_check_branch
      %2580 = sbr.rel (0) target = $region29
    $region28: #{run.1} parent=1 // pred_region
      _
    $region29: #{run.1} parent=1 // pred_fallthru
      _
    // Predicated region
    $region30: #{run.1} parent=1 // pred_check
      _
    $region31: #{run.1} parent=1 // pred_check_branch
      %2582 = sbr.rel (0) target = $region33
    $region32: #{run.1} parent=1 // pred_region
      _
    $region33: #{run.1} parent=1 // pred_fallthru
      _
    %2583 = vsyncpa [#allocation4], 1
    %2584 = vsyncpa [#allocation6], 1

</llo_original>
